<compile_context>
chip_gen: v7x
topology: tpu7x:2x2x1
jax: 0.10.0
libtpu: 0.0.40
codegen_flags: <defaults>
</compile_context>

<pallas_src>
import jax
import jax.numpy as jnp
from jax.experimental import pallas as pl
from jax.experimental.pallas import tpu as pltpu

# ---- static configuration (small, consistent with the forward) -------------
N, C_IN, H, W = 2, 4, 16, 16      # input x: (N, C_IN, H, W)  NCHW
HW = H * W
NHW = N * HW
C_FEAT = 32                        # backbone feature channels
N_CLS = 8                          # number of classes (coarse pred channels)
N_POINTS = 16                      # points sampled by the PointRend head
MLP_HID = 64                       # hidden width of the point head MLP
KH = KW = 3                        # backbone conv kernel
K_IM2COL = KH * KW * C_IN          # 36
K_PAD = 40                         # pad to sublane multiple; row 36 = ones (bias fold)


# =============================================================================
# Single fused kernel.
#   Everything runs in the transposed orientation (channels on sublanes,
#   N*H*W on lanes) so feature/pred are written lane-dense as (N, C, HW).
# =============================================================================
def _pointrend_kernel(pt_ref, w1_ref, w2_ref, b2_ref,
                      mw1_ref, mb1_ref, mw2_ref, mb2_ref, mw3_ref, mb3_ref,
                      feat_ref, pred_ref, rend_ref, idx_ref):
    # pt_ref : (K_PAD, NHW) f32  (im2col patches, row 36 = ones for bias)
    # w1_ref : (C_FEAT, K_PAD)   (conv1 weight with bias column folded in)
    # w2_ref : (N_CLS, C_FEAT)   b2_ref: (N_CLS, 1)
    # mw1    : (HID, C_FEAT+N_CLS)  mb1: (HID,1)  mw2: (HID,HID)  mb2: (HID,1)
    # mw3    : (N_CLS, HID)         mb3: (N_CLS,1)

    # ---- backbone: one im2col matmul (+folded bias) + ReLU, then 1x1 conv ----
    feat = jnp.maximum(
        jnp.dot(w1_ref[...], pt_ref[...], preferred_element_type=jnp.float32),
        0.0)                                                          # (C_FEAT, NHW)
    pred = jnp.dot(w2_ref[...], feat,
                   preferred_element_type=jnp.float32) + b2_ref[...]  # (N_CLS, NHW)

    for n in range(N):                                                # N=2, unrolled
        sl = slice(n * HW, (n + 1) * HW)                              # 128-aligned
        feat_ref[n] = feat[:, sl]
        pred_ref[n] = pred[:, sl]

    # ---- uncertainty = top2 - top1 over the class rows (in-kernel, no sort) --
    cls_iota = jax.lax.broadcasted_iota(jnp.int32, (N_CLS, NHW), 0)
    m1 = jnp.max(pred, axis=0, keepdims=True)                         # (1, NHW)
    am = jnp.min(jnp.where(pred == m1, cls_iota, N_CLS),
                 axis=0, keepdims=True)                               # first argmax row
    m2 = jnp.max(jnp.where(cls_iota == am, -jnp.inf, pred),
                 axis=0, keepdims=True)                               # second max
    unc = m2 - m1                                                     # (1, NHW), <= 0

    # ---- top-N_POINTS per image (argmax+mask loop) + one-hot MXU gather ------
    fp = jnp.concatenate([feat, pred], axis=0)                        # (C_FEAT+N_CLS, NHW)
    lane_iota = jax.lax.broadcasted_iota(jnp.int32, (1, HW), 1)
    pt_iota = jax.lax.broadcasted_iota(jnp.int32, (1, N_POINTS), 1)
    pos_iota = jax.lax.broadcasted_iota(jnp.int32, (HW, N_POINTS), 0)

    idx_rows = []
    gathered = []
    for n in range(N):                                                # N=2, unrolled
        u = unc[:, n * HW:(n + 1) * HW]                               # (1, HW)
        idx_row = jnp.zeros((1, N_POINTS), jnp.int32)
        for p in range(N_POINTS):                                     # 16, unrolled
            cur = jnp.max(u, axis=1, keepdims=True)                   # (1, 1)
            sel_idx = jnp.min(jnp.where(u == cur, lane_iota, HW),
                              axis=1, keepdims=True)                  # first occurrence
            idx_row = jnp.where(pt_iota == p, sel_idx, idx_row)
            u = jnp.where(lane_iota == sel_idx, -jnp.inf, u)
        idx_rows.append(idx_row)

        # exact gather of [feature; logits] at the selected points, on the MXU
        sel = (pos_iota == idx_row).astype(jnp.float32)               # (HW, P) one-hot
        gathered.append(jnp.dot(fp[:, n * HW:(n + 1) * HW], sel,
                                preferred_element_type=jnp.float32))  # (C_FEAT+N_CLS, P)

    idx_ref[...] = jnp.concatenate(idx_rows, axis=0)                  # (N, P) int32

    # ---- point MLP, batched over both images: one (40, N*P) block ------------
    g = jnp.concatenate(gathered, axis=1)                             # (C_FEAT+N_CLS, N*P)
    h = jnp.maximum(jnp.dot(mw1_ref[...], g,
                            preferred_element_type=jnp.float32) + mb1_ref[...], 0.0)
    h = jnp.maximum(jnp.dot(mw2_ref[...], h,
                            preferred_element_type=jnp.float32) + mb2_ref[...], 0.0)
    out = jnp.dot(mw3_ref[...], h,
                  preferred_element_type=jnp.float32) + mb3_ref[...]  # (N_CLS, N*P)

    for n in range(N):
        rend_ref[n] = out[:, n * N_POINTS:(n + 1) * N_POINTS]


# =============================================================================
# Wrapper: im2col prep + parameter packing (tiny XLA glue), one pallas_call,
#          point-coordinate math and NCHW reshapes on the way out.
# =============================================================================
def pointrend_forward(x_nchw, params):
    x = x_nchw.astype(jnp.float32)

    # im2col directly in (K, N*HW) order (rows ordered (kh, kw, ci)); row 36 = ones.
    x_t = jnp.transpose(x, (1, 0, 2, 3))                              # (C_IN, N, H, W)
    x_pad = jnp.pad(x_t, ((0, 0), (0, 0), (1, 1), (1, 1)))            # 'same' padding
    rows = [x_pad[:, :, kh:kh + H, kw:kw + W].reshape(C_IN, NHW)
            for kh in range(KH) for kw in range(KW)]
    patches = jnp.concatenate(
        rows + [jnp.ones((1, NHW), jnp.float32),
                jnp.zeros((K_PAD - K_IM2COL - 1, NHW), jnp.float32)],
        axis=0)                                                       # (K_PAD, NHW)

    # conv1 weight with bias folded in as column 36, transposed once.
    w1e = jnp.concatenate(
        [params["w_conv1"].reshape(K_IM2COL, C_FEAT).astype(jnp.float32),
         params["b_conv1"].reshape(1, C_FEAT).astype(jnp.float32),
         jnp.zeros((K_PAD - K_IM2COL - 1, C_FEAT), jnp.float32)],
        axis=0).T                                                     # (C_FEAT, K_PAD)
    w2t = params["w_conv2"].T.astype(jnp.float32)                     # (N_CLS, C_FEAT)
    b2 = params["b_conv2"].reshape(N_CLS, 1).astype(jnp.float32)

    mw1 = params["w_fc1"].T.astype(jnp.float32)                       # (HID, C_FEAT+N_CLS)
    mb1 = params["b_fc1"].reshape(MLP_HID, 1).astype(jnp.float32)
    mw2 = params["w_fc2"].T.astype(jnp.float32)                       # (HID, HID)
    mb2 = params["b_fc2"].reshape(MLP_HID, 1).astype(jnp.float32)
    mw3 = params["w_fc3"].T.astype(jnp.float32)                       # (N_CLS, HID)
    mb3 = params["b_fc3"].reshape(N_CLS, 1).astype(jnp.float32)

    vmem = pl.BlockSpec(memory_space=pltpu.MemorySpace.VMEM)
    feat, pred, rend, idx = pl.pallas_call(
        _pointrend_kernel,
        out_shape=(
            jax.ShapeDtypeStruct((N, C_FEAT, HW), jnp.float32),
            jax.ShapeDtypeStruct((N, N_CLS, HW), jnp.float32),
            jax.ShapeDtypeStruct((N, N_CLS, N_POINTS), jnp.float32),
            jax.ShapeDtypeStruct((N, N_POINTS), jnp.int32),
        ),
        in_specs=[vmem] * 10,
        out_specs=(vmem, vmem, vmem, vmem),
    )(patches, w1e, w2t, b2, mw1, mb1, mw2, mb2, mw3, mb3)

    # normalized point coordinates (x, y) at pixel centers
    py = (idx // W).astype(jnp.float32)
    px = (idx % W).astype(jnp.float32)
    points = jnp.stack([(px + 0.5) / W, (py + 0.5) / H], axis=-1)     # (N, P, 2)

    return {
        "feature": feat.reshape(N, C_FEAT, H, W),   # free reshape, already lane-dense
        "pred": pred.reshape(N, N_CLS, H, W),
        "rend": rend,                               # (N, N_CLS, P)
        "points": points,                           # (N, P, 2)
    }


def init_params(key):
    ks = jax.random.split(key, 5)
    scale = 0.1
    return {
        "w_conv1": scale * jax.random.normal(ks[0], (KH, KW, C_IN, C_FEAT), jnp.float32),
        "b_conv1": jnp.zeros((C_FEAT,), jnp.float32),
        "w_conv2": scale * jax.random.normal(ks[1], (C_FEAT, N_CLS), jnp.float32),
        "b_conv2": jnp.zeros((N_CLS,), jnp.float32),
        "w_fc1": scale * jax.random.normal(ks[2], (C_FEAT + N_CLS, MLP_HID), jnp.float32),
        "b_fc1": jnp.zeros((MLP_HID,), jnp.float32),
        "w_fc2": scale * jax.random.normal(ks[3], (MLP_HID, MLP_HID), jnp.float32),
        "b_fc2": jnp.zeros((MLP_HID,), jnp.float32),
        "w_fc3": scale * jax.random.normal(ks[4], (MLP_HID, N_CLS), jnp.float32),
        "b_fc3": jnp.zeros((N_CLS,), jnp.float32),
    }


if __name__ == "__main__":
    key = jax.random.PRNGKey(0)
    x = jax.random.normal(key, (N, C_IN, H, W), jnp.float32)   # NCHW input
    params = init_params(jax.random.PRNGKey(42))

    result = jax.jit(pointrend_forward)(x, params)
    jax.block_until_ready(result)

    assert result["feature"].shape == (N, C_FEAT, H, W)
    assert result["pred"].shape == (N, N_CLS, H, W)
    assert result["rend"].shape == (N, N_CLS, N_POINTS)
    assert result["points"].shape == (N, N_POINTS, 2)
    assert bool(jnp.all(jnp.isfinite(result["feature"])))
    assert bool(jnp.all(jnp.isfinite(result["pred"])))
    assert bool(jnp.all(jnp.isfinite(result["rend"])))
    assert bool(jnp.all((result["points"] >= 0.0) & (result["points"] <= 1.0)))
    print("KERNEL_OK")
</pallas_src>

<mosaic_0001>
module attributes {stable_mosaic.version = 11 : i64} {
  func.func @_pointrend_kernel(%arg0: memref<40x512xf32, #tpu.memory_space<vmem>>, %arg1: memref<32x40xf32, #tpu.memory_space<vmem>>, %arg2: memref<8x32xf32, #tpu.memory_space<vmem>>, %arg3: memref<8x1xf32, #tpu.memory_space<vmem>>, %arg4: memref<64x40xf32, #tpu.memory_space<vmem>>, %arg5: memref<64x1xf32, #tpu.memory_space<vmem>>, %arg6: memref<64x64xf32, #tpu.memory_space<vmem>>, %arg7: memref<64x1xf32, #tpu.memory_space<vmem>>, %arg8: memref<8x64xf32, #tpu.memory_space<vmem>>, %arg9: memref<8x1xf32, #tpu.memory_space<vmem>>, %arg10: memref<2x32x256xf32, #tpu.memory_space<vmem>>, %arg11: memref<2x8x256xf32, #tpu.memory_space<vmem>>, %arg12: memref<2x8x16xf32, #tpu.memory_space<vmem>>, %arg13: memref<2x16xi32, #tpu.memory_space<vmem>>) attributes {dimension_semantics = [], scalar_prefetch = 0 : i64, scratch_operands = 0 : i64, tpu.core_type = #tpu.core_type<tc>} {
    %c0 = arith.constant 0 : index
    %c0_0 = arith.constant 0 : index
    %0 = vector.load %arg1[%c0, %c0_0] : memref<32x40xf32, #tpu.memory_space<vmem>>, vector<32x40xf32>
    %c0_1 = arith.constant 0 : index
    %c0_2 = arith.constant 0 : index
    %1 = vector.load %arg0[%c0_1, %c0_2] : memref<40x512xf32, #tpu.memory_space<vmem>>, vector<40x512xf32>
    %cst = arith.constant dense<0.000000e+00> : vector<32x512xf32>
    %2 = tpu.matmul %0, %1, %cst {dimension_numbers = #tpu.dot_dimension_numbers<[1], [0], [0], [1], [0, 0, 1, 1], [], []>} : vector<32x40xf32>, vector<40x512xf32>, vector<32x512xf32> -> vector<32x512xf32>
    %cst_3 = arith.constant 0.000000e+00 : f32
    %3 = vector.broadcast %cst_3 : f32 to vector<32x512xf32>
    %4 = arith.maximumf %2, %3 : vector<32x512xf32>
    %c0_4 = arith.constant 0 : index
    %c0_5 = arith.constant 0 : index
    %5 = vector.load %arg2[%c0_4, %c0_5] : memref<8x32xf32, #tpu.memory_space<vmem>>, vector<8x32xf32>
    %cst_6 = arith.constant dense<0.000000e+00> : vector<8x512xf32>
    %6 = tpu.matmul %5, %4, %cst_6 {dimension_numbers = #tpu.dot_dimension_numbers<[1], [0], [0], [1], [0, 0, 1, 1], [], []>} : vector<8x32xf32>, vector<32x512xf32>, vector<8x512xf32> -> vector<8x512xf32>
    %c0_7 = arith.constant 0 : index
    %c0_8 = arith.constant 0 : index
    %7 = vector.load %arg3[%c0_7, %c0_8] : memref<8x1xf32, #tpu.memory_space<vmem>>, vector<8x1xf32>
    %8 = vector.broadcast %7 : vector<8x1xf32> to vector<8x512xf32>
    %9 = arith.addf %6, %8 : vector<8x512xf32>
    %10 = vector.extract_strided_slice %4 {offsets = [0, 0], sizes = [32, 256], strides = [1, 1]} : vector<32x512xf32> to vector<32x256xf32>
    %c0_9 = arith.constant 0 : index
    %c0_10 = arith.constant 0 : index
    %c0_11 = arith.constant 0 : index
    %11 = vector.load %arg10[%c0_9, %c0_10, %c0_11] : memref<2x32x256xf32, #tpu.memory_space<vmem>>, vector<1x32x256xf32>
    %12 = vector.shape_cast %11 : vector<1x32x256xf32> to vector<32x256xf32>
    %13 = vector.shape_cast %10 : vector<32x256xf32> to vector<1x32x256xf32>
    tpu.vector_store %arg10[%c0_9, %c0_10, %c0_11], %13 {strides = array<i32>} : memref<2x32x256xf32, #tpu.memory_space<vmem>>, vector<1x32x256xf32>,
    %14 = vector.extract_strided_slice %9 {offsets = [0, 0], sizes = [8, 256], strides = [1, 1]} : vector<8x512xf32> to vector<8x256xf32>
    %c0_12 = arith.constant 0 : index
    %c0_13 = arith.constant 0 : index
    %c0_14 = arith.constant 0 : index
    %15 = vector.load %arg11[%c0_12, %c0_13, %c0_14] : memref<2x8x256xf32, #tpu.memory_space<vmem>>, vector<1x8x256xf32>
    %16 = vector.shape_cast %15 : vector<1x8x256xf32> to vector<8x256xf32>
    %17 = vector.shape_cast %14 : vector<8x256xf32> to vector<1x8x256xf32>
    tpu.vector_store %arg11[%c0_12, %c0_13, %c0_14], %17 {strides = array<i32>} : memref<2x8x256xf32, #tpu.memory_space<vmem>>, vector<1x8x256xf32>,
    %18 = vector.extract_strided_slice %4 {offsets = [0, 256], sizes = [32, 256], strides = [1, 1]} : vector<32x512xf32> to vector<32x256xf32>
    %c1 = arith.constant 1 : index
    %c0_15 = arith.constant 0 : index
    %c0_16 = arith.constant 0 : index
    %19 = vector.load %arg10[%c1, %c0_15, %c0_16] : memref<2x32x256xf32, #tpu.memory_space<vmem>>, vector<1x32x256xf32>
    %20 = vector.shape_cast %19 : vector<1x32x256xf32> to vector<32x256xf32>
    %21 = vector.shape_cast %18 : vector<32x256xf32> to vector<1x32x256xf32>
    tpu.vector_store %arg10[%c1, %c0_15, %c0_16], %21 {strides = array<i32>} : memref<2x32x256xf32, #tpu.memory_space<vmem>>, vector<1x32x256xf32>,
    %22 = vector.extract_strided_slice %9 {offsets = [0, 256], sizes = [8, 256], strides = [1, 1]} : vector<8x512xf32> to vector<8x256xf32>
    %c1_17 = arith.constant 1 : index
    %c0_18 = arith.constant 0 : index
    %c0_19 = arith.constant 0 : index
    %23 = vector.load %arg11[%c1_17, %c0_18, %c0_19] : memref<2x8x256xf32, #tpu.memory_space<vmem>>, vector<1x8x256xf32>
    %24 = vector.shape_cast %23 : vector<1x8x256xf32> to vector<8x256xf32>
    %25 = vector.shape_cast %22 : vector<8x256xf32> to vector<1x8x256xf32>
    tpu.vector_store %arg11[%c1_17, %c0_18, %c0_19], %25 {strides = array<i32>} : memref<2x8x256xf32, #tpu.memory_space<vmem>>, vector<1x8x256xf32>,
    %26 = tpu.iota {dimensions = array<i32: 0>} : vector<8x512xi32>
    %cst_20 = arith.constant dense<0xFF800000> : vector<512xf32>
    %27 = vector.multi_reduction <maximumf>, %9, %cst_20 [0] : vector<8x512xf32> to vector<512xf32>
    %28 = vector.shape_cast %27 : vector<512xf32> to vector<1x512xf32>
    %29 = vector.broadcast %28 : vector<1x512xf32> to vector<8x512xf32>
    %30 = arith.cmpf oeq, %9, %29 : vector<8x512xf32>
    %c8_i32 = arith.constant 8 : i32
    %31 = vector.broadcast %c8_i32 : i32 to vector<8x512xi32>
    %32 = arith.select %30, %26, %31 : vector<8x512xi1>, vector<8x512xi32>
    %cst_21 = arith.constant dense<2147483647> : vector<512xi32>
    %33 = vector.multi_reduction <minsi>, %32, %cst_21 [0] : vector<8x512xi32> to vector<512xi32>
    %34 = vector.shape_cast %33 : vector<512xi32> to vector<1x512xi32>
    %35 = vector.broadcast %34 : vector<1x512xi32> to vector<8x512xi32>
    %36 = arith.cmpi eq, %26, %35 : vector<8x512xi32>
    %cst_22 = arith.constant 0xFF800000 : f32
    %37 = vector.broadcast %cst_22 : f32 to vector<8x512xf32>
    %38 = arith.select %36, %37, %9 : vector<8x512xi1>, vector<8x512xf32>
    %cst_23 = arith.constant dense<0xFF800000> : vector<512xf32>
    %39 = vector.multi_reduction <maximumf>, %38, %cst_23 [0] : vector<8x512xf32> to vector<512xf32>
    %40 = vector.shape_cast %39 : vector<512xf32> to vector<1x512xf32>
    %41 = arith.subf %40, %28 : vector<1x512xf32>
    %42 = tpu.concatenate %4, %9 in 0 : vector<32x512xf32>, vector<8x512xf32> -> vector<40x512xf32>
    %43 = tpu.iota {dimensions = array<i32: 1>} : vector<1x256xi32>
    %44 = tpu.iota {dimensions = array<i32: 1>} : vector<1x16xi32>
    %45 = tpu.iota {dimensions = array<i32: 0>} : vector<256x16xi32>
    %46 = vector.extract_strided_slice %41 {offsets = [0, 0], sizes = [1, 256], strides = [1, 1]} : vector<1x512xf32> to vector<1x256xf32>
    %c0_i32 = arith.constant 0 : i32
    %47 = vector.broadcast %c0_i32 : i32 to vector<1x16xi32>
    %cst_24 = arith.constant dense<0xFF800000> : vector<1xf32>
    %48 = vector.multi_reduction <maximumf>, %46, %cst_24 [1] : vector<1x256xf32> to vector<1xf32>
    %49 = vector.shape_cast %48 : vector<1xf32> to vector<1x1xf32>
    %50 = vector.broadcast %49 : vector<1x1xf32> to vector<1x256xf32>
    %51 = arith.cmpf oeq, %46, %50 : vector<1x256xf32>
    %c256_i32 = arith.constant 256 : i32
    %52 = vector.broadcast %c256_i32 : i32 to vector<1x256xi32>
    %53 = arith.select %51, %43, %52 : vector<1x256xi1>, vector<1x256xi32>
    %cst_25 = arith.constant dense<2147483647> : vector<1xi32>
    %54 = vector.multi_reduction <minsi>, %53, %cst_25 [1] : vector<1x256xi32> to vector<1xi32>
    %55 = vector.shape_cast %54 : vector<1xi32> to vector<1x1xi32>
    %c0_i32_26 = arith.constant 0 : i32
    %56 = vector.broadcast %c0_i32_26 : i32 to vector<1x16xi32>
    %57 = arith.cmpi eq, %44, %56 : vector<1x16xi32>
    %58 = vector.shape_cast %55 : vector<1x1xi32> to vector<1x1xi32>
    %59 = vector.broadcast %58 : vector<1x1xi32> to vector<1x16xi32>
    %60 = arith.select %57, %59, %47 : vector<1x16xi1>, vector<1x16xi32>
    %61 = vector.broadcast %55 : vector<1x1xi32> to vector<1x256xi32>
    %62 = arith.cmpi eq, %43, %61 : vector<1x256xi32>
    %cst_27 = arith.constant 0xFF800000 : f32
    %63 = vector.broadcast %cst_27 : f32 to vector<1x256xf32>
    %64 = arith.select %62, %63, %46 : vector<1x256xi1>, vector<1x256xf32>
    %cst_28 = arith.constant dense<0xFF800000> : vector<1xf32>
    %65 = vector.multi_reduction <maximumf>, %64, %cst_28 [1] : vector<1x256xf32> to vector<1xf32>
    %66 = vector.shape_cast %65 : vector<1xf32> to vector<1x1xf32>
    %67 = vector.broadcast %66 : vector<1x1xf32> to vector<1x256xf32>
    %68 = arith.cmpf oeq, %64, %67 : vector<1x256xf32>
    %c256_i32_29 = arith.constant 256 : i32
    %69 = vector.broadcast %c256_i32_29 : i32 to vector<1x256xi32>
    %70 = arith.select %68, %43, %69 : vector<1x256xi1>, vector<1x256xi32>
    %cst_30 = arith.constant dense<2147483647> : vector<1xi32>
    %71 = vector.multi_reduction <minsi>, %70, %cst_30 [1] : vector<1x256xi32> to vector<1xi32>
    %72 = vector.shape_cast %71 : vector<1xi32> to vector<1x1xi32>
    %c1_i32 = arith.constant 1 : i32
    %73 = vector.broadcast %c1_i32 : i32 to vector<1x16xi32>
    %74 = arith.cmpi eq, %44, %73 : vector<1x16xi32>
    %75 = vector.shape_cast %72 : vector<1x1xi32> to vector<1x1xi32>
    %76 = vector.broadcast %75 : vector<1x1xi32> to vector<1x16xi32>
    %77 = arith.select %74, %76, %60 : vector<1x16xi1>, vector<1x16xi32>
    %78 = vector.broadcast %72 : vector<1x1xi32> to vector<1x256xi32>
    %79 = arith.cmpi eq, %43, %78 : vector<1x256xi32>
    %cst_31 = arith.constant 0xFF800000 : f32
    %80 = vector.broadcast %cst_31 : f32 to vector<1x256xf32>
    %81 = arith.select %79, %80, %64 : vector<1x256xi1>, vector<1x256xf32>
    %cst_32 = arith.constant dense<0xFF800000> : vector<1xf32>
    %82 = vector.multi_reduction <maximumf>, %81, %cst_32 [1] : vector<1x256xf32> to vector<1xf32>
    %83 = vector.shape_cast %82 : vector<1xf32> to vector<1x1xf32>
    %84 = vector.broadcast %83 : vector<1x1xf32> to vector<1x256xf32>
    %85 = arith.cmpf oeq, %81, %84 : vector<1x256xf32>
    %c256_i32_33 = arith.constant 256 : i32
    %86 = vector.broadcast %c256_i32_33 : i32 to vector<1x256xi32>
    %87 = arith.select %85, %43, %86 : vector<1x256xi1>, vector<1x256xi32>
    %cst_34 = arith.constant dense<2147483647> : vector<1xi32>
    %88 = vector.multi_reduction <minsi>, %87, %cst_34 [1] : vector<1x256xi32> to vector<1xi32>
    %89 = vector.shape_cast %88 : vector<1xi32> to vector<1x1xi32>
    %c2_i32 = arith.constant 2 : i32
    %90 = vector.broadcast %c2_i32 : i32 to vector<1x16xi32>
    %91 = arith.cmpi eq, %44, %90 : vector<1x16xi32>
    %92 = vector.shape_cast %89 : vector<1x1xi32> to vector<1x1xi32>
    %93 = vector.broadcast %92 : vector<1x1xi32> to vector<1x16xi32>
    %94 = arith.select %91, %93, %77 : vector<1x16xi1>, vector<1x16xi32>
    %95 = vector.broadcast %89 : vector<1x1xi32> to vector<1x256xi32>
    %96 = arith.cmpi eq, %43, %95 : vector<1x256xi32>
    %cst_35 = arith.constant 0xFF800000 : f32
    %97 = vector.broadcast %cst_35 : f32 to vector<1x256xf32>
    %98 = arith.select %96, %97, %81 : vector<1x256xi1>, vector<1x256xf32>
    %cst_36 = arith.constant dense<0xFF800000> : vector<1xf32>
    %99 = vector.multi_reduction <maximumf>, %98, %cst_36 [1] : vector<1x256xf32> to vector<1xf32>
    %100 = vector.shape_cast %99 : vector<1xf32> to vector<1x1xf32>
    %101 = vector.broadcast %100 : vector<1x1xf32> to vector<1x256xf32>
    %102 = arith.cmpf oeq, %98, %101 : vector<1x256xf32>
    %c256_i32_37 = arith.constant 256 : i32
    %103 = vector.broadcast %c256_i32_37 : i32 to vector<1x256xi32>
    %104 = arith.select %102, %43, %103 : vector<1x256xi1>, vector<1x256xi32>
    %cst_38 = arith.constant dense<2147483647> : vector<1xi32>
    %105 = vector.multi_reduction <minsi>, %104, %cst_38 [1] : vector<1x256xi32> to vector<1xi32>
    %106 = vector.shape_cast %105 : vector<1xi32> to vector<1x1xi32>
    %c3_i32 = arith.constant 3 : i32
    %107 = vector.broadcast %c3_i32 : i32 to vector<1x16xi32>
    %108 = arith.cmpi eq, %44, %107 : vector<1x16xi32>
    %109 = vector.shape_cast %106 : vector<1x1xi32> to vector<1x1xi32>
    %110 = vector.broadcast %109 : vector<1x1xi32> to vector<1x16xi32>
    %111 = arith.select %108, %110, %94 : vector<1x16xi1>, vector<1x16xi32>
    %112 = vector.broadcast %106 : vector<1x1xi32> to vector<1x256xi32>
    %113 = arith.cmpi eq, %43, %112 : vector<1x256xi32>
    %cst_39 = arith.constant 0xFF800000 : f32
    %114 = vector.broadcast %cst_39 : f32 to vector<1x256xf32>
    %115 = arith.select %113, %114, %98 : vector<1x256xi1>, vector<1x256xf32>
    %cst_40 = arith.constant dense<0xFF800000> : vector<1xf32>
    %116 = vector.multi_reduction <maximumf>, %115, %cst_40 [1] : vector<1x256xf32> to vector<1xf32>
    %117 = vector.shape_cast %116 : vector<1xf32> to vector<1x1xf32>
    %118 = vector.broadcast %117 : vector<1x1xf32> to vector<1x256xf32>
    %119 = arith.cmpf oeq, %115, %118 : vector<1x256xf32>
    %c256_i32_41 = arith.constant 256 : i32
    %120 = vector.broadcast %c256_i32_41 : i32 to vector<1x256xi32>
    %121 = arith.select %119, %43, %120 : vector<1x256xi1>, vector<1x256xi32>
    %cst_42 = arith.constant dense<2147483647> : vector<1xi32>
    %122 = vector.multi_reduction <minsi>, %121, %cst_42 [1] : vector<1x256xi32> to vector<1xi32>
    %123 = vector.shape_cast %122 : vector<1xi32> to vector<1x1xi32>
    %c4_i32 = arith.constant 4 : i32
    %124 = vector.broadcast %c4_i32 : i32 to vector<1x16xi32>
    %125 = arith.cmpi eq, %44, %124 : vector<1x16xi32>
    %126 = vector.shape_cast %123 : vector<1x1xi32> to vector<1x1xi32>
    %127 = vector.broadcast %126 : vector<1x1xi32> to vector<1x16xi32>
    %128 = arith.select %125, %127, %111 : vector<1x16xi1>, vector<1x16xi32>
    %129 = vector.broadcast %123 : vector<1x1xi32> to vector<1x256xi32>
    %130 = arith.cmpi eq, %43, %129 : vector<1x256xi32>
    %cst_43 = arith.constant 0xFF800000 : f32
    %131 = vector.broadcast %cst_43 : f32 to vector<1x256xf32>
    %132 = arith.select %130, %131, %115 : vector<1x256xi1>, vector<1x256xf32>
    %cst_44 = arith.constant dense<0xFF800000> : vector<1xf32>
    %133 = vector.multi_reduction <maximumf>, %132, %cst_44 [1] : vector<1x256xf32> to vector<1xf32>
    %134 = vector.shape_cast %133 : vector<1xf32> to vector<1x1xf32>
    %135 = vector.broadcast %134 : vector<1x1xf32> to vector<1x256xf32>
    %136 = arith.cmpf oeq, %132, %135 : vector<1x256xf32>
    %c256_i32_45 = arith.constant 256 : i32
    %137 = vector.broadcast %c256_i32_45 : i32 to vector<1x256xi32>
    %138 = arith.select %136, %43, %137 : vector<1x256xi1>, vector<1x256xi32>
    %cst_46 = arith.constant dense<2147483647> : vector<1xi32>
    %139 = vector.multi_reduction <minsi>, %138, %cst_46 [1] : vector<1x256xi32> to vector<1xi32>
    %140 = vector.shape_cast %139 : vector<1xi32> to vector<1x1xi32>
    %c5_i32 = arith.constant 5 : i32
    %141 = vector.broadcast %c5_i32 : i32 to vector<1x16xi32>
    %142 = arith.cmpi eq, %44, %141 : vector<1x16xi32>
    %143 = vector.shape_cast %140 : vector<1x1xi32> to vector<1x1xi32>
    %144 = vector.broadcast %143 : vector<1x1xi32> to vector<1x16xi32>
    %145 = arith.select %142, %144, %128 : vector<1x16xi1>, vector<1x16xi32>
    %146 = vector.broadcast %140 : vector<1x1xi32> to vector<1x256xi32>
    %147 = arith.cmpi eq, %43, %146 : vector<1x256xi32>
    %cst_47 = arith.constant 0xFF800000 : f32
    %148 = vector.broadcast %cst_47 : f32 to vector<1x256xf32>
    %149 = arith.select %147, %148, %132 : vector<1x256xi1>, vector<1x256xf32>
    %cst_48 = arith.constant dense<0xFF800000> : vector<1xf32>
    %150 = vector.multi_reduction <maximumf>, %149, %cst_48 [1] : vector<1x256xf32> to vector<1xf32>
    %151 = vector.shape_cast %150 : vector<1xf32> to vector<1x1xf32>
    %152 = vector.broadcast %151 : vector<1x1xf32> to vector<1x256xf32>
    %153 = arith.cmpf oeq, %149, %152 : vector<1x256xf32>
    %c256_i32_49 = arith.constant 256 : i32
    %154 = vector.broadcast %c256_i32_49 : i32 to vector<1x256xi32>
    %155 = arith.select %153, %43, %154 : vector<1x256xi1>, vector<1x256xi32>
    %cst_50 = arith.constant dense<2147483647> : vector<1xi32>
    %156 = vector.multi_reduction <minsi>, %155, %cst_50 [1] : vector<1x256xi32> to vector<1xi32>
    %157 = vector.shape_cast %156 : vector<1xi32> to vector<1x1xi32>
    %c6_i32 = arith.constant 6 : i32
    %158 = vector.broadcast %c6_i32 : i32 to vector<1x16xi32>
    %159 = arith.cmpi eq, %44, %158 : vector<1x16xi32>
    %160 = vector.shape_cast %157 : vector<1x1xi32> to vector<1x1xi32>
    %161 = vector.broadcast %160 : vector<1x1xi32> to vector<1x16xi32>
    %162 = arith.select %159, %161, %145 : vector<1x16xi1>, vector<1x16xi32>
    %163 = vector.broadcast %157 : vector<1x1xi32> to vector<1x256xi32>
    %164 = arith.cmpi eq, %43, %163 : vector<1x256xi32>
    %cst_51 = arith.constant 0xFF800000 : f32
    %165 = vector.broadcast %cst_51 : f32 to vector<1x256xf32>
    %166 = arith.select %164, %165, %149 : vector<1x256xi1>, vector<1x256xf32>
    %cst_52 = arith.constant dense<0xFF800000> : vector<1xf32>
    %167 = vector.multi_reduction <maximumf>, %166, %cst_52 [1] : vector<1x256xf32> to vector<1xf32>
    %168 = vector.shape_cast %167 : vector<1xf32> to vector<1x1xf32>
    %169 = vector.broadcast %168 : vector<1x1xf32> to vector<1x256xf32>
    %170 = arith.cmpf oeq, %166, %169 : vector<1x256xf32>
    %c256_i32_53 = arith.constant 256 : i32
    %171 = vector.broadcast %c256_i32_53 : i32 to vector<1x256xi32>
    %172 = arith.select %170, %43, %171 : vector<1x256xi1>, vector<1x256xi32>
    %cst_54 = arith.constant dense<2147483647> : vector<1xi32>
    %173 = vector.multi_reduction <minsi>, %172, %cst_54 [1] : vector<1x256xi32> to vector<1xi32>
    %174 = vector.shape_cast %173 : vector<1xi32> to vector<1x1xi32>
    %c7_i32 = arith.constant 7 : i32
    %175 = vector.broadcast %c7_i32 : i32 to vector<1x16xi32>
    %176 = arith.cmpi eq, %44, %175 : vector<1x16xi32>
    %177 = vector.shape_cast %174 : vector<1x1xi32> to vector<1x1xi32>
    %178 = vector.broadcast %177 : vector<1x1xi32> to vector<1x16xi32>
    %179 = arith.select %176, %178, %162 : vector<1x16xi1>, vector<1x16xi32>
    %180 = vector.broadcast %174 : vector<1x1xi32> to vector<1x256xi32>
    %181 = arith.cmpi eq, %43, %180 : vector<1x256xi32>
    %cst_55 = arith.constant 0xFF800000 : f32
    %182 = vector.broadcast %cst_55 : f32 to vector<1x256xf32>
    %183 = arith.select %181, %182, %166 : vector<1x256xi1>, vector<1x256xf32>
    %cst_56 = arith.constant dense<0xFF800000> : vector<1xf32>
    %184 = vector.multi_reduction <maximumf>, %183, %cst_56 [1] : vector<1x256xf32> to vector<1xf32>
    %185 = vector.shape_cast %184 : vector<1xf32> to vector<1x1xf32>
    %186 = vector.broadcast %185 : vector<1x1xf32> to vector<1x256xf32>
    %187 = arith.cmpf oeq, %183, %186 : vector<1x256xf32>
    %c256_i32_57 = arith.constant 256 : i32
    %188 = vector.broadcast %c256_i32_57 : i32 to vector<1x256xi32>
    %189 = arith.select %187, %43, %188 : vector<1x256xi1>, vector<1x256xi32>
    %cst_58 = arith.constant dense<2147483647> : vector<1xi32>
    %190 = vector.multi_reduction <minsi>, %189, %cst_58 [1] : vector<1x256xi32> to vector<1xi32>
    %191 = vector.shape_cast %190 : vector<1xi32> to vector<1x1xi32>
    %c8_i32_59 = arith.constant 8 : i32
    %192 = vector.broadcast %c8_i32_59 : i32 to vector<1x16xi32>
    %193 = arith.cmpi eq, %44, %192 : vector<1x16xi32>
    %194 = vector.shape_cast %191 : vector<1x1xi32> to vector<1x1xi32>
    %195 = vector.broadcast %194 : vector<1x1xi32> to vector<1x16xi32>
    %196 = arith.select %193, %195, %179 : vector<1x16xi1>, vector<1x16xi32>
    %197 = vector.broadcast %191 : vector<1x1xi32> to vector<1x256xi32>
    %198 = arith.cmpi eq, %43, %197 : vector<1x256xi32>
    %cst_60 = arith.constant 0xFF800000 : f32
    %199 = vector.broadcast %cst_60 : f32 to vector<1x256xf32>
    %200 = arith.select %198, %199, %183 : vector<1x256xi1>, vector<1x256xf32>
    %cst_61 = arith.constant dense<0xFF800000> : vector<1xf32>
    %201 = vector.multi_reduction <maximumf>, %200, %cst_61 [1] : vector<1x256xf32> to vector<1xf32>
    %202 = vector.shape_cast %201 : vector<1xf32> to vector<1x1xf32>
    %203 = vector.broadcast %202 : vector<1x1xf32> to vector<1x256xf32>
    %204 = arith.cmpf oeq, %200, %203 : vector<1x256xf32>
    %c256_i32_62 = arith.constant 256 : i32
    %205 = vector.broadcast %c256_i32_62 : i32 to vector<1x256xi32>
    %206 = arith.select %204, %43, %205 : vector<1x256xi1>, vector<1x256xi32>
    %cst_63 = arith.constant dense<2147483647> : vector<1xi32>
    %207 = vector.multi_reduction <minsi>, %206, %cst_63 [1] : vector<1x256xi32> to vector<1xi32>
    %208 = vector.shape_cast %207 : vector<1xi32> to vector<1x1xi32>
    %c9_i32 = arith.constant 9 : i32
    %209 = vector.broadcast %c9_i32 : i32 to vector<1x16xi32>
    %210 = arith.cmpi eq, %44, %209 : vector<1x16xi32>
    %211 = vector.shape_cast %208 : vector<1x1xi32> to vector<1x1xi32>
    %212 = vector.broadcast %211 : vector<1x1xi32> to vector<1x16xi32>
    %213 = arith.select %210, %212, %196 : vector<1x16xi1>, vector<1x16xi32>
    %214 = vector.broadcast %208 : vector<1x1xi32> to vector<1x256xi32>
    %215 = arith.cmpi eq, %43, %214 : vector<1x256xi32>
    %cst_64 = arith.constant 0xFF800000 : f32
    %216 = vector.broadcast %cst_64 : f32 to vector<1x256xf32>
    %217 = arith.select %215, %216, %200 : vector<1x256xi1>, vector<1x256xf32>
    %cst_65 = arith.constant dense<0xFF800000> : vector<1xf32>
    %218 = vector.multi_reduction <maximumf>, %217, %cst_65 [1] : vector<1x256xf32> to vector<1xf32>
    %219 = vector.shape_cast %218 : vector<1xf32> to vector<1x1xf32>
    %220 = vector.broadcast %219 : vector<1x1xf32> to vector<1x256xf32>
    %221 = arith.cmpf oeq, %217, %220 : vector<1x256xf32>
    %c256_i32_66 = arith.constant 256 : i32
    %222 = vector.broadcast %c256_i32_66 : i32 to vector<1x256xi32>
    %223 = arith.select %221, %43, %222 : vector<1x256xi1>, vector<1x256xi32>
    %cst_67 = arith.constant dense<2147483647> : vector<1xi32>
    %224 = vector.multi_reduction <minsi>, %223, %cst_67 [1] : vector<1x256xi32> to vector<1xi32>
    %225 = vector.shape_cast %224 : vector<1xi32> to vector<1x1xi32>
    %c10_i32 = arith.constant 10 : i32
    %226 = vector.broadcast %c10_i32 : i32 to vector<1x16xi32>
    %227 = arith.cmpi eq, %44, %226 : vector<1x16xi32>
    %228 = vector.shape_cast %225 : vector<1x1xi32> to vector<1x1xi32>
    %229 = vector.broadcast %228 : vector<1x1xi32> to vector<1x16xi32>
    %230 = arith.select %227, %229, %213 : vector<1x16xi1>, vector<1x16xi32>
    %231 = vector.broadcast %225 : vector<1x1xi32> to vector<1x256xi32>
    %232 = arith.cmpi eq, %43, %231 : vector<1x256xi32>
    %cst_68 = arith.constant 0xFF800000 : f32
    %233 = vector.broadcast %cst_68 : f32 to vector<1x256xf32>
    %234 = arith.select %232, %233, %217 : vector<1x256xi1>, vector<1x256xf32>
    %cst_69 = arith.constant dense<0xFF800000> : vector<1xf32>
    %235 = vector.multi_reduction <maximumf>, %234, %cst_69 [1] : vector<1x256xf32> to vector<1xf32>
    %236 = vector.shape_cast %235 : vector<1xf32> to vector<1x1xf32>
    %237 = vector.broadcast %236 : vector<1x1xf32> to vector<1x256xf32>
    %238 = arith.cmpf oeq, %234, %237 : vector<1x256xf32>
    %c256_i32_70 = arith.constant 256 : i32
    %239 = vector.broadcast %c256_i32_70 : i32 to vector<1x256xi32>
    %240 = arith.select %238, %43, %239 : vector<1x256xi1>, vector<1x256xi32>
    %cst_71 = arith.constant dense<2147483647> : vector<1xi32>
    %241 = vector.multi_reduction <minsi>, %240, %cst_71 [1] : vector<1x256xi32> to vector<1xi32>
    %242 = vector.shape_cast %241 : vector<1xi32> to vector<1x1xi32>
    %c11_i32 = arith.constant 11 : i32
    %243 = vector.broadcast %c11_i32 : i32 to vector<1x16xi32>
    %244 = arith.cmpi eq, %44, %243 : vector<1x16xi32>
    %245 = vector.shape_cast %242 : vector<1x1xi32> to vector<1x1xi32>
    %246 = vector.broadcast %245 : vector<1x1xi32> to vector<1x16xi32>
    %247 = arith.select %244, %246, %230 : vector<1x16xi1>, vector<1x16xi32>
    %248 = vector.broadcast %242 : vector<1x1xi32> to vector<1x256xi32>
    %249 = arith.cmpi eq, %43, %248 : vector<1x256xi32>
    %cst_72 = arith.constant 0xFF800000 : f32
    %250 = vector.broadcast %cst_72 : f32 to vector<1x256xf32>
    %251 = arith.select %249, %250, %234 : vector<1x256xi1>, vector<1x256xf32>
    %cst_73 = arith.constant dense<0xFF800000> : vector<1xf32>
    %252 = vector.multi_reduction <maximumf>, %251, %cst_73 [1] : vector<1x256xf32> to vector<1xf32>
    %253 = vector.shape_cast %252 : vector<1xf32> to vector<1x1xf32>
    %254 = vector.broadcast %253 : vector<1x1xf32> to vector<1x256xf32>
    %255 = arith.cmpf oeq, %251, %254 : vector<1x256xf32>
    %c256_i32_74 = arith.constant 256 : i32
    %256 = vector.broadcast %c256_i32_74 : i32 to vector<1x256xi32>
    %257 = arith.select %255, %43, %256 : vector<1x256xi1>, vector<1x256xi32>
    %cst_75 = arith.constant dense<2147483647> : vector<1xi32>
    %258 = vector.multi_reduction <minsi>, %257, %cst_75 [1] : vector<1x256xi32> to vector<1xi32>
    %259 = vector.shape_cast %258 : vector<1xi32> to vector<1x1xi32>
    %c12_i32 = arith.constant 12 : i32
    %260 = vector.broadcast %c12_i32 : i32 to vector<1x16xi32>
    %261 = arith.cmpi eq, %44, %260 : vector<1x16xi32>
    %262 = vector.shape_cast %259 : vector<1x1xi32> to vector<1x1xi32>
    %263 = vector.broadcast %262 : vector<1x1xi32> to vector<1x16xi32>
    %264 = arith.select %261, %263, %247 : vector<1x16xi1>, vector<1x16xi32>
    %265 = vector.broadcast %259 : vector<1x1xi32> to vector<1x256xi32>
    %266 = arith.cmpi eq, %43, %265 : vector<1x256xi32>
    %cst_76 = arith.constant 0xFF800000 : f32
    %267 = vector.broadcast %cst_76 : f32 to vector<1x256xf32>
    %268 = arith.select %266, %267, %251 : vector<1x256xi1>, vector<1x256xf32>
    %cst_77 = arith.constant dense<0xFF800000> : vector<1xf32>
    %269 = vector.multi_reduction <maximumf>, %268, %cst_77 [1] : vector<1x256xf32> to vector<1xf32>
    %270 = vector.shape_cast %269 : vector<1xf32> to vector<1x1xf32>
    %271 = vector.broadcast %270 : vector<1x1xf32> to vector<1x256xf32>
    %272 = arith.cmpf oeq, %268, %271 : vector<1x256xf32>
    %c256_i32_78 = arith.constant 256 : i32
    %273 = vector.broadcast %c256_i32_78 : i32 to vector<1x256xi32>
    %274 = arith.select %272, %43, %273 : vector<1x256xi1>, vector<1x256xi32>
    %cst_79 = arith.constant dense<2147483647> : vector<1xi32>
    %275 = vector.multi_reduction <minsi>, %274, %cst_79 [1] : vector<1x256xi32> to vector<1xi32>
    %276 = vector.shape_cast %275 : vector<1xi32> to vector<1x1xi32>
    %c13_i32 = arith.constant 13 : i32
    %277 = vector.broadcast %c13_i32 : i32 to vector<1x16xi32>
    %278 = arith.cmpi eq, %44, %277 : vector<1x16xi32>
    %279 = vector.shape_cast %276 : vector<1x1xi32> to vector<1x1xi32>
    %280 = vector.broadcast %279 : vector<1x1xi32> to vector<1x16xi32>
    %281 = arith.select %278, %280, %264 : vector<1x16xi1>, vector<1x16xi32>
    %282 = vector.broadcast %276 : vector<1x1xi32> to vector<1x256xi32>
    %283 = arith.cmpi eq, %43, %282 : vector<1x256xi32>
    %cst_80 = arith.constant 0xFF800000 : f32
    %284 = vector.broadcast %cst_80 : f32 to vector<1x256xf32>
    %285 = arith.select %283, %284, %268 : vector<1x256xi1>, vector<1x256xf32>
    %cst_81 = arith.constant dense<0xFF800000> : vector<1xf32>
    %286 = vector.multi_reduction <maximumf>, %285, %cst_81 [1] : vector<1x256xf32> to vector<1xf32>
    %287 = vector.shape_cast %286 : vector<1xf32> to vector<1x1xf32>
    %288 = vector.broadcast %287 : vector<1x1xf32> to vector<1x256xf32>
    %289 = arith.cmpf oeq, %285, %288 : vector<1x256xf32>
    %c256_i32_82 = arith.constant 256 : i32
    %290 = vector.broadcast %c256_i32_82 : i32 to vector<1x256xi32>
    %291 = arith.select %289, %43, %290 : vector<1x256xi1>, vector<1x256xi32>
    %cst_83 = arith.constant dense<2147483647> : vector<1xi32>
    %292 = vector.multi_reduction <minsi>, %291, %cst_83 [1] : vector<1x256xi32> to vector<1xi32>
    %293 = vector.shape_cast %292 : vector<1xi32> to vector<1x1xi32>
    %c14_i32 = arith.constant 14 : i32
    %294 = vector.broadcast %c14_i32 : i32 to vector<1x16xi32>
    %295 = arith.cmpi eq, %44, %294 : vector<1x16xi32>
    %296 = vector.shape_cast %293 : vector<1x1xi32> to vector<1x1xi32>
    %297 = vector.broadcast %296 : vector<1x1xi32> to vector<1x16xi32>
    %298 = arith.select %295, %297, %281 : vector<1x16xi1>, vector<1x16xi32>
    %299 = vector.broadcast %293 : vector<1x1xi32> to vector<1x256xi32>
    %300 = arith.cmpi eq, %43, %299 : vector<1x256xi32>
    %cst_84 = arith.constant 0xFF800000 : f32
    %301 = vector.broadcast %cst_84 : f32 to vector<1x256xf32>
    %302 = arith.select %300, %301, %285 : vector<1x256xi1>, vector<1x256xf32>
    %cst_85 = arith.constant dense<0xFF800000> : vector<1xf32>
    %303 = vector.multi_reduction <maximumf>, %302, %cst_85 [1] : vector<1x256xf32> to vector<1xf32>
    %304 = vector.shape_cast %303 : vector<1xf32> to vector<1x1xf32>
    %305 = vector.broadcast %304 : vector<1x1xf32> to vector<1x256xf32>
    %306 = arith.cmpf oeq, %302, %305 : vector<1x256xf32>
    %c256_i32_86 = arith.constant 256 : i32
    %307 = vector.broadcast %c256_i32_86 : i32 to vector<1x256xi32>
    %308 = arith.select %306, %43, %307 : vector<1x256xi1>, vector<1x256xi32>
    %cst_87 = arith.constant dense<2147483647> : vector<1xi32>
    %309 = vector.multi_reduction <minsi>, %308, %cst_87 [1] : vector<1x256xi32> to vector<1xi32>
    %310 = vector.shape_cast %309 : vector<1xi32> to vector<1x1xi32>
    %c15_i32 = arith.constant 15 : i32
    %311 = vector.broadcast %c15_i32 : i32 to vector<1x16xi32>
    %312 = arith.cmpi eq, %44, %311 : vector<1x16xi32>
    %313 = vector.shape_cast %310 : vector<1x1xi32> to vector<1x1xi32>
    %314 = vector.broadcast %313 : vector<1x1xi32> to vector<1x16xi32>
    %315 = arith.select %312, %314, %298 : vector<1x16xi1>, vector<1x16xi32>
    %316 = vector.broadcast %315 : vector<1x16xi32> to vector<256x16xi32>
    %317 = arith.cmpi eq, %45, %316 : vector<256x16xi32>
    %318 = arith.extui %317 : vector<256x16xi1> to vector<256x16xi32>
    %319 = arith.sitofp %318 : vector<256x16xi32> to vector<256x16xf32>
    %320 = vector.extract_strided_slice %42 {offsets = [0, 0], sizes = [40, 256], strides = [1, 1]} : vector<40x512xf32> to vector<40x256xf32>
    %cst_88 = arith.constant dense<0.000000e+00> : vector<40x16xf32>
    %321 = tpu.matmul %320, %319, %cst_88 {dimension_numbers = #tpu.dot_dimension_numbers<[1], [0], [0], [1], [0, 0, 1, 1], [], []>} : vector<40x256xf32>, vector<256x16xf32>, vector<40x16xf32> -> vector<40x16xf32>
    %322 = vector.extract_strided_slice %41 {offsets = [0, 256], sizes = [1, 256], strides = [1, 1]} : vector<1x512xf32> to vector<1x256xf32>
    %c0_i32_89 = arith.constant 0 : i32
    %323 = vector.broadcast %c0_i32_89 : i32 to vector<1x16xi32>
    %cst_90 = arith.constant dense<0xFF800000> : vector<1xf32>
    %324 = vector.multi_reduction <maximumf>, %322, %cst_90 [1] : vector<1x256xf32> to vector<1xf32>
    %325 = vector.shape_cast %324 : vector<1xf32> to vector<1x1xf32>
    %326 = vector.broadcast %325 : vector<1x1xf32> to vector<1x256xf32>
    %327 = arith.cmpf oeq, %322, %326 : vector<1x256xf32>
    %c256_i32_91 = arith.constant 256 : i32
    %328 = vector.broadcast %c256_i32_91 : i32 to vector<1x256xi32>
    %329 = arith.select %327, %43, %328 : vector<1x256xi1>, vector<1x256xi32>
    %cst_92 = arith.constant dense<2147483647> : vector<1xi32>
    %330 = vector.multi_reduction <minsi>, %329, %cst_92 [1] : vector<1x256xi32> to vector<1xi32>
    %331 = vector.shape_cast %330 : vector<1xi32> to vector<1x1xi32>
    %c0_i32_93 = arith.constant 0 : i32
    %332 = vector.broadcast %c0_i32_93 : i32 to vector<1x16xi32>
    %333 = arith.cmpi eq, %44, %332 : vector<1x16xi32>
    %334 = vector.shape_cast %331 : vector<1x1xi32> to vector<1x1xi32>
    %335 = vector.broadcast %334 : vector<1x1xi32> to vector<1x16xi32>
    %336 = arith.select %333, %335, %323 : vector<1x16xi1>, vector<1x16xi32>
    %337 = vector.broadcast %331 : vector<1x1xi32> to vector<1x256xi32>
    %338 = arith.cmpi eq, %43, %337 : vector<1x256xi32>
    %cst_94 = arith.constant 0xFF800000 : f32
    %339 = vector.broadcast %cst_94 : f32 to vector<1x256xf32>
    %340 = arith.select %338, %339, %322 : vector<1x256xi1>, vector<1x256xf32>
    %cst_95 = arith.constant dense<0xFF800000> : vector<1xf32>
    %341 = vector.multi_reduction <maximumf>, %340, %cst_95 [1] : vector<1x256xf32> to vector<1xf32>
    %342 = vector.shape_cast %341 : vector<1xf32> to vector<1x1xf32>
    %343 = vector.broadcast %342 : vector<1x1xf32> to vector<1x256xf32>
    %344 = arith.cmpf oeq, %340, %343 : vector<1x256xf32>
    %c256_i32_96 = arith.constant 256 : i32
    %345 = vector.broadcast %c256_i32_96 : i32 to vector<1x256xi32>
    %346 = arith.select %344, %43, %345 : vector<1x256xi1>, vector<1x256xi32>
    %cst_97 = arith.constant dense<2147483647> : vector<1xi32>
    %347 = vector.multi_reduction <minsi>, %346, %cst_97 [1] : vector<1x256xi32> to vector<1xi32>
    %348 = vector.shape_cast %347 : vector<1xi32> to vector<1x1xi32>
    %c1_i32_98 = arith.constant 1 : i32
    %349 = vector.broadcast %c1_i32_98 : i32 to vector<1x16xi32>
    %350 = arith.cmpi eq, %44, %349 : vector<1x16xi32>
    %351 = vector.shape_cast %348 : vector<1x1xi32> to vector<1x1xi32>
    %352 = vector.broadcast %351 : vector<1x1xi32> to vector<1x16xi32>
    %353 = arith.select %350, %352, %336 : vector<1x16xi1>, vector<1x16xi32>
    %354 = vector.broadcast %348 : vector<1x1xi32> to vector<1x256xi32>
    %355 = arith.cmpi eq, %43, %354 : vector<1x256xi32>
    %cst_99 = arith.constant 0xFF800000 : f32
    %356 = vector.broadcast %cst_99 : f32 to vector<1x256xf32>
    %357 = arith.select %355, %356, %340 : vector<1x256xi1>, vector<1x256xf32>
    %cst_100 = arith.constant dense<0xFF800000> : vector<1xf32>
    %358 = vector.multi_reduction <maximumf>, %357, %cst_100 [1] : vector<1x256xf32> to vector<1xf32>
    %359 = vector.shape_cast %358 : vector<1xf32> to vector<1x1xf32>
    %360 = vector.broadcast %359 : vector<1x1xf32> to vector<1x256xf32>
    %361 = arith.cmpf oeq, %357, %360 : vector<1x256xf32>
    %c256_i32_101 = arith.constant 256 : i32
    %362 = vector.broadcast %c256_i32_101 : i32 to vector<1x256xi32>
    %363 = arith.select %361, %43, %362 : vector<1x256xi1>, vector<1x256xi32>
    %cst_102 = arith.constant dense<2147483647> : vector<1xi32>
    %364 = vector.multi_reduction <minsi>, %363, %cst_102 [1] : vector<1x256xi32> to vector<1xi32>
    %365 = vector.shape_cast %364 : vector<1xi32> to vector<1x1xi32>
    %c2_i32_103 = arith.constant 2 : i32
    %366 = vector.broadcast %c2_i32_103 : i32 to vector<1x16xi32>
    %367 = arith.cmpi eq, %44, %366 : vector<1x16xi32>
    %368 = vector.shape_cast %365 : vector<1x1xi32> to vector<1x1xi32>
    %369 = vector.broadcast %368 : vector<1x1xi32> to vector<1x16xi32>
    %370 = arith.select %367, %369, %353 : vector<1x16xi1>, vector<1x16xi32>
    %371 = vector.broadcast %365 : vector<1x1xi32> to vector<1x256xi32>
    %372 = arith.cmpi eq, %43, %371 : vector<1x256xi32>
    %cst_104 = arith.constant 0xFF800000 : f32
    %373 = vector.broadcast %cst_104 : f32 to vector<1x256xf32>
    %374 = arith.select %372, %373, %357 : vector<1x256xi1>, vector<1x256xf32>
    %cst_105 = arith.constant dense<0xFF800000> : vector<1xf32>
    %375 = vector.multi_reduction <maximumf>, %374, %cst_105 [1] : vector<1x256xf32> to vector<1xf32>
    %376 = vector.shape_cast %375 : vector<1xf32> to vector<1x1xf32>
    %377 = vector.broadcast %376 : vector<1x1xf32> to vector<1x256xf32>
    %378 = arith.cmpf oeq, %374, %377 : vector<1x256xf32>
    %c256_i32_106 = arith.constant 256 : i32
    %379 = vector.broadcast %c256_i32_106 : i32 to vector<1x256xi32>
    %380 = arith.select %378, %43, %379 : vector<1x256xi1>, vector<1x256xi32>
    %cst_107 = arith.constant dense<2147483647> : vector<1xi32>
    %381 = vector.multi_reduction <minsi>, %380, %cst_107 [1] : vector<1x256xi32> to vector<1xi32>
    %382 = vector.shape_cast %381 : vector<1xi32> to vector<1x1xi32>
    %c3_i32_108 = arith.constant 3 : i32
    %383 = vector.broadcast %c3_i32_108 : i32 to vector<1x16xi32>
    %384 = arith.cmpi eq, %44, %383 : vector<1x16xi32>
    %385 = vector.shape_cast %382 : vector<1x1xi32> to vector<1x1xi32>
    %386 = vector.broadcast %385 : vector<1x1xi32> to vector<1x16xi32>
    %387 = arith.select %384, %386, %370 : vector<1x16xi1>, vector<1x16xi32>
    %388 = vector.broadcast %382 : vector<1x1xi32> to vector<1x256xi32>
    %389 = arith.cmpi eq, %43, %388 : vector<1x256xi32>
    %cst_109 = arith.constant 0xFF800000 : f32
    %390 = vector.broadcast %cst_109 : f32 to vector<1x256xf32>
    %391 = arith.select %389, %390, %374 : vector<1x256xi1>, vector<1x256xf32>
    %cst_110 = arith.constant dense<0xFF800000> : vector<1xf32>
    %392 = vector.multi_reduction <maximumf>, %391, %cst_110 [1] : vector<1x256xf32> to vector<1xf32>
    %393 = vector.shape_cast %392 : vector<1xf32> to vector<1x1xf32>
    %394 = vector.broadcast %393 : vector<1x1xf32> to vector<1x256xf32>
    %395 = arith.cmpf oeq, %391, %394 : vector<1x256xf32>
    %c256_i32_111 = arith.constant 256 : i32
    %396 = vector.broadcast %c256_i32_111 : i32 to vector<1x256xi32>
    %397 = arith.select %395, %43, %396 : vector<1x256xi1>, vector<1x256xi32>
    %cst_112 = arith.constant dense<2147483647> : vector<1xi32>
    %398 = vector.multi_reduction <minsi>, %397, %cst_112 [1] : vector<1x256xi32> to vector<1xi32>
    %399 = vector.shape_cast %398 : vector<1xi32> to vector<1x1xi32>
    %c4_i32_113 = arith.constant 4 : i32
    %400 = vector.broadcast %c4_i32_113 : i32 to vector<1x16xi32>
    %401 = arith.cmpi eq, %44, %400 : vector<1x16xi32>
    %402 = vector.shape_cast %399 : vector<1x1xi32> to vector<1x1xi32>
    %403 = vector.broadcast %402 : vector<1x1xi32> to vector<1x16xi32>
    %404 = arith.select %401, %403, %387 : vector<1x16xi1>, vector<1x16xi32>
    %405 = vector.broadcast %399 : vector<1x1xi32> to vector<1x256xi32>
    %406 = arith.cmpi eq, %43, %405 : vector<1x256xi32>
    %cst_114 = arith.constant 0xFF800000 : f32
    %407 = vector.broadcast %cst_114 : f32 to vector<1x256xf32>
    %408 = arith.select %406, %407, %391 : vector<1x256xi1>, vector<1x256xf32>
    %cst_115 = arith.constant dense<0xFF800000> : vector<1xf32>
    %409 = vector.multi_reduction <maximumf>, %408, %cst_115 [1] : vector<1x256xf32> to vector<1xf32>
    %410 = vector.shape_cast %409 : vector<1xf32> to vector<1x1xf32>
    %411 = vector.broadcast %410 : vector<1x1xf32> to vector<1x256xf32>
    %412 = arith.cmpf oeq, %408, %411 : vector<1x256xf32>
    %c256_i32_116 = arith.constant 256 : i32
    %413 = vector.broadcast %c256_i32_116 : i32 to vector<1x256xi32>
    %414 = arith.select %412, %43, %413 : vector<1x256xi1>, vector<1x256xi32>
    %cst_117 = arith.constant dense<2147483647> : vector<1xi32>
    %415 = vector.multi_reduction <minsi>, %414, %cst_117 [1] : vector<1x256xi32> to vector<1xi32>
    %416 = vector.shape_cast %415 : vector<1xi32> to vector<1x1xi32>
    %c5_i32_118 = arith.constant 5 : i32
    %417 = vector.broadcast %c5_i32_118 : i32 to vector<1x16xi32>
    %418 = arith.cmpi eq, %44, %417 : vector<1x16xi32>
    %419 = vector.shape_cast %416 : vector<1x1xi32> to vector<1x1xi32>
    %420 = vector.broadcast %419 : vector<1x1xi32> to vector<1x16xi32>
    %421 = arith.select %418, %420, %404 : vector<1x16xi1>, vector<1x16xi32>
    %422 = vector.broadcast %416 : vector<1x1xi32> to vector<1x256xi32>
    %423 = arith.cmpi eq, %43, %422 : vector<1x256xi32>
    %cst_119 = arith.constant 0xFF800000 : f32
    %424 = vector.broadcast %cst_119 : f32 to vector<1x256xf32>
    %425 = arith.select %423, %424, %408 : vector<1x256xi1>, vector<1x256xf32>
    %cst_120 = arith.constant dense<0xFF800000> : vector<1xf32>
    %426 = vector.multi_reduction <maximumf>, %425, %cst_120 [1] : vector<1x256xf32> to vector<1xf32>
    %427 = vector.shape_cast %426 : vector<1xf32> to vector<1x1xf32>
    %428 = vector.broadcast %427 : vector<1x1xf32> to vector<1x256xf32>
    %429 = arith.cmpf oeq, %425, %428 : vector<1x256xf32>
    %c256_i32_121 = arith.constant 256 : i32
    %430 = vector.broadcast %c256_i32_121 : i32 to vector<1x256xi32>
    %431 = arith.select %429, %43, %430 : vector<1x256xi1>, vector<1x256xi32>
    %cst_122 = arith.constant dense<2147483647> : vector<1xi32>
    %432 = vector.multi_reduction <minsi>, %431, %cst_122 [1] : vector<1x256xi32> to vector<1xi32>
    %433 = vector.shape_cast %432 : vector<1xi32> to vector<1x1xi32>
    %c6_i32_123 = arith.constant 6 : i32
    %434 = vector.broadcast %c6_i32_123 : i32 to vector<1x16xi32>
    %435 = arith.cmpi eq, %44, %434 : vector<1x16xi32>
    %436 = vector.shape_cast %433 : vector<1x1xi32> to vector<1x1xi32>
    %437 = vector.broadcast %436 : vector<1x1xi32> to vector<1x16xi32>
    %438 = arith.select %435, %437, %421 : vector<1x16xi1>, vector<1x16xi32>
    %439 = vector.broadcast %433 : vector<1x1xi32> to vector<1x256xi32>
    %440 = arith.cmpi eq, %43, %439 : vector<1x256xi32>
    %cst_124 = arith.constant 0xFF800000 : f32
    %441 = vector.broadcast %cst_124 : f32 to vector<1x256xf32>
    %442 = arith.select %440, %441, %425 : vector<1x256xi1>, vector<1x256xf32>
    %cst_125 = arith.constant dense<0xFF800000> : vector<1xf32>
    %443 = vector.multi_reduction <maximumf>, %442, %cst_125 [1] : vector<1x256xf32> to vector<1xf32>
    %444 = vector.shape_cast %443 : vector<1xf32> to vector<1x1xf32>
    %445 = vector.broadcast %444 : vector<1x1xf32> to vector<1x256xf32>
    %446 = arith.cmpf oeq, %442, %445 : vector<1x256xf32>
    %c256_i32_126 = arith.constant 256 : i32
    %447 = vector.broadcast %c256_i32_126 : i32 to vector<1x256xi32>
    %448 = arith.select %446, %43, %447 : vector<1x256xi1>, vector<1x256xi32>
    %cst_127 = arith.constant dense<2147483647> : vector<1xi32>
    %449 = vector.multi_reduction <minsi>, %448, %cst_127 [1] : vector<1x256xi32> to vector<1xi32>
    %450 = vector.shape_cast %449 : vector<1xi32> to vector<1x1xi32>
    %c7_i32_128 = arith.constant 7 : i32
    %451 = vector.broadcast %c7_i32_128 : i32 to vector<1x16xi32>
    %452 = arith.cmpi eq, %44, %451 : vector<1x16xi32>
    %453 = vector.shape_cast %450 : vector<1x1xi32> to vector<1x1xi32>
    %454 = vector.broadcast %453 : vector<1x1xi32> to vector<1x16xi32>
    %455 = arith.select %452, %454, %438 : vector<1x16xi1>, vector<1x16xi32>
    %456 = vector.broadcast %450 : vector<1x1xi32> to vector<1x256xi32>
    %457 = arith.cmpi eq, %43, %456 : vector<1x256xi32>
    %cst_129 = arith.constant 0xFF800000 : f32
    %458 = vector.broadcast %cst_129 : f32 to vector<1x256xf32>
    %459 = arith.select %457, %458, %442 : vector<1x256xi1>, vector<1x256xf32>
    %cst_130 = arith.constant dense<0xFF800000> : vector<1xf32>
    %460 = vector.multi_reduction <maximumf>, %459, %cst_130 [1] : vector<1x256xf32> to vector<1xf32>
    %461 = vector.shape_cast %460 : vector<1xf32> to vector<1x1xf32>
    %462 = vector.broadcast %461 : vector<1x1xf32> to vector<1x256xf32>
    %463 = arith.cmpf oeq, %459, %462 : vector<1x256xf32>
    %c256_i32_131 = arith.constant 256 : i32
    %464 = vector.broadcast %c256_i32_131 : i32 to vector<1x256xi32>
    %465 = arith.select %463, %43, %464 : vector<1x256xi1>, vector<1x256xi32>
    %cst_132 = arith.constant dense<2147483647> : vector<1xi32>
    %466 = vector.multi_reduction <minsi>, %465, %cst_132 [1] : vector<1x256xi32> to vector<1xi32>
    %467 = vector.shape_cast %466 : vector<1xi32> to vector<1x1xi32>
    %c8_i32_133 = arith.constant 8 : i32
    %468 = vector.broadcast %c8_i32_133 : i32 to vector<1x16xi32>
    %469 = arith.cmpi eq, %44, %468 : vector<1x16xi32>
    %470 = vector.shape_cast %467 : vector<1x1xi32> to vector<1x1xi32>
    %471 = vector.broadcast %470 : vector<1x1xi32> to vector<1x16xi32>
    %472 = arith.select %469, %471, %455 : vector<1x16xi1>, vector<1x16xi32>
    %473 = vector.broadcast %467 : vector<1x1xi32> to vector<1x256xi32>
    %474 = arith.cmpi eq, %43, %473 : vector<1x256xi32>
    %cst_134 = arith.constant 0xFF800000 : f32
    %475 = vector.broadcast %cst_134 : f32 to vector<1x256xf32>
    %476 = arith.select %474, %475, %459 : vector<1x256xi1>, vector<1x256xf32>
    %cst_135 = arith.constant dense<0xFF800000> : vector<1xf32>
    %477 = vector.multi_reduction <maximumf>, %476, %cst_135 [1] : vector<1x256xf32> to vector<1xf32>
    %478 = vector.shape_cast %477 : vector<1xf32> to vector<1x1xf32>
    %479 = vector.broadcast %478 : vector<1x1xf32> to vector<1x256xf32>
    %480 = arith.cmpf oeq, %476, %479 : vector<1x256xf32>
    %c256_i32_136 = arith.constant 256 : i32
    %481 = vector.broadcast %c256_i32_136 : i32 to vector<1x256xi32>
    %482 = arith.select %480, %43, %481 : vector<1x256xi1>, vector<1x256xi32>
    %cst_137 = arith.constant dense<2147483647> : vector<1xi32>
    %483 = vector.multi_reduction <minsi>, %482, %cst_137 [1] : vector<1x256xi32> to vector<1xi32>
    %484 = vector.shape_cast %483 : vector<1xi32> to vector<1x1xi32>
    %c9_i32_138 = arith.constant 9 : i32
    %485 = vector.broadcast %c9_i32_138 : i32 to vector<1x16xi32>
    %486 = arith.cmpi eq, %44, %485 : vector<1x16xi32>
    %487 = vector.shape_cast %484 : vector<1x1xi32> to vector<1x1xi32>
    %488 = vector.broadcast %487 : vector<1x1xi32> to vector<1x16xi32>
    %489 = arith.select %486, %488, %472 : vector<1x16xi1>, vector<1x16xi32>
    %490 = vector.broadcast %484 : vector<1x1xi32> to vector<1x256xi32>
    %491 = arith.cmpi eq, %43, %490 : vector<1x256xi32>
    %cst_139 = arith.constant 0xFF800000 : f32
    %492 = vector.broadcast %cst_139 : f32 to vector<1x256xf32>
    %493 = arith.select %491, %492, %476 : vector<1x256xi1>, vector<1x256xf32>
    %cst_140 = arith.constant dense<0xFF800000> : vector<1xf32>
    %494 = vector.multi_reduction <maximumf>, %493, %cst_140 [1] : vector<1x256xf32> to vector<1xf32>
    %495 = vector.shape_cast %494 : vector<1xf32> to vector<1x1xf32>
    %496 = vector.broadcast %495 : vector<1x1xf32> to vector<1x256xf32>
    %497 = arith.cmpf oeq, %493, %496 : vector<1x256xf32>
    %c256_i32_141 = arith.constant 256 : i32
    %498 = vector.broadcast %c256_i32_141 : i32 to vector<1x256xi32>
    %499 = arith.select %497, %43, %498 : vector<1x256xi1>, vector<1x256xi32>
    %cst_142 = arith.constant dense<2147483647> : vector<1xi32>
    %500 = vector.multi_reduction <minsi>, %499, %cst_142 [1] : vector<1x256xi32> to vector<1xi32>
    %501 = vector.shape_cast %500 : vector<1xi32> to vector<1x1xi32>
    %c10_i32_143 = arith.constant 10 : i32
    %502 = vector.broadcast %c10_i32_143 : i32 to vector<1x16xi32>
    %503 = arith.cmpi eq, %44, %502 : vector<1x16xi32>
    %504 = vector.shape_cast %501 : vector<1x1xi32> to vector<1x1xi32>
    %505 = vector.broadcast %504 : vector<1x1xi32> to vector<1x16xi32>
    %506 = arith.select %503, %505, %489 : vector<1x16xi1>, vector<1x16xi32>
    %507 = vector.broadcast %501 : vector<1x1xi32> to vector<1x256xi32>
    %508 = arith.cmpi eq, %43, %507 : vector<1x256xi32>
    %cst_144 = arith.constant 0xFF800000 : f32
    %509 = vector.broadcast %cst_144 : f32 to vector<1x256xf32>
    %510 = arith.select %508, %509, %493 : vector<1x256xi1>, vector<1x256xf32>
    %cst_145 = arith.constant dense<0xFF800000> : vector<1xf32>
    %511 = vector.multi_reduction <maximumf>, %510, %cst_145 [1] : vector<1x256xf32> to vector<1xf32>
    %512 = vector.shape_cast %511 : vector<1xf32> to vector<1x1xf32>
    %513 = vector.broadcast %512 : vector<1x1xf32> to vector<1x256xf32>
    %514 = arith.cmpf oeq, %510, %513 : vector<1x256xf32>
    %c256_i32_146 = arith.constant 256 : i32
    %515 = vector.broadcast %c256_i32_146 : i32 to vector<1x256xi32>
    %516 = arith.select %514, %43, %515 : vector<1x256xi1>, vector<1x256xi32>
    %cst_147 = arith.constant dense<2147483647> : vector<1xi32>
    %517 = vector.multi_reduction <minsi>, %516, %cst_147 [1] : vector<1x256xi32> to vector<1xi32>
    %518 = vector.shape_cast %517 : vector<1xi32> to vector<1x1xi32>
    %c11_i32_148 = arith.constant 11 : i32
    %519 = vector.broadcast %c11_i32_148 : i32 to vector<1x16xi32>
    %520 = arith.cmpi eq, %44, %519 : vector<1x16xi32>
    %521 = vector.shape_cast %518 : vector<1x1xi32> to vector<1x1xi32>
    %522 = vector.broadcast %521 : vector<1x1xi32> to vector<1x16xi32>
    %523 = arith.select %520, %522, %506 : vector<1x16xi1>, vector<1x16xi32>
    %524 = vector.broadcast %518 : vector<1x1xi32> to vector<1x256xi32>
    %525 = arith.cmpi eq, %43, %524 : vector<1x256xi32>
    %cst_149 = arith.constant 0xFF800000 : f32
    %526 = vector.broadcast %cst_149 : f32 to vector<1x256xf32>
    %527 = arith.select %525, %526, %510 : vector<1x256xi1>, vector<1x256xf32>
    %cst_150 = arith.constant dense<0xFF800000> : vector<1xf32>
    %528 = vector.multi_reduction <maximumf>, %527, %cst_150 [1] : vector<1x256xf32> to vector<1xf32>
    %529 = vector.shape_cast %528 : vector<1xf32> to vector<1x1xf32>
    %530 = vector.broadcast %529 : vector<1x1xf32> to vector<1x256xf32>
    %531 = arith.cmpf oeq, %527, %530 : vector<1x256xf32>
    %c256_i32_151 = arith.constant 256 : i32
    %532 = vector.broadcast %c256_i32_151 : i32 to vector<1x256xi32>
    %533 = arith.select %531, %43, %532 : vector<1x256xi1>, vector<1x256xi32>
    %cst_152 = arith.constant dense<2147483647> : vector<1xi32>
    %534 = vector.multi_reduction <minsi>, %533, %cst_152 [1] : vector<1x256xi32> to vector<1xi32>
    %535 = vector.shape_cast %534 : vector<1xi32> to vector<1x1xi32>
    %c12_i32_153 = arith.constant 12 : i32
    %536 = vector.broadcast %c12_i32_153 : i32 to vector<1x16xi32>
    %537 = arith.cmpi eq, %44, %536 : vector<1x16xi32>
    %538 = vector.shape_cast %535 : vector<1x1xi32> to vector<1x1xi32>
    %539 = vector.broadcast %538 : vector<1x1xi32> to vector<1x16xi32>
    %540 = arith.select %537, %539, %523 : vector<1x16xi1>, vector<1x16xi32>
    %541 = vector.broadcast %535 : vector<1x1xi32> to vector<1x256xi32>
    %542 = arith.cmpi eq, %43, %541 : vector<1x256xi32>
    %cst_154 = arith.constant 0xFF800000 : f32
    %543 = vector.broadcast %cst_154 : f32 to vector<1x256xf32>
    %544 = arith.select %542, %543, %527 : vector<1x256xi1>, vector<1x256xf32>
    %cst_155 = arith.constant dense<0xFF800000> : vector<1xf32>
    %545 = vector.multi_reduction <maximumf>, %544, %cst_155 [1] : vector<1x256xf32> to vector<1xf32>
    %546 = vector.shape_cast %545 : vector<1xf32> to vector<1x1xf32>
    %547 = vector.broadcast %546 : vector<1x1xf32> to vector<1x256xf32>
    %548 = arith.cmpf oeq, %544, %547 : vector<1x256xf32>
    %c256_i32_156 = arith.constant 256 : i32
    %549 = vector.broadcast %c256_i32_156 : i32 to vector<1x256xi32>
    %550 = arith.select %548, %43, %549 : vector<1x256xi1>, vector<1x256xi32>
    %cst_157 = arith.constant dense<2147483647> : vector<1xi32>
    %551 = vector.multi_reduction <minsi>, %550, %cst_157 [1] : vector<1x256xi32> to vector<1xi32>
    %552 = vector.shape_cast %551 : vector<1xi32> to vector<1x1xi32>
    %c13_i32_158 = arith.constant 13 : i32
    %553 = vector.broadcast %c13_i32_158 : i32 to vector<1x16xi32>
    %554 = arith.cmpi eq, %44, %553 : vector<1x16xi32>
    %555 = vector.shape_cast %552 : vector<1x1xi32> to vector<1x1xi32>
    %556 = vector.broadcast %555 : vector<1x1xi32> to vector<1x16xi32>
    %557 = arith.select %554, %556, %540 : vector<1x16xi1>, vector<1x16xi32>
    %558 = vector.broadcast %552 : vector<1x1xi32> to vector<1x256xi32>
    %559 = arith.cmpi eq, %43, %558 : vector<1x256xi32>
    %cst_159 = arith.constant 0xFF800000 : f32
    %560 = vector.broadcast %cst_159 : f32 to vector<1x256xf32>
    %561 = arith.select %559, %560, %544 : vector<1x256xi1>, vector<1x256xf32>
    %cst_160 = arith.constant dense<0xFF800000> : vector<1xf32>
    %562 = vector.multi_reduction <maximumf>, %561, %cst_160 [1] : vector<1x256xf32> to vector<1xf32>
    %563 = vector.shape_cast %562 : vector<1xf32> to vector<1x1xf32>
    %564 = vector.broadcast %563 : vector<1x1xf32> to vector<1x256xf32>
    %565 = arith.cmpf oeq, %561, %564 : vector<1x256xf32>
    %c256_i32_161 = arith.constant 256 : i32
    %566 = vector.broadcast %c256_i32_161 : i32 to vector<1x256xi32>
    %567 = arith.select %565, %43, %566 : vector<1x256xi1>, vector<1x256xi32>
    %cst_162 = arith.constant dense<2147483647> : vector<1xi32>
    %568 = vector.multi_reduction <minsi>, %567, %cst_162 [1] : vector<1x256xi32> to vector<1xi32>
    %569 = vector.shape_cast %568 : vector<1xi32> to vector<1x1xi32>
    %c14_i32_163 = arith.constant 14 : i32
    %570 = vector.broadcast %c14_i32_163 : i32 to vector<1x16xi32>
    %571 = arith.cmpi eq, %44, %570 : vector<1x16xi32>
    %572 = vector.shape_cast %569 : vector<1x1xi32> to vector<1x1xi32>
    %573 = vector.broadcast %572 : vector<1x1xi32> to vector<1x16xi32>
    %574 = arith.select %571, %573, %557 : vector<1x16xi1>, vector<1x16xi32>
    %575 = vector.broadcast %569 : vector<1x1xi32> to vector<1x256xi32>
    %576 = arith.cmpi eq, %43, %575 : vector<1x256xi32>
    %cst_164 = arith.constant 0xFF800000 : f32
    %577 = vector.broadcast %cst_164 : f32 to vector<1x256xf32>
    %578 = arith.select %576, %577, %561 : vector<1x256xi1>, vector<1x256xf32>
    %cst_165 = arith.constant dense<0xFF800000> : vector<1xf32>
    %579 = vector.multi_reduction <maximumf>, %578, %cst_165 [1] : vector<1x256xf32> to vector<1xf32>
    %580 = vector.shape_cast %579 : vector<1xf32> to vector<1x1xf32>
    %581 = vector.broadcast %580 : vector<1x1xf32> to vector<1x256xf32>
    %582 = arith.cmpf oeq, %578, %581 : vector<1x256xf32>
    %c256_i32_166 = arith.constant 256 : i32
    %583 = vector.broadcast %c256_i32_166 : i32 to vector<1x256xi32>
    %584 = arith.select %582, %43, %583 : vector<1x256xi1>, vector<1x256xi32>
    %cst_167 = arith.constant dense<2147483647> : vector<1xi32>
    %585 = vector.multi_reduction <minsi>, %584, %cst_167 [1] : vector<1x256xi32> to vector<1xi32>
    %586 = vector.shape_cast %585 : vector<1xi32> to vector<1x1xi32>
    %c15_i32_168 = arith.constant 15 : i32
    %587 = vector.broadcast %c15_i32_168 : i32 to vector<1x16xi32>
    %588 = arith.cmpi eq, %44, %587 : vector<1x16xi32>
    %589 = vector.shape_cast %586 : vector<1x1xi32> to vector<1x1xi32>
    %590 = vector.broadcast %589 : vector<1x1xi32> to vector<1x16xi32>
    %591 = arith.select %588, %590, %574 : vector<1x16xi1>, vector<1x16xi32>
    %592 = vector.broadcast %591 : vector<1x16xi32> to vector<256x16xi32>
    %593 = arith.cmpi eq, %45, %592 : vector<256x16xi32>
    %594 = arith.extui %593 : vector<256x16xi1> to vector<256x16xi32>
    %595 = arith.sitofp %594 : vector<256x16xi32> to vector<256x16xf32>
    %596 = vector.extract_strided_slice %42 {offsets = [0, 256], sizes = [40, 256], strides = [1, 1]} : vector<40x512xf32> to vector<40x256xf32>
    %cst_169 = arith.constant dense<0.000000e+00> : vector<40x16xf32>
    %597 = tpu.matmul %596, %595, %cst_169 {dimension_numbers = #tpu.dot_dimension_numbers<[1], [0], [0], [1], [0, 0, 1, 1], [], []>} : vector<40x256xf32>, vector<256x16xf32>, vector<40x16xf32> -> vector<40x16xf32>
    %598 = tpu.concatenate %315, %591 in 0 : vector<1x16xi32>, vector<1x16xi32> -> vector<2x16xi32>
    %c0_170 = arith.constant 0 : index
    %c0_171 = arith.constant 0 : index
    %599 = vector.load %arg13[%c0_170, %c0_171] : memref<2x16xi32, #tpu.memory_space<vmem>>, vector<2x16xi32>
    tpu.vector_store %arg13[%c0_170, %c0_171], %598 {strides = array<i32>} : memref<2x16xi32, #tpu.memory_space<vmem>>, vector<2x16xi32>,
    %600 = tpu.concatenate %321, %597 in 1 : vector<40x16xf32>, vector<40x16xf32> -> vector<40x32xf32>
    %c0_172 = arith.constant 0 : index
    %c0_173 = arith.constant 0 : index
    %601 = vector.load %arg4[%c0_172, %c0_173] : memref<64x40xf32, #tpu.memory_space<vmem>>, vector<64x40xf32>
    %cst_174 = arith.constant dense<0.000000e+00> : vector<64x32xf32>
    %602 = tpu.matmul %601, %600, %cst_174 {dimension_numbers = #tpu.dot_dimension_numbers<[1], [0], [0], [1], [0, 0, 1, 1], [], []>} : vector<64x40xf32>, vector<40x32xf32>, vector<64x32xf32> -> vector<64x32xf32>
    %c0_175 = arith.constant 0 : index
    %c0_176 = arith.constant 0 : index
    %603 = vector.load %arg5[%c0_175, %c0_176] : memref<64x1xf32, #tpu.memory_space<vmem>>, vector<64x1xf32>
    %604 = vector.broadcast %603 : vector<64x1xf32> to vector<64x32xf32>
    %605 = arith.addf %602, %604 : vector<64x32xf32>
    %cst_177 = arith.constant 0.000000e+00 : f32
    %606 = vector.broadcast %cst_177 : f32 to vector<64x32xf32>
    %607 = arith.maximumf %605, %606 : vector<64x32xf32>
    %c0_178 = arith.constant 0 : index
    %c0_179 = arith.constant 0 : index
    %608 = vector.load %arg6[%c0_178, %c0_179] : memref<64x64xf32, #tpu.memory_space<vmem>>, vector<64x64xf32>
    %cst_180 = arith.constant dense<0.000000e+00> : vector<64x32xf32>
    %609 = tpu.matmul %608, %607, %cst_180 {dimension_numbers = #tpu.dot_dimension_numbers<[1], [0], [0], [1], [0, 0, 1, 1], [], []>} : vector<64x64xf32>, vector<64x32xf32>, vector<64x32xf32> -> vector<64x32xf32>
    %c0_181 = arith.constant 0 : index
    %c0_182 = arith.constant 0 : index
    %610 = vector.load %arg7[%c0_181, %c0_182] : memref<64x1xf32, #tpu.memory_space<vmem>>, vector<64x1xf32>
    %611 = vector.broadcast %610 : vector<64x1xf32> to vector<64x32xf32>
    %612 = arith.addf %609, %611 : vector<64x32xf32>
    %cst_183 = arith.constant 0.000000e+00 : f32
    %613 = vector.broadcast %cst_183 : f32 to vector<64x32xf32>
    %614 = arith.maximumf %612, %613 : vector<64x32xf32>
    %c0_184 = arith.constant 0 : index
    %c0_185 = arith.constant 0 : index
    %615 = vector.load %arg8[%c0_184, %c0_185] : memref<8x64xf32, #tpu.memory_space<vmem>>, vector<8x64xf32>
    %cst_186 = arith.constant dense<0.000000e+00> : vector<8x32xf32>
    %616 = tpu.matmul %615, %614, %cst_186 {dimension_numbers = #tpu.dot_dimension_numbers<[1], [0], [0], [1], [0, 0, 1, 1], [], []>} : vector<8x64xf32>, vector<64x32xf32>, vector<8x32xf32> -> vector<8x32xf32>
    %c0_187 = arith.constant 0 : index
    %c0_188 = arith.constant 0 : index
    %617 = vector.load %arg9[%c0_187, %c0_188] : memref<8x1xf32, #tpu.memory_space<vmem>>, vector<8x1xf32>
    %618 = vector.broadcast %617 : vector<8x1xf32> to vector<8x32xf32>
    %619 = arith.addf %616, %618 : vector<8x32xf32>
    %620 = vector.extract_strided_slice %619 {offsets = [0, 0], sizes = [8, 16], strides = [1, 1]} : vector<8x32xf32> to vector<8x16xf32>
    %c0_189 = arith.constant 0 : index
    %c0_190 = arith.constant 0 : index
    %c0_191 = arith.constant 0 : index
    %621 = vector.load %arg12[%c0_189, %c0_190, %c0_191] : memref<2x8x16xf32, #tpu.memory_space<vmem>>, vector<1x8x16xf32>
    %622 = vector.shape_cast %621 : vector<1x8x16xf32> to vector<8x16xf32>
    %623 = vector.shape_cast %620 : vector<8x16xf32> to vector<1x8x16xf32>
    tpu.vector_store %arg12[%c0_189, %c0_190, %c0_191], %623 {strides = array<i32>} : memref<2x8x16xf32, #tpu.memory_space<vmem>>, vector<1x8x16xf32>,
    %624 = vector.extract_strided_slice %619 {offsets = [0, 16], sizes = [8, 16], strides = [1, 1]} : vector<8x32xf32> to vector<8x16xf32>
    %c1_192 = arith.constant 1 : index
    %c0_193 = arith.constant 0 : index
    %c0_194 = arith.constant 0 : index
    %625 = vector.load %arg12[%c1_192, %c0_193, %c0_194] : memref<2x8x16xf32, #tpu.memory_space<vmem>>, vector<1x8x16xf32>
    %626 = vector.shape_cast %625 : vector<1x8x16xf32> to vector<8x16xf32>
    %627 = vector.shape_cast %624 : vector<8x16xf32> to vector<1x8x16xf32>
    tpu.vector_store %arg12[%c1_192, %c0_193, %c0_194], %627 {strides = array<i32>} : memref<2x8x16xf32, #tpu.memory_space<vmem>>, vector<1x8x16xf32>,
    return
  }
}

</mosaic_0001>

<llo_original>
// kernel: pointrend_forward.1
$region0: #{pointrend_forward.1}
  #allocation0 [shape = 'u32[]', space=smem, size = 0x4, offset = 0x4, fixed_abs, tag = 'smem constant byte address 0x4 - core index']
  #allocation1 [shape = 'u32[144,128]{1,0:T(1,128)}', space=vmem, size = 0x12000, scoped, tag = 'internal scratch']
  %s0 = inlined_call_operand.vmem [shape: f32[40,512], index: 0, kind: input, shape index: {}]
  %s1 = inlined_call_operand.vmem [shape: f32[32,40], index: 1, kind: input, shape index: {}]
  %s2 = inlined_call_operand.vmem [shape: f32[8,32], index: 2, kind: input, shape index: {}]
  %s3 = inlined_call_operand.vmem [shape: f32[8,1], index: 3, kind: input, shape index: {}]
  %s4 = inlined_call_operand.vmem [shape: f32[64,40], index: 4, kind: input, shape index: {}]
  %s5 = inlined_call_operand.vmem [shape: f32[64,1], index: 5, kind: input, shape index: {}]
  %s6 = inlined_call_operand.vmem [shape: f32[64,64], index: 6, kind: input, shape index: {}]
  %s7 = inlined_call_operand.vmem [shape: f32[64,1], index: 7, kind: input, shape index: {}]
  %s8 = inlined_call_operand.vmem [shape: f32[8,64], index: 8, kind: input, shape index: {}]
  %s9 = inlined_call_operand.vmem [shape: f32[8,1], index: 9, kind: input, shape index: {}]
  %s10 = inlined_call_operand.vmem [shape: f32[2,32,256], index: 10, kind: output, shape index: {0}]
  %s11 = inlined_call_operand.vmem [shape: f32[2,8,256], index: 11, kind: output, shape index: {1}]
  %s12 = inlined_call_operand.hbm [shape: f32[2,8,16], index: 12, kind: output, shape index: {2}]
  %s13 = inlined_call_operand.vmem [shape: s32[2,16], index: 13, kind: output, shape index: {3}]
  %14 = xla_tuple %s10, %s11, %s12, %s13
  %s15 = sld [smem:[#allocation0]]
  $region74: #{pointrend_forward.1} parent=0
    _
  %s17 = ssub.s32 1, %s15
  %s18 = scalar_select 0, %s17, %s15
  $region1: #{pointrend_forward.1} parent=0
    #allocation2 [shape = 'u8[8192]{0}', space=vmem, size = 0x2000, scoped, tag = 'output window, operand 2, single buffered']
    #allocation3 [shape = 's32[1]{0}', space=sflag, size = 0x4, scoped, tag = 'scoped memory for pointrend_forward.1']
    %19 = vsyncpa [#allocation3], 0
    // Predicated region
    $region2: #{pointrend_forward.1} parent=1 // pred_check
      _
    $region3: #{pointrend_forward.1} parent=1 // pred_check_branch
      %21 = sbr.rel (0) target = $region5
    $region4: #{pointrend_forward.1} parent=1 // pred_region
      _
    $region5: #{pointrend_forward.1} parent=1 // pred_fallthru
      _
    // Predicated region
    $region6: #{pointrend_forward.1} parent=1 // pred_check
      _
    $region7: #{pointrend_forward.1} parent=1 // pred_check_branch
      %23 = sbr.rel (0) target = $region9
    $region8: #{pointrend_forward.1} parent=1 // pred_region
      _
    $region9: #{pointrend_forward.1} parent=1 // pred_fallthru
      _
    // Predicated region
    $region10: #{pointrend_forward.1} parent=1 // pred_check
      _
    $region11: #{pointrend_forward.1} parent=1 // pred_check_branch
      %25 = sbr.rel (0) target = $region13
    $region12: #{pointrend_forward.1} parent=1 // pred_region
      _
    $region13: #{pointrend_forward.1} parent=1 // pred_fallthru
      _
    // Predicated region
    $region14: #{pointrend_forward.1} parent=1 // pred_check
      _
    $region15: #{pointrend_forward.1} parent=1 // pred_check_branch
      %27 = sbr.rel (0) target = $region17
    $region16: #{pointrend_forward.1} parent=1 // pred_region
      _
    $region17: #{pointrend_forward.1} parent=1 // pred_fallthru
      _
    // Predicated region
    $region18: #{pointrend_forward.1} parent=1 // pred_check
      _
    $region19: #{pointrend_forward.1} parent=1 // pred_check_branch
      %29 = sbr.rel (0) target = $region21
    $region20: #{pointrend_forward.1} parent=1 // pred_region
      _
    $region21: #{pointrend_forward.1} parent=1 // pred_fallthru
      _
    // Predicated region
    $region22: #{pointrend_forward.1} parent=1 // pred_check
      _
    $region23: #{pointrend_forward.1} parent=1 // pred_check_branch
      %31 = sbr.rel (0) target = $region25
    $region24: #{pointrend_forward.1} parent=1 // pred_region
      _
    $region25: #{pointrend_forward.1} parent=1 // pred_fallthru
      _
    // Predicated region
    $region26: #{pointrend_forward.1} parent=1 // pred_check
      _
    $region27: #{pointrend_forward.1} parent=1 // pred_check_branch
      %33 = sbr.rel (0) target = $region29
    $region28: #{pointrend_forward.1} parent=1 // pred_region
      _
    $region29: #{pointrend_forward.1} parent=1 // pred_fallthru
      _
    // Predicated region
    $region30: #{pointrend_forward.1} parent=1 // pred_check
      _
    $region31: #{pointrend_forward.1} parent=1 // pred_check_branch
      %35 = sbr.rel (0) target = $region33
    $region32: #{pointrend_forward.1} parent=1 // pred_region
      _
    $region33: #{pointrend_forward.1} parent=1 // pred_fallthru
      _
    // Predicated region
    $region34: #{pointrend_forward.1} parent=1 // pred_check
      _
    $region35: #{pointrend_forward.1} parent=1 // pred_check_branch
      %37 = sbr.rel (0) target = $region37
    $region36: #{pointrend_forward.1} parent=1 // pred_region
      _
    $region37: #{pointrend_forward.1} parent=1 // pred_fallthru
      _
    // Predicated region
    $region38: #{pointrend_forward.1} parent=1 // pred_check
      _
    $region39: #{pointrend_forward.1} parent=1 // pred_check_branch
      %39 = sbr.rel (0) target = $region41
    $region40: #{pointrend_forward.1} parent=1 // pred_region
      _
    $region41: #{pointrend_forward.1} parent=1 // pred_fallthru
      _
    %v40 = vld [vmem:[%s1] sm:$0xff]
    %v41 = vld [vmem:[%s1 + $0x8] sm:$0xff]
    %v42 = vld [vmem:[%s1 + $0x10] sm:$0xff]
    %v43 = vld [vmem:[%s1 + $0x18] sm:$0xff]
    %v44 = vld [vmem:[%s0] sm:$0xff]
    %v45 = vld [vmem:[%s0 + $0x8] sm:$0xff]
    %v46 = vld [vmem:[%s0 + $0x10] sm:$0xff]
    %v47 = vld [vmem:[%s0 + $0x18] sm:$0xff]
    %v48 = vld [vmem:[%s0 + $0x20] sm:$0xff]
    %v49 = vld [vmem:[%s0 + $0x28] sm:$0xff]
    %v50 = vld [vmem:[%s0 + $0x30] sm:$0xff]
    %v51 = vld [vmem:[%s0 + $0x38] sm:$0xff]
    %v52 = vld [vmem:[%s0 + $0x40] sm:$0xff]
    %v53 = vld [vmem:[%s0 + $0x48] sm:$0xff]
    %v54 = vld [vmem:[%s0 + $0x50] sm:$0xff]
    %v55 = vld [vmem:[%s0 + $0x58] sm:$0xff]
    %v56 = vld [vmem:[%s0 + $0x60] sm:$0xff]
    %v57 = vld [vmem:[%s0 + $0x68] sm:$0xff]
    %v58 = vld [vmem:[%s0 + $0x70] sm:$0xff]
    %v59 = vld [vmem:[%s0 + $0x78] sm:$0xff]
    %v60 = vld [vmem:[%s0 + $0x80] sm:$0xff]
    %v61 = vld [vmem:[%s0 + $0x88] sm:$0xff]
    %v62 = vld [vmem:[%s0 + $0x90] sm:$0xff]
    %v63 = vld [vmem:[%s0 + $0x98] sm:$0xff]
    %vm64 = vcmask 326656
    %v66 = vsel %vm64, %v40, 0
    %v69 = vsel %vm64, %v41, 0
    %v72 = vsel %vm64, %v42, 0
    %v75 = vsel %vm64, %v43, 0
    %77 = vmatprep.subr.mxu0 %v45
    %78 = vmatpush1.msra.mxu0 %v44
    %79 = vmatprep.subr.mxu0 %v49
    %80 = vmatpush1.msra.mxu0 %v48
    %81 = vmatprep.subr.mxu0 %v53
    %82 = vmatpush1.msra.mxu0 %v52
    %83 = vmatprep.subr.mxu0 %v57
    %84 = vmatpush1.msra.mxu0 %v56
    %85 = vmatprep.subr.mxu0 %v61
    %86 = vmatpush1.msra.mxu0 %v60
    %87 = vmatprep.subr.mxu0 0.0
    %88 = vmatpush1.msra.mxu0 0.0
    %89 = vmatprep.subr.mxu0 0.0
    %90 = vmatpush1.msra.mxu0 0.0
    %91 = vmatprep.subr.mxu0 0.0
    %92 = vmatpush1.msra.mxu0 0.0
    %93 = vmatprep.subr.mxu0 0.0
    %94 = vmatpush1.msra.mxu0 0.0
    %95 = vmatprep.subr.mxu0 0.0
    %96 = vmatpush1.msra.mxu0 0.0
    %97 = vmatprep.subr.mxu0 0.0
    %98 = vmatpush1.msra.mxu0 0.0
    %99 = vmatprep.subr.mxu0 0.0
    %100 = vmatpush1.msra.mxu0 0.0
    %101 = vmatprep.subr.mxu0 0.0
    %102 = vmatpush1.msra.mxu0 0.0
    %103 = vmatprep.subr.mxu0 0.0
    %104 = vmatpush1.msra.mxu0 0.0
    %105 = vmatprep.subr.mxu0 0.0
    %106 = vmatpush1.msra.mxu0 0.0
    %107 = vmatprep.subr.mxu0 0.0
    %108 = vmatpush1.msra.mxu0 0.0
    %109 = vmatprep.subr.mxu0 0.0
    %110 = vmatpush1.msra.mxu0 0.0
    %111 = vmatprep.subr.mxu0 0.0
    %112 = vmatpush1.msra.mxu0 0.0
    %113 = vmatprep.subr.mxu0 0.0
    %114 = vmatpush1.msra.mxu0 0.0
    %115 = vmatprep.subr.mxu0 0.0
    %116 = vmatpush1.msra.mxu0 0.0
    %117 = vmatprep.subr.mxu0 0.0
    %118 = vmatpush1.msra.mxu0 0.0
    %119 = vmatprep.subr.mxu0 0.0
    %120 = vmatpush1.msra.mxu0 0.0
    %121 = vmatprep.subr.mxu0 0.0
    %122 = vmatpush1.msra.mxu0 0.0
    %123 = vmatprep.subr.mxu0 0.0
    %124 = vmatpush1.msra.mxu0 0.0
    %125 = vmatprep.subr.mxu0 0.0
    %126 = vmatpush1.msra.mxu0 0.0
    %127 = vmatprep.subr.mxu0 0.0
    %128 = vmatpush1.msra.mxu0 0.0
    %129 = vmatprep.subr.mxu0 0.0
    %130 = vmatpush1.msra.mxu0 0.0
    %131 = vmatprep.subr.mxu0 0.0
    %132 = vmatpush1.msra.mxu0 0.0
    %133 = vmatprep.subr.mxu0 0.0
    %134 = vmatpush1.msra.mxu0 0.0
    %135 = vmatprep.subr.mxu0 0.0
    %136 = vmatpush1.msra.mxu0 0.0
    %137 = vmatprep.subr.mxu0 0.0
    %138 = vmatpush1.msra.mxu0 0.0
    %139 = vmatprep.subr.mxu0 0.0
    %140 = vmatpush1.msra.mxu0 0.0
    %141 = vmatprep.mubr.f32.mxu0 0.0
    %142 = vmatmul.mubr.f32.gmra.mrb[0].mxu0 %v66
    %v143 = vpop.f32.mrb[0].mxu0
    %v144 = vadd.f32 0.0, %v143
    %v145 = vpop.f32.mrb[0].mxu0
    %v146 = vadd.f32 0.0, %v145
    %147 = vmatprep.mubr.f32.mxu0 0.0
    %148 = vmatmul.mubr.f32.gmra.mrb[0].mxu0 %v69
    %v149 = vpop.f32.mrb[0].mxu0
    %v150 = vadd.f32 0.0, %v149
    %v151 = vpop.f32.mrb[0].mxu0
    %v152 = vadd.f32 0.0, %v151
    %153 = vmatprep.mubr.f32.mxu0 0.0
    %154 = vmatmul.mubr.f32.gmra.mrb[0].mxu0 %v72
    %v155 = vpop.f32.mrb[0].mxu0
    %v156 = vadd.f32 0.0, %v155
    %v157 = vpop.f32.mrb[0].mxu0
    %v158 = vadd.f32 0.0, %v157
    %159 = vmatprep.mubr.f32.mxu0 0.0
    %160 = vmatmul.mubr.f32.gmra.mrb[0].mxu0 %v75
    %v161 = vpop.f32.mrb[0].mxu0
    %v162 = vadd.f32 0.0, %v161
    %v163 = vpop.f32.mrb[0].mxu0
    %v164 = vadd.f32 0.0, %v163
    %165 = vdwg.mxu0
    %166 = vmatprep.subr.mxu0 %v47
    %167 = vmatpush1.msra.mxu0 %v46
    %168 = vmatprep.subr.mxu0 %v51
    %169 = vmatpush1.msra.mxu0 %v50
    %170 = vmatprep.subr.mxu0 %v55
    %171 = vmatpush1.msra.mxu0 %v54
    %172 = vmatprep.subr.mxu0 %v59
    %173 = vmatpush1.msra.mxu0 %v58
    %174 = vmatprep.subr.mxu0 %v63
    %175 = vmatpush1.msra.mxu0 %v62
    %176 = vmatprep.subr.mxu0 0.0
    %177 = vmatpush1.msra.mxu0 0.0
    %178 = vmatprep.subr.mxu0 0.0
    %179 = vmatpush1.msra.mxu0 0.0
    %180 = vmatprep.subr.mxu0 0.0
    %181 = vmatpush1.msra.mxu0 0.0
    %182 = vmatprep.subr.mxu0 0.0
    %183 = vmatpush1.msra.mxu0 0.0
    %184 = vmatprep.subr.mxu0 0.0
    %185 = vmatpush1.msra.mxu0 0.0
    %186 = vmatprep.subr.mxu0 0.0
    %187 = vmatpush1.msra.mxu0 0.0
    %188 = vmatprep.subr.mxu0 0.0
    %189 = vmatpush1.msra.mxu0 0.0
    %190 = vmatprep.subr.mxu0 0.0
    %191 = vmatpush1.msra.mxu0 0.0
    %192 = vmatprep.subr.mxu0 0.0
    %193 = vmatpush1.msra.mxu0 0.0
    %194 = vmatprep.subr.mxu0 0.0
    %195 = vmatpush1.msra.mxu0 0.0
    %196 = vmatprep.subr.mxu0 0.0
    %197 = vmatpush1.msra.mxu0 0.0
    %198 = vmatprep.subr.mxu0 0.0
    %199 = vmatpush1.msra.mxu0 0.0
    %200 = vmatprep.subr.mxu0 0.0
    %201 = vmatpush1.msra.mxu0 0.0
    %202 = vmatprep.subr.mxu0 0.0
    %203 = vmatpush1.msra.mxu0 0.0
    %204 = vmatprep.subr.mxu0 0.0
    %205 = vmatpush1.msra.mxu0 0.0
    %206 = vmatprep.subr.mxu0 0.0
    %207 = vmatpush1.msra.mxu0 0.0
    %208 = vmatprep.subr.mxu0 0.0
    %209 = vmatpush1.msra.mxu0 0.0
    %210 = vmatprep.subr.mxu0 0.0
    %211 = vmatpush1.msra.mxu0 0.0
    %212 = vmatprep.subr.mxu0 0.0
    %213 = vmatpush1.msra.mxu0 0.0
    %214 = vmatprep.subr.mxu0 0.0
    %215 = vmatpush1.msra.mxu0 0.0
    %216 = vmatprep.subr.mxu0 0.0
    %217 = vmatpush1.msra.mxu0 0.0
    %218 = vmatprep.subr.mxu0 0.0
    %219 = vmatpush1.msra.mxu0 0.0
    %220 = vmatprep.subr.mxu0 0.0
    %221 = vmatpush1.msra.mxu0 0.0
    %222 = vmatprep.subr.mxu0 0.0
    %223 = vmatpush1.msra.mxu0 0.0
    %224 = vmatprep.subr.mxu0 0.0
    %225 = vmatpush1.msra.mxu0 0.0
    %226 = vmatprep.subr.mxu0 0.0
    %227 = vmatpush1.msra.mxu0 0.0
    %228 = vmatprep.subr.mxu0 0.0
    %229 = vmatpush1.msra.mxu0 0.0
    %230 = vmatprep.mubr.f32.mxu0 0.0
    %231 = vmatmul.mubr.f32.gmra.mrb[0].mxu0 %v66
    %v232 = vpop.f32.mrb[0].mxu0
    %v233 = vadd.f32 0.0, %v232
    %v234 = vpop.f32.mrb[0].mxu0
    %v235 = vadd.f32 0.0, %v234
    %236 = vmatprep.mubr.f32.mxu0 0.0
    %237 = vmatmul.mubr.f32.gmra.mrb[0].mxu0 %v69
    %v238 = vpop.f32.mrb[0].mxu0
    %v239 = vadd.f32 0.0, %v238
    %v240 = vpop.f32.mrb[0].mxu0
    %v241 = vadd.f32 0.0, %v240
    %242 = vmatprep.mubr.f32.mxu0 0.0
    %243 = vmatmul.mubr.f32.gmra.mrb[0].mxu0 %v72
    %v244 = vpop.f32.mrb[0].mxu0
    %v245 = vadd.f32 0.0, %v244
    %v246 = vpop.f32.mrb[0].mxu0
    %v247 = vadd.f32 0.0, %v246
    %248 = vmatprep.mubr.f32.mxu0 0.0
    %249 = vmatmul.mubr.f32.gmra.mrb[0].mxu0 %v75
    %v250 = vpop.f32.mrb[0].mxu0
    %v251 = vadd.f32 0.0, %v250
    %v252 = vpop.f32.mrb[0].mxu0
    %v253 = vadd.f32 0.0, %v252
    %254 = vdwg.mxu0
    %v255 = vmax.f32 %v144, 0.0
    %v256 = vmax.f32 %v146, 0.0
    %v257 = vmax.f32 %v233, 0.0
    %v258 = vmax.f32 %v235, 0.0
    %v259 = vmax.f32 %v150, 0.0
    %v260 = vmax.f32 %v152, 0.0
    %v261 = vmax.f32 %v239, 0.0
    %v262 = vmax.f32 %v241, 0.0
    %v263 = vmax.f32 %v156, 0.0
    %v264 = vmax.f32 %v158, 0.0
    %v265 = vmax.f32 %v245, 0.0
    %v266 = vmax.f32 %v247, 0.0
    %v267 = vmax.f32 %v162, 0.0
    %v268 = vmax.f32 %v164, 0.0
    %v269 = vmax.f32 %v251, 0.0
    %v270 = vmax.f32 %v253, 0.0
    %v271 = vld [vmem:[%s2] sm:$0xff]
    %v272 = vld [vmem:[%s3] sm:$0xff]
    %274 = vset.pattern.permute.xlu0 0
    %275 = vperm.xlu0 %274, %v272
    %v276 = vpop.permute.xlu0 %275
    %vm278 = vcmask 261120
    %v280 = vsel %vm278, %v271, 0
    %282 = vmatprep.subr.mxu0 %v256
    %283 = vmatpush1.msra.mxu0 %v255
    %284 = vmatprep.subr.mxu0 %v260
    %285 = vmatpush1.msra.mxu0 %v259
    %286 = vmatprep.subr.mxu0 %v264
    %287 = vmatpush1.msra.mxu0 %v263
    %288 = vmatprep.subr.mxu0 %v268
    %289 = vmatpush1.msra.mxu0 %v267
    %290 = vmatprep.subr.mxu0 0.0
    %291 = vmatpush1.msra.mxu0 0.0
    %292 = vmatprep.subr.mxu0 0.0
    %293 = vmatpush1.msra.mxu0 0.0
    %294 = vmatprep.subr.mxu0 0.0
    %295 = vmatpush1.msra.mxu0 0.0
    %296 = vmatprep.subr.mxu0 0.0
    %297 = vmatpush1.msra.mxu0 0.0
    %298 = vmatprep.subr.mxu0 0.0
    %299 = vmatpush1.msra.mxu0 0.0
    %300 = vmatprep.subr.mxu0 0.0
    %301 = vmatpush1.msra.mxu0 0.0
    %302 = vmatprep.subr.mxu0 0.0
    %303 = vmatpush1.msra.mxu0 0.0
    %304 = vmatprep.subr.mxu0 0.0
    %305 = vmatpush1.msra.mxu0 0.0
    %306 = vmatprep.subr.mxu0 0.0
    %307 = vmatpush1.msra.mxu0 0.0
    %308 = vmatprep.subr.mxu0 0.0
    %309 = vmatpush1.msra.mxu0 0.0
    %310 = vmatprep.subr.mxu0 0.0
    %311 = vmatpush1.msra.mxu0 0.0
    %312 = vmatprep.subr.mxu0 0.0
    %313 = vmatpush1.msra.mxu0 0.0
    %314 = vmatprep.subr.mxu0 0.0
    %315 = vmatpush1.msra.mxu0 0.0
    %316 = vmatprep.subr.mxu0 0.0
    %317 = vmatpush1.msra.mxu0 0.0
    %318 = vmatprep.subr.mxu0 0.0
    %319 = vmatpush1.msra.mxu0 0.0
    %320 = vmatprep.subr.mxu0 0.0
    %321 = vmatpush1.msra.mxu0 0.0
    %322 = vmatprep.subr.mxu0 0.0
    %323 = vmatpush1.msra.mxu0 0.0
    %324 = vmatprep.subr.mxu0 0.0
    %325 = vmatpush1.msra.mxu0 0.0
    %326 = vmatprep.subr.mxu0 0.0
    %327 = vmatpush1.msra.mxu0 0.0
    %328 = vmatprep.subr.mxu0 0.0
    %329 = vmatpush1.msra.mxu0 0.0
    %330 = vmatprep.subr.mxu0 0.0
    %331 = vmatpush1.msra.mxu0 0.0
    %332 = vmatprep.subr.mxu0 0.0
    %333 = vmatpush1.msra.mxu0 0.0
    %334 = vmatprep.subr.mxu0 0.0
    %335 = vmatpush1.msra.mxu0 0.0
    %336 = vmatprep.subr.mxu0 0.0
    %337 = vmatpush1.msra.mxu0 0.0
    %338 = vmatprep.subr.mxu0 0.0
    %339 = vmatpush1.msra.mxu0 0.0
    %340 = vmatprep.subr.mxu0 0.0
    %341 = vmatpush1.msra.mxu0 0.0
    %342 = vmatprep.subr.mxu0 0.0
    %343 = vmatpush1.msra.mxu0 0.0
    %344 = vmatprep.subr.mxu0 0.0
    %345 = vmatpush1.msra.mxu0 0.0
    %346 = vmatprep.mubr.f32.mxu0 0.0
    %347 = vmatmul.mubr.f32.gmra.mrb[0].mxu0 %v280
    %v348 = vpop.f32.mrb[0].mxu0
    %v349 = vadd.f32 %v276, %v348
    %v350 = vpop.f32.mrb[0].mxu0
    %v351 = vadd.f32 %v276, %v350
    %352 = vdwg.mxu0
    %353 = vmatprep.subr.mxu0 %v258
    %354 = vmatpush1.msra.mxu0 %v257
    %355 = vmatprep.subr.mxu0 %v262
    %356 = vmatpush1.msra.mxu0 %v261
    %357 = vmatprep.subr.mxu0 %v266
    %358 = vmatpush1.msra.mxu0 %v265
    %359 = vmatprep.subr.mxu0 %v270
    %360 = vmatpush1.msra.mxu0 %v269
    %361 = vmatprep.subr.mxu0 0.0
    %362 = vmatpush1.msra.mxu0 0.0
    %363 = vmatprep.subr.mxu0 0.0
    %364 = vmatpush1.msra.mxu0 0.0
    %365 = vmatprep.subr.mxu0 0.0
    %366 = vmatpush1.msra.mxu0 0.0
    %367 = vmatprep.subr.mxu0 0.0
    %368 = vmatpush1.msra.mxu0 0.0
    %369 = vmatprep.subr.mxu0 0.0
    %370 = vmatpush1.msra.mxu0 0.0
    %371 = vmatprep.subr.mxu0 0.0
    %372 = vmatpush1.msra.mxu0 0.0
    %373 = vmatprep.subr.mxu0 0.0
    %374 = vmatpush1.msra.mxu0 0.0
    %375 = vmatprep.subr.mxu0 0.0
    %376 = vmatpush1.msra.mxu0 0.0
    %377 = vmatprep.subr.mxu0 0.0
    %378 = vmatpush1.msra.mxu0 0.0
    %379 = vmatprep.subr.mxu0 0.0
    %380 = vmatpush1.msra.mxu0 0.0
    %381 = vmatprep.subr.mxu0 0.0
    %382 = vmatpush1.msra.mxu0 0.0
    %383 = vmatprep.subr.mxu0 0.0
    %384 = vmatpush1.msra.mxu0 0.0
    %385 = vmatprep.subr.mxu0 0.0
    %386 = vmatpush1.msra.mxu0 0.0
    %387 = vmatprep.subr.mxu0 0.0
    %388 = vmatpush1.msra.mxu0 0.0
    %389 = vmatprep.subr.mxu0 0.0
    %390 = vmatpush1.msra.mxu0 0.0
    %391 = vmatprep.subr.mxu0 0.0
    %392 = vmatpush1.msra.mxu0 0.0
    %393 = vmatprep.subr.mxu0 0.0
    %394 = vmatpush1.msra.mxu0 0.0
    %395 = vmatprep.subr.mxu0 0.0
    %396 = vmatpush1.msra.mxu0 0.0
    %397 = vmatprep.subr.mxu0 0.0
    %398 = vmatpush1.msra.mxu0 0.0
    %399 = vmatprep.subr.mxu0 0.0
    %400 = vmatpush1.msra.mxu0 0.0
    %401 = vmatprep.subr.mxu0 0.0
    %402 = vmatpush1.msra.mxu0 0.0
    %403 = vmatprep.subr.mxu0 0.0
    %404 = vmatpush1.msra.mxu0 0.0
    %405 = vmatprep.subr.mxu0 0.0
    %406 = vmatpush1.msra.mxu0 0.0
    %407 = vmatprep.subr.mxu0 0.0
    %408 = vmatpush1.msra.mxu0 0.0
    %409 = vmatprep.subr.mxu0 0.0
    %410 = vmatpush1.msra.mxu0 0.0
    %411 = vmatprep.subr.mxu0 0.0
    %412 = vmatpush1.msra.mxu0 0.0
    %413 = vmatprep.subr.mxu0 0.0
    %414 = vmatpush1.msra.mxu0 0.0
    %415 = vmatprep.subr.mxu0 0.0
    %416 = vmatpush1.msra.mxu0 0.0
    %417 = vmatprep.mubr.f32.mxu0 0.0
    %418 = vmatmul.mubr.f32.gmra.mrb[0].mxu0 %v280
    %v419 = vpop.f32.mrb[0].mxu0
    %v420 = vadd.f32 %v276, %v419
    %v421 = vpop.f32.mrb[0].mxu0
    %v422 = vadd.f32 %v276, %v421
    %423 = vdwg.mxu0
    %424 = vst [vmem:[%s10] sm:$0xff] %v255
    %425 = vst [vmem:[%s10 + $0x8] sm:$0xff] %v256
    %426 = vst [vmem:[%s10 + $0x10] sm:$0xff] %v259
    %427 = vst [vmem:[%s10 + $0x18] sm:$0xff] %v260
    %428 = vst [vmem:[%s10 + $0x20] sm:$0xff] %v263
    %429 = vst [vmem:[%s10 + $0x28] sm:$0xff] %v264
    %430 = vst [vmem:[%s10 + $0x30] sm:$0xff] %v267
    %431 = vst [vmem:[%s10 + $0x38] sm:$0xff] %v268
    %432 = vst [vmem:[%s11] sm:$0xff] %v349
    %433 = vst [vmem:[%s11 + $0x8] sm:$0xff] %v351
    %s434 = scalar_lea.vmem %s10, 64
    %435 = vst [vmem:[%s434] sm:$0xff] %v257
    %436 = vst [vmem:[%s434 + $0x8] sm:$0xff] %v258
    %437 = vst [vmem:[%s434 + $0x10] sm:$0xff] %v261
    %438 = vst [vmem:[%s434 + $0x18] sm:$0xff] %v262
    %439 = vst [vmem:[%s434 + $0x20] sm:$0xff] %v265
    %440 = vst [vmem:[%s434 + $0x28] sm:$0xff] %v266
    %441 = vst [vmem:[%s434 + $0x30] sm:$0xff] %v269
    %442 = vst [vmem:[%s434 + $0x38] sm:$0xff] %v270
    %s443 = scalar_lea.vmem %s11, 16
    %444 = vst [vmem:[%s443] sm:$0xff] %v420
    %445 = vst [vmem:[%s443 + $0x8] sm:$0xff] %v422
    %v446 = vlaneseq
    %v447 = vshrl.u32 %v446, 7
    %v448 = vrot.slane %v349, 4
    %v449 = vmax.f32 %v349, %v448
    %v450 = vrot.slane %v449, 2
    %v451 = vmax.f32 %v449, %v450
    %v452 = vrot.slane %v451, 1
    %v453 = vmax.f32 %v451, %v452
    %v454 = vrot.slane %v351, 4
    %v455 = vmax.f32 %v351, %v454
    %v456 = vrot.slane %v455, 2
    %v457 = vmax.f32 %v455, %v456
    %v458 = vrot.slane %v457, 1
    %v459 = vmax.f32 %v457, %v458
    %v460 = vrot.slane %v420, 4
    %v461 = vmax.f32 %v420, %v460
    %v462 = vrot.slane %v461, 2
    %v463 = vmax.f32 %v461, %v462
    %v464 = vrot.slane %v463, 1
    %v465 = vmax.f32 %v463, %v464
    %v466 = vrot.slane %v422, 4
    %v467 = vmax.f32 %v422, %v466
    %v468 = vrot.slane %v467, 2
    %v469 = vmax.f32 %v467, %v468
    %v470 = vrot.slane %v469, 1
    %v471 = vmax.f32 %v469, %v470
    %vm472 = vcmp.eq.f32.partialorder %v349, %v453
    %vm473 = vcmp.eq.f32.partialorder %v351, %v459
    %vm474 = vcmp.eq.f32.partialorder %v420, %v465
    %vm475 = vcmp.eq.f32.partialorder %v422, %v471
    %v476 = vsel %vm472, %v447, 8
    %v477 = vsel %vm473, %v447, 8
    %v478 = vsel %vm474, %v447, 8
    %v479 = vsel %vm475, %v447, 8
    %v480 = vrot.slane %v476, 4
    %vm481 = vcmp.lt.s32.totalorder %v476, %v480
    %v482 = vsel %vm481, %v476, %v480
    %v483 = vrot.slane %v482, 2
    %vm484 = vcmp.lt.s32.totalorder %v482, %v483
    %v485 = vsel %vm484, %v482, %v483
    %v486 = vrot.slane %v485, 1
    %vm487 = vcmp.lt.s32.totalorder %v485, %v486
    %v488 = vsel %vm487, %v485, %v486
    %v489 = vrot.slane %v477, 4
    %vm490 = vcmp.lt.s32.totalorder %v477, %v489
    %v491 = vsel %vm490, %v477, %v489
    %v492 = vrot.slane %v491, 2
    %vm493 = vcmp.lt.s32.totalorder %v491, %v492
    %v494 = vsel %vm493, %v491, %v492
    %v495 = vrot.slane %v494, 1
    %vm496 = vcmp.lt.s32.totalorder %v494, %v495
    %v497 = vsel %vm496, %v494, %v495
    %v498 = vrot.slane %v478, 4
    %vm499 = vcmp.lt.s32.totalorder %v478, %v498
    %v500 = vsel %vm499, %v478, %v498
    %v501 = vrot.slane %v500, 2
    %vm502 = vcmp.lt.s32.totalorder %v500, %v501
    %v503 = vsel %vm502, %v500, %v501
    %v504 = vrot.slane %v503, 1
    %vm505 = vcmp.lt.s32.totalorder %v503, %v504
    %v506 = vsel %vm505, %v503, %v504
    %v507 = vrot.slane %v479, 4
    %vm508 = vcmp.lt.s32.totalorder %v479, %v507
    %v509 = vsel %vm508, %v479, %v507
    %v510 = vrot.slane %v509, 2
    %vm511 = vcmp.lt.s32.totalorder %v509, %v510
    %v512 = vsel %vm511, %v509, %v510
    %v513 = vrot.slane %v512, 1
    %vm514 = vcmp.lt.s32.totalorder %v512, %v513
    %v515 = vsel %vm514, %v512, %v513
    %vm516 = vcmp.eq.s32.totalorder %v447, %v488
    %vm517 = vcmp.eq.s32.totalorder %v447, %v497
    %vm518 = vcmp.eq.s32.totalorder %v447, %v506
    %vm519 = vcmp.eq.s32.totalorder %v447, %v515
    %v520 = vsel %vm516, -inf, %v349
    %v521 = vsel %vm517, -inf, %v351
    %v522 = vsel %vm518, -inf, %v420
    %v523 = vsel %vm519, -inf, %v422
    %v524 = vrot.slane %v520, 4
    %v525 = vmax.f32 %v520, %v524
    %v526 = vrot.slane %v525, 2
    %v527 = vmax.f32 %v525, %v526
    %v528 = vrot.slane %v527, 1
    %v529 = vmax.f32 %v527, %v528
    %v530 = vrot.slane %v521, 4
    %v531 = vmax.f32 %v521, %v530
    %v532 = vrot.slane %v531, 2
    %v533 = vmax.f32 %v531, %v532
    %v534 = vrot.slane %v533, 1
    %v535 = vmax.f32 %v533, %v534
    %v536 = vrot.slane %v522, 4
    %v537 = vmax.f32 %v522, %v536
    %v538 = vrot.slane %v537, 2
    %v539 = vmax.f32 %v537, %v538
    %v540 = vrot.slane %v539, 1
    %v541 = vmax.f32 %v539, %v540
    %v542 = vrot.slane %v523, 4
    %v543 = vmax.f32 %v523, %v542
    %v544 = vrot.slane %v543, 2
    %v545 = vmax.f32 %v543, %v544
    %v546 = vrot.slane %v545, 1
    %v547 = vmax.f32 %v545, %v546
    %v548 = vsub.f32 %v529, %v453
    %v549 = vsub.f32 %v535, %v459
    %v550 = vsub.f32 %v541, %v465
    %v551 = vsub.f32 %v547, %v471
    %v552 = vlaneseq
    %v553 = vand.u32 %v552, 127
    %v554 = vadd.s32 %v553, 128
    %v555 = vadd.s32 %v447, 8
    %v556 = vadd.s32 %v447, 16
    %v557 = vadd.s32 %v447, 24
    %v558 = vadd.s32 %v447, 32
    %v559 = vadd.s32 %v447, 40
    %v560 = vadd.s32 %v447, 48
    %v561 = vadd.s32 %v447, 56
    %v562 = vadd.s32 %v447, 64
    %v563 = vadd.s32 %v447, 72
    %v564 = vadd.s32 %v447, 80
    %v565 = vadd.s32 %v447, 88
    %v566 = vadd.s32 %v447, 96
    %v567 = vadd.s32 %v447, 104
    %v568 = vadd.s32 %v447, 112
    %v569 = vadd.s32 %v447, 120
    %v570 = vadd.s32 %v447, 128
    %v571 = vadd.s32 %v447, 136
    %v572 = vadd.s32 %v447, 144
    %v573 = vadd.s32 %v447, 152
    %v574 = vadd.s32 %v447, 160
    %v575 = vadd.s32 %v447, 168
    %v576 = vadd.s32 %v447, 176
    %v577 = vadd.s32 %v447, 184
    %v578 = vadd.s32 %v447, 192
    %v579 = vadd.s32 %v447, 200
    %v580 = vadd.s32 %v447, 208
    %v581 = vadd.s32 %v447, 216
    %v582 = vadd.s32 %v447, 224
    %v583 = vadd.s32 %v447, 232
    %v584 = vadd.s32 %v447, 240
    %v585 = vadd.s32 %v447, 248
    %v586 = vmax.f32 %v548, %v549
    %587 = vmax.xlane.f32.xlu0 %v586
    %v588 = vpop.xlane.xlu0 %587
    %vm589 = vcmp.eq.f32.partialorder %v548, %v588
    %vm590 = vcmp.eq.f32.partialorder %v549, %v588
    %v591 = vsel %vm589, %v553, 256
    %v592 = vsel %vm590, %v554, 256
    %vm593 = vcmp.lt.s32.totalorder %v591, %v592
    %v594 = vsel %vm593, %v591, %v592
    %v595 = vand.u32 %v594, 65535
    %v596 = vshra.s32 %v594, 16
    %v597 = vcvt.s32.f32 %v595
    %v598 = vcvt.s32.f32 %v596
    %599 = vmin.xlane.f32.xlu0 %v598
    %v600 = vpop.xlane.xlu0 %599
    %vm601 = vcmp.eq.f32.partialorder %v598, %v600
    %v602 = vsel %vm601, %v597, inf
    %603 = vmin.xlane.f32.xlu0 %v602
    %v604 = vpop.xlane.xlu0 %603
    %v605 = vcvt.f32.s32 %v604
    %v606 = vcvt.f32.s32 %v600
    %v607 = vshll.u32 %v606, 16
    %v608 = vadd.s32 %v607, %v605
    %vm609 = vcmp.eq.s32.totalorder %v553, 0
    %v610 = vsel %vm609, %v608, 0
    %vm611 = vcmp.eq.s32.totalorder %v553, %v608
    %vm612 = vcmp.eq.s32.totalorder %v554, %v608
    %v613 = vsel %vm611, -inf, %v548
    %v614 = vsel %vm612, -inf, %v549
    %v615 = vmax.f32 %v613, %v614
    %616 = vmax.xlane.f32.xlu0 %v615
    %v617 = vpop.xlane.xlu0 %616
    %vm618 = vcmp.eq.f32.partialorder %v613, %v617
    %vm619 = vcmp.eq.f32.partialorder %v614, %v617
    %v620 = vsel %vm618, %v553, 256
    %v621 = vsel %vm619, %v554, 256
    %vm622 = vcmp.lt.s32.totalorder %v620, %v621
    %v623 = vsel %vm622, %v620, %v621
    %v624 = vand.u32 %v623, 65535
    %v625 = vshra.s32 %v623, 16
    %v626 = vcvt.s32.f32 %v624
    %v627 = vcvt.s32.f32 %v625
    %628 = vmin.xlane.f32.xlu0 %v627
    %v629 = vpop.xlane.xlu0 %628
    %vm630 = vcmp.eq.f32.partialorder %v627, %v629
    %v631 = vsel %vm630, %v626, inf
    %632 = vmin.xlane.f32.xlu0 %v631
    %v633 = vpop.xlane.xlu0 %632
    %v634 = vcvt.f32.s32 %v633
    %v635 = vcvt.f32.s32 %v629
    %v636 = vshll.u32 %v635, 16
    %v637 = vadd.s32 %v636, %v634
    %vm638 = vcmp.eq.s32.totalorder %v553, 1
    %v639 = vsel %vm638, %v637, %v610
    %vm640 = vcmp.eq.s32.totalorder %v553, %v637
    %vm641 = vcmp.eq.s32.totalorder %v554, %v637
    %v642 = vsel %vm640, -inf, %v613
    %v643 = vsel %vm641, -inf, %v614
    %v644 = vmax.f32 %v642, %v643
    %645 = vmax.xlane.f32.xlu0 %v644
    %v646 = vpop.xlane.xlu0 %645
    %vm647 = vcmp.eq.f32.partialorder %v642, %v646
    %vm648 = vcmp.eq.f32.partialorder %v643, %v646
    %v649 = vsel %vm647, %v553, 256
    %v650 = vsel %vm648, %v554, 256
    %vm651 = vcmp.lt.s32.totalorder %v649, %v650
    %v652 = vsel %vm651, %v649, %v650
    %v653 = vand.u32 %v652, 65535
    %v654 = vshra.s32 %v652, 16
    %v655 = vcvt.s32.f32 %v653
    %v656 = vcvt.s32.f32 %v654
    %657 = vmin.xlane.f32.xlu0 %v656
    %v658 = vpop.xlane.xlu0 %657
    %vm659 = vcmp.eq.f32.partialorder %v656, %v658
    %v660 = vsel %vm659, %v655, inf
    %661 = vmin.xlane.f32.xlu0 %v660
    %v662 = vpop.xlane.xlu0 %661
    %v663 = vcvt.f32.s32 %v662
    %v664 = vcvt.f32.s32 %v658
    %v665 = vshll.u32 %v664, 16
    %v666 = vadd.s32 %v665, %v663
    %vm667 = vcmp.eq.s32.totalorder %v553, 2
    %v668 = vsel %vm667, %v666, %v639
    %vm669 = vcmp.eq.s32.totalorder %v553, %v666
    %vm670 = vcmp.eq.s32.totalorder %v554, %v666
    %v671 = vsel %vm669, -inf, %v642
    %v672 = vsel %vm670, -inf, %v643
    %v673 = vmax.f32 %v671, %v672
    %674 = vmax.xlane.f32.xlu0 %v673
    %v675 = vpop.xlane.xlu0 %674
    %vm676 = vcmp.eq.f32.partialorder %v671, %v675
    %vm677 = vcmp.eq.f32.partialorder %v672, %v675
    %v678 = vsel %vm676, %v553, 256
    %v679 = vsel %vm677, %v554, 256
    %vm680 = vcmp.lt.s32.totalorder %v678, %v679
    %v681 = vsel %vm680, %v678, %v679
    %v682 = vand.u32 %v681, 65535
    %v683 = vshra.s32 %v681, 16
    %v684 = vcvt.s32.f32 %v682
    %v685 = vcvt.s32.f32 %v683
    %686 = vmin.xlane.f32.xlu0 %v685
    %v687 = vpop.xlane.xlu0 %686
    %vm688 = vcmp.eq.f32.partialorder %v685, %v687
    %v689 = vsel %vm688, %v684, inf
    %690 = vmin.xlane.f32.xlu0 %v689
    %v691 = vpop.xlane.xlu0 %690
    %v692 = vcvt.f32.s32 %v691
    %v693 = vcvt.f32.s32 %v687
    %v694 = vshll.u32 %v693, 16
    %v695 = vadd.s32 %v694, %v692
    %vm696 = vcmp.eq.s32.totalorder %v553, 3
    %v697 = vsel %vm696, %v695, %v668
    %vm698 = vcmp.eq.s32.totalorder %v553, %v695
    %vm699 = vcmp.eq.s32.totalorder %v554, %v695
    %v700 = vsel %vm698, -inf, %v671
    %v701 = vsel %vm699, -inf, %v672
    %v702 = vmax.f32 %v700, %v701
    %703 = vmax.xlane.f32.xlu0 %v702
    %v704 = vpop.xlane.xlu0 %703
    %vm705 = vcmp.eq.f32.partialorder %v700, %v704
    %vm706 = vcmp.eq.f32.partialorder %v701, %v704
    %v707 = vsel %vm705, %v553, 256
    %v708 = vsel %vm706, %v554, 256
    %vm709 = vcmp.lt.s32.totalorder %v707, %v708
    %v710 = vsel %vm709, %v707, %v708
    %v711 = vand.u32 %v710, 65535
    %v712 = vshra.s32 %v710, 16
    %v713 = vcvt.s32.f32 %v711
    %v714 = vcvt.s32.f32 %v712
    %715 = vmin.xlane.f32.xlu0 %v714
    %v716 = vpop.xlane.xlu0 %715
    %vm717 = vcmp.eq.f32.partialorder %v714, %v716
    %v718 = vsel %vm717, %v713, inf
    %719 = vmin.xlane.f32.xlu0 %v718
    %v720 = vpop.xlane.xlu0 %719
    %v721 = vcvt.f32.s32 %v720
    %v722 = vcvt.f32.s32 %v716
    %v723 = vshll.u32 %v722, 16
    %v724 = vadd.s32 %v723, %v721
    %vm725 = vcmp.eq.s32.totalorder %v553, 4
    %v726 = vsel %vm725, %v724, %v697
    %vm727 = vcmp.eq.s32.totalorder %v553, %v724
    %vm728 = vcmp.eq.s32.totalorder %v554, %v724
    %v729 = vsel %vm727, -inf, %v700
    %v730 = vsel %vm728, -inf, %v701
    %v731 = vmax.f32 %v729, %v730
    %732 = vmax.xlane.f32.xlu0 %v731
    %v733 = vpop.xlane.xlu0 %732
    %vm734 = vcmp.eq.f32.partialorder %v729, %v733
    %vm735 = vcmp.eq.f32.partialorder %v730, %v733
    %v736 = vsel %vm734, %v553, 256
    %v737 = vsel %vm735, %v554, 256
    %vm738 = vcmp.lt.s32.totalorder %v736, %v737
    %v739 = vsel %vm738, %v736, %v737
    %v740 = vand.u32 %v739, 65535
    %v741 = vshra.s32 %v739, 16
    %v742 = vcvt.s32.f32 %v740
    %v743 = vcvt.s32.f32 %v741
    %744 = vmin.xlane.f32.xlu0 %v743
    %v745 = vpop.xlane.xlu0 %744
    %vm746 = vcmp.eq.f32.partialorder %v743, %v745
    %v747 = vsel %vm746, %v742, inf
    %748 = vmin.xlane.f32.xlu0 %v747
    %v749 = vpop.xlane.xlu0 %748
    %v750 = vcvt.f32.s32 %v749
    %v751 = vcvt.f32.s32 %v745
    %v752 = vshll.u32 %v751, 16
    %v753 = vadd.s32 %v752, %v750
    %vm754 = vcmp.eq.s32.totalorder %v553, 5
    %v755 = vsel %vm754, %v753, %v726
    %vm756 = vcmp.eq.s32.totalorder %v553, %v753
    %vm757 = vcmp.eq.s32.totalorder %v554, %v753
    %v758 = vsel %vm756, -inf, %v729
    %v759 = vsel %vm757, -inf, %v730
    %v760 = vmax.f32 %v758, %v759
    %761 = vmax.xlane.f32.xlu0 %v760
    %v762 = vpop.xlane.xlu0 %761
    %vm763 = vcmp.eq.f32.partialorder %v758, %v762
    %vm764 = vcmp.eq.f32.partialorder %v759, %v762
    %v765 = vsel %vm763, %v553, 256
    %v766 = vsel %vm764, %v554, 256
    %vm767 = vcmp.lt.s32.totalorder %v765, %v766
    %v768 = vsel %vm767, %v765, %v766
    %v769 = vand.u32 %v768, 65535
    %v770 = vshra.s32 %v768, 16
    %v771 = vcvt.s32.f32 %v769
    %v772 = vcvt.s32.f32 %v770
    %773 = vmin.xlane.f32.xlu0 %v772
    %v774 = vpop.xlane.xlu0 %773
    %vm775 = vcmp.eq.f32.partialorder %v772, %v774
    %v776 = vsel %vm775, %v771, inf
    %777 = vmin.xlane.f32.xlu0 %v776
    %v778 = vpop.xlane.xlu0 %777
    %v779 = vcvt.f32.s32 %v778
    %v780 = vcvt.f32.s32 %v774
    %v781 = vshll.u32 %v780, 16
    %v782 = vadd.s32 %v781, %v779
    %vm783 = vcmp.eq.s32.totalorder %v553, 6
    %v784 = vsel %vm783, %v782, %v755
    %vm785 = vcmp.eq.s32.totalorder %v553, %v782
    %vm786 = vcmp.eq.s32.totalorder %v554, %v782
    %v787 = vsel %vm785, -inf, %v758
    %v788 = vsel %vm786, -inf, %v759
    %v789 = vmax.f32 %v787, %v788
    %790 = vmax.xlane.f32.xlu0 %v789
    %v791 = vpop.xlane.xlu0 %790
    %vm792 = vcmp.eq.f32.partialorder %v787, %v791
    %vm793 = vcmp.eq.f32.partialorder %v788, %v791
    %v794 = vsel %vm792, %v553, 256
    %v795 = vsel %vm793, %v554, 256
    %vm796 = vcmp.lt.s32.totalorder %v794, %v795
    %v797 = vsel %vm796, %v794, %v795
    %v798 = vand.u32 %v797, 65535
    %v799 = vshra.s32 %v797, 16
    %v800 = vcvt.s32.f32 %v798
    %v801 = vcvt.s32.f32 %v799
    %802 = vmin.xlane.f32.xlu0 %v801
    %v803 = vpop.xlane.xlu0 %802
    %vm804 = vcmp.eq.f32.partialorder %v801, %v803
    %v805 = vsel %vm804, %v800, inf
    %806 = vmin.xlane.f32.xlu0 %v805
    %v807 = vpop.xlane.xlu0 %806
    %v808 = vcvt.f32.s32 %v807
    %v809 = vcvt.f32.s32 %v803
    %v810 = vshll.u32 %v809, 16
    %v811 = vadd.s32 %v810, %v808
    %vm812 = vcmp.eq.s32.totalorder %v553, 7
    %v813 = vsel %vm812, %v811, %v784
    %vm814 = vcmp.eq.s32.totalorder %v553, %v811
    %vm815 = vcmp.eq.s32.totalorder %v554, %v811
    %v816 = vsel %vm814, -inf, %v787
    %v817 = vsel %vm815, -inf, %v788
    %v818 = vmax.f32 %v816, %v817
    %819 = vmax.xlane.f32.xlu0 %v818
    %v820 = vpop.xlane.xlu0 %819
    %vm821 = vcmp.eq.f32.partialorder %v816, %v820
    %vm822 = vcmp.eq.f32.partialorder %v817, %v820
    %v823 = vsel %vm821, %v553, 256
    %v824 = vsel %vm822, %v554, 256
    %vm825 = vcmp.lt.s32.totalorder %v823, %v824
    %v826 = vsel %vm825, %v823, %v824
    %v827 = vand.u32 %v826, 65535
    %v828 = vshra.s32 %v826, 16
    %v829 = vcvt.s32.f32 %v827
    %v830 = vcvt.s32.f32 %v828
    %831 = vmin.xlane.f32.xlu0 %v830
    %v832 = vpop.xlane.xlu0 %831
    %vm833 = vcmp.eq.f32.partialorder %v830, %v832
    %v834 = vsel %vm833, %v829, inf
    %835 = vmin.xlane.f32.xlu0 %v834
    %v836 = vpop.xlane.xlu0 %835
    %v837 = vcvt.f32.s32 %v836
    %v838 = vcvt.f32.s32 %v832
    %v839 = vshll.u32 %v838, 16
    %v840 = vadd.s32 %v839, %v837
    %vm841 = vcmp.eq.s32.totalorder %v553, 8
    %v842 = vsel %vm841, %v840, %v813
    %vm843 = vcmp.eq.s32.totalorder %v553, %v840
    %vm844 = vcmp.eq.s32.totalorder %v554, %v840
    %v845 = vsel %vm843, -inf, %v816
    %v846 = vsel %vm844, -inf, %v817
    %v847 = vmax.f32 %v845, %v846
    %848 = vmax.xlane.f32.xlu0 %v847
    %v849 = vpop.xlane.xlu0 %848
    %vm850 = vcmp.eq.f32.partialorder %v845, %v849
    %vm851 = vcmp.eq.f32.partialorder %v846, %v849
    %v852 = vsel %vm850, %v553, 256
    %v853 = vsel %vm851, %v554, 256
    %vm854 = vcmp.lt.s32.totalorder %v852, %v853
    %v855 = vsel %vm854, %v852, %v853
    %v856 = vand.u32 %v855, 65535
    %v857 = vshra.s32 %v855, 16
    %v858 = vcvt.s32.f32 %v856
    %v859 = vcvt.s32.f32 %v857
    %860 = vmin.xlane.f32.xlu0 %v859
    %v861 = vpop.xlane.xlu0 %860
    %vm862 = vcmp.eq.f32.partialorder %v859, %v861
    %v863 = vsel %vm862, %v858, inf
    %864 = vmin.xlane.f32.xlu0 %v863
    %v865 = vpop.xlane.xlu0 %864
    %v866 = vcvt.f32.s32 %v865
    %v867 = vcvt.f32.s32 %v861
    %v868 = vshll.u32 %v867, 16
    %v869 = vadd.s32 %v868, %v866
    %vm870 = vcmp.eq.s32.totalorder %v553, 9
    %v871 = vsel %vm870, %v869, %v842
    %vm872 = vcmp.eq.s32.totalorder %v553, %v869
    %vm873 = vcmp.eq.s32.totalorder %v554, %v869
    %v874 = vsel %vm872, -inf, %v845
    %v875 = vsel %vm873, -inf, %v846
    %v876 = vmax.f32 %v874, %v875
    %877 = vmax.xlane.f32.xlu0 %v876
    %v878 = vpop.xlane.xlu0 %877
    %vm879 = vcmp.eq.f32.partialorder %v874, %v878
    %vm880 = vcmp.eq.f32.partialorder %v875, %v878
    %v881 = vsel %vm879, %v553, 256
    %v882 = vsel %vm880, %v554, 256
    %vm883 = vcmp.lt.s32.totalorder %v881, %v882
    %v884 = vsel %vm883, %v881, %v882
    %v885 = vand.u32 %v884, 65535
    %v886 = vshra.s32 %v884, 16
    %v887 = vcvt.s32.f32 %v885
    %v888 = vcvt.s32.f32 %v886
    %889 = vmin.xlane.f32.xlu0 %v888
    %v890 = vpop.xlane.xlu0 %889
    %vm891 = vcmp.eq.f32.partialorder %v888, %v890
    %v892 = vsel %vm891, %v887, inf
    %893 = vmin.xlane.f32.xlu0 %v892
    %v894 = vpop.xlane.xlu0 %893
    %v895 = vcvt.f32.s32 %v894
    %v896 = vcvt.f32.s32 %v890
    %v897 = vshll.u32 %v896, 16
    %v898 = vadd.s32 %v897, %v895
    %vm899 = vcmp.eq.s32.totalorder %v553, 10
    %v900 = vsel %vm899, %v898, %v871
    %vm901 = vcmp.eq.s32.totalorder %v553, %v898
    %vm902 = vcmp.eq.s32.totalorder %v554, %v898
    %v903 = vsel %vm901, -inf, %v874
    %v904 = vsel %vm902, -inf, %v875
    %v905 = vmax.f32 %v903, %v904
    %906 = vmax.xlane.f32.xlu0 %v905
    %v907 = vpop.xlane.xlu0 %906
    %vm908 = vcmp.eq.f32.partialorder %v903, %v907
    %vm909 = vcmp.eq.f32.partialorder %v904, %v907
    %v910 = vsel %vm908, %v553, 256
    %v911 = vsel %vm909, %v554, 256
    %vm912 = vcmp.lt.s32.totalorder %v910, %v911
    %v913 = vsel %vm912, %v910, %v911
    %v914 = vand.u32 %v913, 65535
    %v915 = vshra.s32 %v913, 16
    %v916 = vcvt.s32.f32 %v914
    %v917 = vcvt.s32.f32 %v915
    %918 = vmin.xlane.f32.xlu0 %v917
    %v919 = vpop.xlane.xlu0 %918
    %vm920 = vcmp.eq.f32.partialorder %v917, %v919
    %v921 = vsel %vm920, %v916, inf
    %922 = vmin.xlane.f32.xlu0 %v921
    %v923 = vpop.xlane.xlu0 %922
    %v924 = vcvt.f32.s32 %v923
    %v925 = vcvt.f32.s32 %v919
    %v926 = vshll.u32 %v925, 16
    %v927 = vadd.s32 %v926, %v924
    %vm928 = vcmp.eq.s32.totalorder %v553, 11
    %v929 = vsel %vm928, %v927, %v900
    %vm930 = vcmp.eq.s32.totalorder %v553, %v927
    %vm931 = vcmp.eq.s32.totalorder %v554, %v927
    %v932 = vsel %vm930, -inf, %v903
    %v933 = vsel %vm931, -inf, %v904
    %v934 = vmax.f32 %v932, %v933
    %935 = vmax.xlane.f32.xlu0 %v934
    %v936 = vpop.xlane.xlu0 %935
    %vm937 = vcmp.eq.f32.partialorder %v932, %v936
    %vm938 = vcmp.eq.f32.partialorder %v933, %v936
    %v939 = vsel %vm937, %v553, 256
    %v940 = vsel %vm938, %v554, 256
    %vm941 = vcmp.lt.s32.totalorder %v939, %v940
    %v942 = vsel %vm941, %v939, %v940
    %v943 = vand.u32 %v942, 65535
    %v944 = vshra.s32 %v942, 16
    %v945 = vcvt.s32.f32 %v943
    %v946 = vcvt.s32.f32 %v944
    %947 = vmin.xlane.f32.xlu0 %v946
    %v948 = vpop.xlane.xlu0 %947
    %vm949 = vcmp.eq.f32.partialorder %v946, %v948
    %v950 = vsel %vm949, %v945, inf
    %951 = vmin.xlane.f32.xlu0 %v950
    %v952 = vpop.xlane.xlu0 %951
    %v953 = vcvt.f32.s32 %v952
    %v954 = vcvt.f32.s32 %v948
    %v955 = vshll.u32 %v954, 16
    %v956 = vadd.s32 %v955, %v953
    %vm957 = vcmp.eq.s32.totalorder %v553, 12
    %v958 = vsel %vm957, %v956, %v929
    %vm959 = vcmp.eq.s32.totalorder %v553, %v956
    %vm960 = vcmp.eq.s32.totalorder %v554, %v956
    %v961 = vsel %vm959, -inf, %v932
    %v962 = vsel %vm960, -inf, %v933
    %v963 = vmax.f32 %v961, %v962
    %964 = vmax.xlane.f32.xlu0 %v963
    %v965 = vpop.xlane.xlu0 %964
    %vm966 = vcmp.eq.f32.partialorder %v961, %v965
    %vm967 = vcmp.eq.f32.partialorder %v962, %v965
    %v968 = vsel %vm966, %v553, 256
    %v969 = vsel %vm967, %v554, 256
    %vm970 = vcmp.lt.s32.totalorder %v968, %v969
    %v971 = vsel %vm970, %v968, %v969
    %v972 = vand.u32 %v971, 65535
    %v973 = vshra.s32 %v971, 16
    %v974 = vcvt.s32.f32 %v972
    %v975 = vcvt.s32.f32 %v973
    %976 = vmin.xlane.f32.xlu0 %v975
    %v977 = vpop.xlane.xlu0 %976
    %vm978 = vcmp.eq.f32.partialorder %v975, %v977
    %v979 = vsel %vm978, %v974, inf
    %980 = vmin.xlane.f32.xlu0 %v979
    %v981 = vpop.xlane.xlu0 %980
    %v982 = vcvt.f32.s32 %v981
    %v983 = vcvt.f32.s32 %v977
    %v984 = vshll.u32 %v983, 16
    %v985 = vadd.s32 %v984, %v982
    %vm986 = vcmp.eq.s32.totalorder %v553, 13
    %v987 = vsel %vm986, %v985, %v958
    %vm988 = vcmp.eq.s32.totalorder %v553, %v985
    %vm989 = vcmp.eq.s32.totalorder %v554, %v985
    %v990 = vsel %vm988, -inf, %v961
    %v991 = vsel %vm989, -inf, %v962
    %v992 = vmax.f32 %v990, %v991
    %993 = vmax.xlane.f32.xlu0 %v992
    %v994 = vpop.xlane.xlu0 %993
    %vm995 = vcmp.eq.f32.partialorder %v990, %v994
    %vm996 = vcmp.eq.f32.partialorder %v991, %v994
    %v997 = vsel %vm995, %v553, 256
    %v998 = vsel %vm996, %v554, 256
    %vm999 = vcmp.lt.s32.totalorder %v997, %v998
    %v1000 = vsel %vm999, %v997, %v998
    %v1001 = vand.u32 %v1000, 65535
    %v1002 = vshra.s32 %v1000, 16
    %v1003 = vcvt.s32.f32 %v1001
    %v1004 = vcvt.s32.f32 %v1002
    %1005 = vmin.xlane.f32.xlu0 %v1004
    %v1006 = vpop.xlane.xlu0 %1005
    %vm1007 = vcmp.eq.f32.partialorder %v1004, %v1006
    %v1008 = vsel %vm1007, %v1003, inf
    %1009 = vmin.xlane.f32.xlu0 %v1008
    %v1010 = vpop.xlane.xlu0 %1009
    %v1011 = vcvt.f32.s32 %v1010
    %v1012 = vcvt.f32.s32 %v1006
    %v1013 = vshll.u32 %v1012, 16
    %v1014 = vadd.s32 %v1013, %v1011
    %vm1015 = vcmp.eq.s32.totalorder %v553, 14
    %v1016 = vsel %vm1015, %v1014, %v987
    %vm1017 = vcmp.eq.s32.totalorder %v553, %v1014
    %vm1018 = vcmp.eq.s32.totalorder %v554, %v1014
    %v1019 = vsel %vm1017, -inf, %v990
    %v1020 = vsel %vm1018, -inf, %v991
    %v1021 = vmax.f32 %v1019, %v1020
    %1022 = vmax.xlane.f32.xlu0 %v1021
    %v1023 = vpop.xlane.xlu0 %1022
    %vm1024 = vcmp.eq.f32.partialorder %v1019, %v1023
    %vm1025 = vcmp.eq.f32.partialorder %v1020, %v1023
    %v1026 = vsel %vm1024, %v553, 256
    %v1027 = vsel %vm1025, %v554, 256
    %vm1028 = vcmp.lt.s32.totalorder %v1026, %v1027
    %v1029 = vsel %vm1028, %v1026, %v1027
    %v1030 = vand.u32 %v1029, 65535
    %v1031 = vshra.s32 %v1029, 16
    %v1032 = vcvt.s32.f32 %v1030
    %v1033 = vcvt.s32.f32 %v1031
    %1034 = vmin.xlane.f32.xlu0 %v1033
    %v1035 = vpop.xlane.xlu0 %1034
    %vm1036 = vcmp.eq.f32.partialorder %v1033, %v1035
    %v1037 = vsel %vm1036, %v1032, inf
    %1038 = vmin.xlane.f32.xlu0 %v1037
    %v1039 = vpop.xlane.xlu0 %1038
    %v1040 = vcvt.f32.s32 %v1039
    %v1041 = vcvt.f32.s32 %v1035
    %v1042 = vshll.u32 %v1041, 16
    %v1043 = vadd.s32 %v1042, %v1040
    %vm1044 = vcmp.eq.s32.totalorder %v553, 15
    %v1045 = vsel %vm1044, %v1043, %v1016
    %vm1046 = vcmp.eq.s32.totalorder %v447, %v1045
    %vm1047 = vcmp.eq.s32.totalorder %v555, %v1045
    %vm1048 = vcmp.eq.s32.totalorder %v556, %v1045
    %vm1049 = vcmp.eq.s32.totalorder %v557, %v1045
    %vm1050 = vcmp.eq.s32.totalorder %v558, %v1045
    %vm1051 = vcmp.eq.s32.totalorder %v559, %v1045
    %vm1052 = vcmp.eq.s32.totalorder %v560, %v1045
    %vm1053 = vcmp.eq.s32.totalorder %v561, %v1045
    %vm1054 = vcmp.eq.s32.totalorder %v562, %v1045
    %vm1055 = vcmp.eq.s32.totalorder %v563, %v1045
    %vm1056 = vcmp.eq.s32.totalorder %v564, %v1045
    %vm1057 = vcmp.eq.s32.totalorder %v565, %v1045
    %vm1058 = vcmp.eq.s32.totalorder %v566, %v1045
    %vm1059 = vcmp.eq.s32.totalorder %v567, %v1045
    %vm1060 = vcmp.eq.s32.totalorder %v568, %v1045
    %vm1061 = vcmp.eq.s32.totalorder %v569, %v1045
    %vm1062 = vcmp.eq.s32.totalorder %v570, %v1045
    %vm1063 = vcmp.eq.s32.totalorder %v571, %v1045
    %vm1064 = vcmp.eq.s32.totalorder %v572, %v1045
    %vm1065 = vcmp.eq.s32.totalorder %v573, %v1045
    %vm1066 = vcmp.eq.s32.totalorder %v574, %v1045
    %vm1067 = vcmp.eq.s32.totalorder %v575, %v1045
    %vm1068 = vcmp.eq.s32.totalorder %v576, %v1045
    %vm1069 = vcmp.eq.s32.totalorder %v577, %v1045
    %vm1070 = vcmp.eq.s32.totalorder %v578, %v1045
    %vm1071 = vcmp.eq.s32.totalorder %v579, %v1045
    %vm1072 = vcmp.eq.s32.totalorder %v580, %v1045
    %vm1073 = vcmp.eq.s32.totalorder %v581, %v1045
    %vm1074 = vcmp.eq.s32.totalorder %v582, %v1045
    %vm1075 = vcmp.eq.s32.totalorder %v583, %v1045
    %vm1076 = vcmp.eq.s32.totalorder %v584, %v1045
    %vm1077 = vcmp.eq.s32.totalorder %v585, %v1045
    %v1078 = vsel %vm1046, 1, 0
    %v1079 = vsel %vm1047, 1, 0
    %v1080 = vsel %vm1048, 1, 0
    %v1081 = vsel %vm1049, 1, 0
    %v1082 = vsel %vm1050, 1, 0
    %v1083 = vsel %vm1051, 1, 0
    %v1084 = vsel %vm1052, 1, 0
    %v1085 = vsel %vm1053, 1, 0
    %v1086 = vsel %vm1054, 1, 0
    %v1087 = vsel %vm1055, 1, 0
    %v1088 = vsel %vm1056, 1, 0
    %v1089 = vsel %vm1057, 1, 0
    %v1090 = vsel %vm1058, 1, 0
    %v1091 = vsel %vm1059, 1, 0
    %v1092 = vsel %vm1060, 1, 0
    %v1093 = vsel %vm1061, 1, 0
    %v1094 = vsel %vm1062, 1, 0
    %v1095 = vsel %vm1063, 1, 0
    %v1096 = vsel %vm1064, 1, 0
    %v1097 = vsel %vm1065, 1, 0
    %v1098 = vsel %vm1066, 1, 0
    %v1099 = vsel %vm1067, 1, 0
    %v1100 = vsel %vm1068, 1, 0
    %v1101 = vsel %vm1069, 1, 0
    %v1102 = vsel %vm1070, 1, 0
    %v1103 = vsel %vm1071, 1, 0
    %v1104 = vsel %vm1072, 1, 0
    %v1105 = vsel %vm1073, 1, 0
    %v1106 = vsel %vm1074, 1, 0
    %v1107 = vsel %vm1075, 1, 0
    %v1108 = vsel %vm1076, 1, 0
    %v1109 = vsel %vm1077, 1, 0
    %v1110 = vcvt.s32.f32 %v1078
    %v1111 = vcvt.s32.f32 %v1079
    %v1112 = vcvt.s32.f32 %v1080
    %v1113 = vcvt.s32.f32 %v1081
    %v1114 = vcvt.s32.f32 %v1082
    %v1115 = vcvt.s32.f32 %v1083
    %v1116 = vcvt.s32.f32 %v1084
    %v1117 = vcvt.s32.f32 %v1085
    %v1118 = vcvt.s32.f32 %v1086
    %v1119 = vcvt.s32.f32 %v1087
    %v1120 = vcvt.s32.f32 %v1088
    %v1121 = vcvt.s32.f32 %v1089
    %v1122 = vcvt.s32.f32 %v1090
    %v1123 = vcvt.s32.f32 %v1091
    %v1124 = vcvt.s32.f32 %v1092
    %v1125 = vcvt.s32.f32 %v1093
    %v1126 = vcvt.s32.f32 %v1094
    %v1127 = vcvt.s32.f32 %v1095
    %v1128 = vcvt.s32.f32 %v1096
    %v1129 = vcvt.s32.f32 %v1097
    %v1130 = vcvt.s32.f32 %v1098
    %v1131 = vcvt.s32.f32 %v1099
    %v1132 = vcvt.s32.f32 %v1100
    %v1133 = vcvt.s32.f32 %v1101
    %v1134 = vcvt.s32.f32 %v1102
    %v1135 = vcvt.s32.f32 %v1103
    %v1136 = vcvt.s32.f32 %v1104
    %v1137 = vcvt.s32.f32 %v1105
    %v1138 = vcvt.s32.f32 %v1106
    %v1139 = vcvt.s32.f32 %v1107
    %v1140 = vcvt.s32.f32 %v1108
    %v1141 = vcvt.s32.f32 %v1109
    %1142 = vmatprep.subr.mxu0 0.0
    %1143 = vmatpush1.msra.mxu0 %v1110
    %1144 = vmatprep.subr.mxu0 0.0
    %1145 = vmatpush1.msra.mxu0 %v1111
    %1146 = vmatprep.subr.mxu0 0.0
    %1147 = vmatpush1.msra.mxu0 %v1112
    %1148 = vmatprep.subr.mxu0 0.0
    %1149 = vmatpush1.msra.mxu0 %v1113
    %1150 = vmatprep.subr.mxu0 0.0
    %1151 = vmatpush1.msra.mxu0 %v1114
    %1152 = vmatprep.subr.mxu0 0.0
    %1153 = vmatpush1.msra.mxu0 %v1115
    %1154 = vmatprep.subr.mxu0 0.0
    %1155 = vmatpush1.msra.mxu0 %v1116
    %1156 = vmatprep.subr.mxu0 0.0
    %1157 = vmatpush1.msra.mxu0 %v1117
    %1158 = vmatprep.subr.mxu0 0.0
    %1159 = vmatpush1.msra.mxu0 %v1118
    %1160 = vmatprep.subr.mxu0 0.0
    %1161 = vmatpush1.msra.mxu0 %v1119
    %1162 = vmatprep.subr.mxu0 0.0
    %1163 = vmatpush1.msra.mxu0 %v1120
    %1164 = vmatprep.subr.mxu0 0.0
    %1165 = vmatpush1.msra.mxu0 %v1121
    %1166 = vmatprep.subr.mxu0 0.0
    %1167 = vmatpush1.msra.mxu0 %v1122
    %1168 = vmatprep.subr.mxu0 0.0
    %1169 = vmatpush1.msra.mxu0 %v1123
    %1170 = vmatprep.subr.mxu0 0.0
    %1171 = vmatpush1.msra.mxu0 %v1124
    %1172 = vmatprep.subr.mxu0 0.0
    %1173 = vmatpush1.msra.mxu0 %v1125
    %1174 = vmatprep.subr.mxu0 0.0
    %1175 = vmatpush1.msra.mxu0 %v1126
    %1176 = vmatprep.subr.mxu0 0.0
    %1177 = vmatpush1.msra.mxu0 %v1127
    %1178 = vmatprep.subr.mxu0 0.0
    %1179 = vmatpush1.msra.mxu0 %v1128
    %1180 = vmatprep.subr.mxu0 0.0
    %1181 = vmatpush1.msra.mxu0 %v1129
    %1182 = vmatprep.subr.mxu0 0.0
    %1183 = vmatpush1.msra.mxu0 %v1130
    %1184 = vmatprep.subr.mxu0 0.0
    %1185 = vmatpush1.msra.mxu0 %v1131
    %1186 = vmatprep.subr.mxu0 0.0
    %1187 = vmatpush1.msra.mxu0 %v1132
    %1188 = vmatprep.subr.mxu0 0.0
    %1189 = vmatpush1.msra.mxu0 %v1133
    %1190 = vmatprep.subr.mxu0 0.0
    %1191 = vmatpush1.msra.mxu0 %v1134
    %1192 = vmatprep.subr.mxu0 0.0
    %1193 = vmatpush1.msra.mxu0 %v1135
    %1194 = vmatprep.subr.mxu0 0.0
    %1195 = vmatpush1.msra.mxu0 %v1136
    %1196 = vmatprep.subr.mxu0 0.0
    %1197 = vmatpush1.msra.mxu0 %v1137
    %1198 = vmatprep.subr.mxu0 0.0
    %1199 = vmatpush1.msra.mxu0 %v1138
    %1200 = vmatprep.subr.mxu0 0.0
    %1201 = vmatpush1.msra.mxu0 %v1139
    %1202 = vmatprep.subr.mxu0 0.0
    %1203 = vmatpush1.msra.mxu0 %v1140
    %1204 = vmatprep.subr.mxu0 0.0
    %1205 = vmatpush1.msra.mxu0 %v1141
    %1206 = vmatprep.mubr.f32.mxu0 %v256
    %1207 = vmatmul.mubr.f32.gmra.mrb[0].mxu0 %v255
    %v1208 = vpop.f32.mrb[0].mxu0
    %v1209 = vadd.f32 0.0, %v1208
    %v1210 = vpop.f32.mrb[0].mxu0
    %1211 = vmatprep.mubr.f32.mxu0 %v260
    %1212 = vmatmul.mubr.f32.gmra.mrb[0].mxu0 %v259
    %v1213 = vpop.f32.mrb[0].mxu0
    %v1214 = vadd.f32 0.0, %v1213
    %v1215 = vpop.f32.mrb[0].mxu0
    %1216 = vmatprep.mubr.f32.mxu0 %v264
    %1217 = vmatmul.mubr.f32.gmra.mrb[0].mxu0 %v263
    %v1218 = vpop.f32.mrb[0].mxu0
    %v1219 = vadd.f32 0.0, %v1218
    %v1220 = vpop.f32.mrb[0].mxu0
    %1221 = vmatprep.mubr.f32.mxu0 %v268
    %1222 = vmatmul.mubr.f32.gmra.mrb[0].mxu0 %v267
    %v1223 = vpop.f32.mrb[0].mxu0
    %v1224 = vadd.f32 0.0, %v1223
    %v1225 = vpop.f32.mrb[0].mxu0
    %1226 = vmatprep.mubr.f32.mxu0 %v351
    %1227 = vmatmul.mubr.f32.gmra.mrb[0].mxu0 %v349
    %v1228 = vpop.f32.mrb[0].mxu0
    %v1229 = vadd.f32 0.0, %v1228
    %v1230 = vpop.f32.mrb[0].mxu0
    %1231 = vdwg.mxu0
    %v1232 = vmax.f32 %v550, %v551
    %1233 = vmax.xlane.f32.xlu0 %v1232
    %v1234 = vpop.xlane.xlu0 %1233
    %vm1235 = vcmp.eq.f32.partialorder %v550, %v1234
    %vm1236 = vcmp.eq.f32.partialorder %v551, %v1234
    %v1237 = vsel %vm1235, %v553, 256
    %v1238 = vsel %vm1236, %v554, 256
    %vm1239 = vcmp.lt.s32.totalorder %v1237, %v1238
    %v1240 = vsel %vm1239, %v1237, %v1238
    %v1241 = vand.u32 %v1240, 65535
    %v1242 = vshra.s32 %v1240, 16
    %v1243 = vcvt.s32.f32 %v1241
    %v1244 = vcvt.s32.f32 %v1242
    %1245 = vmin.xlane.f32.xlu0 %v1244
    %v1246 = vpop.xlane.xlu0 %1245
    %vm1247 = vcmp.eq.f32.partialorder %v1244, %v1246
    %v1248 = vsel %vm1247, %v1243, inf
    %1249 = vmin.xlane.f32.xlu0 %v1248
    %v1250 = vpop.xlane.xlu0 %1249
    %v1251 = vcvt.f32.s32 %v1250
    %v1252 = vcvt.f32.s32 %v1246
    %v1253 = vshll.u32 %v1252, 16
    %v1254 = vadd.s32 %v1253, %v1251
    %v1255 = vsel %vm609, %v1254, 0
    %vm1256 = vcmp.eq.s32.totalorder %v553, %v1254
    %vm1257 = vcmp.eq.s32.totalorder %v554, %v1254
    %v1258 = vsel %vm1256, -inf, %v550
    %v1259 = vsel %vm1257, -inf, %v551
    %v1260 = vmax.f32 %v1258, %v1259
    %1261 = vmax.xlane.f32.xlu0 %v1260
    %v1262 = vpop.xlane.xlu0 %1261
    %vm1263 = vcmp.eq.f32.partialorder %v1258, %v1262
    %vm1264 = vcmp.eq.f32.partialorder %v1259, %v1262
    %v1265 = vsel %vm1263, %v553, 256
    %v1266 = vsel %vm1264, %v554, 256
    %vm1267 = vcmp.lt.s32.totalorder %v1265, %v1266
    %v1268 = vsel %vm1267, %v1265, %v1266
    %v1269 = vand.u32 %v1268, 65535
    %v1270 = vshra.s32 %v1268, 16
    %v1271 = vcvt.s32.f32 %v1269
    %v1272 = vcvt.s32.f32 %v1270
    %1273 = vmin.xlane.f32.xlu0 %v1272
    %v1274 = vpop.xlane.xlu0 %1273
    %vm1275 = vcmp.eq.f32.partialorder %v1272, %v1274
    %v1276 = vsel %vm1275, %v1271, inf
    %1277 = vmin.xlane.f32.xlu0 %v1276
    %v1278 = vpop.xlane.xlu0 %1277
    %v1279 = vcvt.f32.s32 %v1278
    %v1280 = vcvt.f32.s32 %v1274
    %v1281 = vshll.u32 %v1280, 16
    %v1282 = vadd.s32 %v1281, %v1279
    %v1283 = vsel %vm638, %v1282, %v1255
    %vm1284 = vcmp.eq.s32.totalorder %v553, %v1282
    %vm1285 = vcmp.eq.s32.totalorder %v554, %v1282
    %v1286 = vsel %vm1284, -inf, %v1258
    %v1287 = vsel %vm1285, -inf, %v1259
    %v1288 = vmax.f32 %v1286, %v1287
    %1289 = vmax.xlane.f32.xlu0 %v1288
    %v1290 = vpop.xlane.xlu0 %1289
    %vm1291 = vcmp.eq.f32.partialorder %v1286, %v1290
    %vm1292 = vcmp.eq.f32.partialorder %v1287, %v1290
    %v1293 = vsel %vm1291, %v553, 256
    %v1294 = vsel %vm1292, %v554, 256
    %vm1295 = vcmp.lt.s32.totalorder %v1293, %v1294
    %v1296 = vsel %vm1295, %v1293, %v1294
    %v1297 = vand.u32 %v1296, 65535
    %v1298 = vshra.s32 %v1296, 16
    %v1299 = vcvt.s32.f32 %v1297
    %v1300 = vcvt.s32.f32 %v1298
    %1301 = vmin.xlane.f32.xlu0 %v1300
    %v1302 = vpop.xlane.xlu0 %1301
    %vm1303 = vcmp.eq.f32.partialorder %v1300, %v1302
    %v1304 = vsel %vm1303, %v1299, inf
    %1305 = vmin.xlane.f32.xlu0 %v1304
    %v1306 = vpop.xlane.xlu0 %1305
    %v1307 = vcvt.f32.s32 %v1306
    %v1308 = vcvt.f32.s32 %v1302
    %v1309 = vshll.u32 %v1308, 16
    %v1310 = vadd.s32 %v1309, %v1307
    %v1311 = vsel %vm667, %v1310, %v1283
    %vm1312 = vcmp.eq.s32.totalorder %v553, %v1310
    %vm1313 = vcmp.eq.s32.totalorder %v554, %v1310
    %v1314 = vsel %vm1312, -inf, %v1286
    %v1315 = vsel %vm1313, -inf, %v1287
    %v1316 = vmax.f32 %v1314, %v1315
    %1317 = vmax.xlane.f32.xlu0 %v1316
    %v1318 = vpop.xlane.xlu0 %1317
    %vm1319 = vcmp.eq.f32.partialorder %v1314, %v1318
    %vm1320 = vcmp.eq.f32.partialorder %v1315, %v1318
    %v1321 = vsel %vm1319, %v553, 256
    %v1322 = vsel %vm1320, %v554, 256
    %vm1323 = vcmp.lt.s32.totalorder %v1321, %v1322
    %v1324 = vsel %vm1323, %v1321, %v1322
    %v1325 = vand.u32 %v1324, 65535
    %v1326 = vshra.s32 %v1324, 16
    %v1327 = vcvt.s32.f32 %v1325
    %v1328 = vcvt.s32.f32 %v1326
    %1329 = vmin.xlane.f32.xlu0 %v1328
    %v1330 = vpop.xlane.xlu0 %1329
    %vm1331 = vcmp.eq.f32.partialorder %v1328, %v1330
    %v1332 = vsel %vm1331, %v1327, inf
    %1333 = vmin.xlane.f32.xlu0 %v1332
    %v1334 = vpop.xlane.xlu0 %1333
    %v1335 = vcvt.f32.s32 %v1334
    %v1336 = vcvt.f32.s32 %v1330
    %v1337 = vshll.u32 %v1336, 16
    %v1338 = vadd.s32 %v1337, %v1335
    %v1339 = vsel %vm696, %v1338, %v1311
    %vm1340 = vcmp.eq.s32.totalorder %v553, %v1338
    %vm1341 = vcmp.eq.s32.totalorder %v554, %v1338
    %v1342 = vsel %vm1340, -inf, %v1314
    %v1343 = vsel %vm1341, -inf, %v1315
    %v1344 = vmax.f32 %v1342, %v1343
    %1345 = vmax.xlane.f32.xlu0 %v1344
    %v1346 = vpop.xlane.xlu0 %1345
    %vm1347 = vcmp.eq.f32.partialorder %v1342, %v1346
    %vm1348 = vcmp.eq.f32.partialorder %v1343, %v1346
    %v1349 = vsel %vm1347, %v553, 256
    %v1350 = vsel %vm1348, %v554, 256
    %vm1351 = vcmp.lt.s32.totalorder %v1349, %v1350
    %v1352 = vsel %vm1351, %v1349, %v1350
    %v1353 = vand.u32 %v1352, 65535
    %v1354 = vshra.s32 %v1352, 16
    %v1355 = vcvt.s32.f32 %v1353
    %v1356 = vcvt.s32.f32 %v1354
    %1357 = vmin.xlane.f32.xlu0 %v1356
    %v1358 = vpop.xlane.xlu0 %1357
    %vm1359 = vcmp.eq.f32.partialorder %v1356, %v1358
    %v1360 = vsel %vm1359, %v1355, inf
    %1361 = vmin.xlane.f32.xlu0 %v1360
    %v1362 = vpop.xlane.xlu0 %1361
    %v1363 = vcvt.f32.s32 %v1362
    %v1364 = vcvt.f32.s32 %v1358
    %v1365 = vshll.u32 %v1364, 16
    %v1366 = vadd.s32 %v1365, %v1363
    %v1367 = vsel %vm725, %v1366, %v1339
    %vm1368 = vcmp.eq.s32.totalorder %v553, %v1366
    %vm1369 = vcmp.eq.s32.totalorder %v554, %v1366
    %v1370 = vsel %vm1368, -inf, %v1342
    %v1371 = vsel %vm1369, -inf, %v1343
    %v1372 = vmax.f32 %v1370, %v1371
    %1373 = vmax.xlane.f32.xlu0 %v1372
    %v1374 = vpop.xlane.xlu0 %1373
    %vm1375 = vcmp.eq.f32.partialorder %v1370, %v1374
    %vm1376 = vcmp.eq.f32.partialorder %v1371, %v1374
    %v1377 = vsel %vm1375, %v553, 256
    %v1378 = vsel %vm1376, %v554, 256
    %vm1379 = vcmp.lt.s32.totalorder %v1377, %v1378
    %v1380 = vsel %vm1379, %v1377, %v1378
    %v1381 = vand.u32 %v1380, 65535
    %v1382 = vshra.s32 %v1380, 16
    %v1383 = vcvt.s32.f32 %v1381
    %v1384 = vcvt.s32.f32 %v1382
    %1385 = vmin.xlane.f32.xlu0 %v1384
    %v1386 = vpop.xlane.xlu0 %1385
    %vm1387 = vcmp.eq.f32.partialorder %v1384, %v1386
    %v1388 = vsel %vm1387, %v1383, inf
    %1389 = vmin.xlane.f32.xlu0 %v1388
    %v1390 = vpop.xlane.xlu0 %1389
    %v1391 = vcvt.f32.s32 %v1390
    %v1392 = vcvt.f32.s32 %v1386
    %v1393 = vshll.u32 %v1392, 16
    %v1394 = vadd.s32 %v1393, %v1391
    %v1395 = vsel %vm754, %v1394, %v1367
    %vm1396 = vcmp.eq.s32.totalorder %v553, %v1394
    %vm1397 = vcmp.eq.s32.totalorder %v554, %v1394
    %v1398 = vsel %vm1396, -inf, %v1370
    %v1399 = vsel %vm1397, -inf, %v1371
    %v1400 = vmax.f32 %v1398, %v1399
    %1401 = vmax.xlane.f32.xlu0 %v1400
    %v1402 = vpop.xlane.xlu0 %1401
    %vm1403 = vcmp.eq.f32.partialorder %v1398, %v1402
    %vm1404 = vcmp.eq.f32.partialorder %v1399, %v1402
    %v1405 = vsel %vm1403, %v553, 256
    %v1406 = vsel %vm1404, %v554, 256
    %vm1407 = vcmp.lt.s32.totalorder %v1405, %v1406
    %v1408 = vsel %vm1407, %v1405, %v1406
    %v1409 = vand.u32 %v1408, 65535
    %v1410 = vshra.s32 %v1408, 16
    %v1411 = vcvt.s32.f32 %v1409
    %v1412 = vcvt.s32.f32 %v1410
    %1413 = vmin.xlane.f32.xlu0 %v1412
    %v1414 = vpop.xlane.xlu0 %1413
    %vm1415 = vcmp.eq.f32.partialorder %v1412, %v1414
    %v1416 = vsel %vm1415, %v1411, inf
    %1417 = vmin.xlane.f32.xlu0 %v1416
    %v1418 = vpop.xlane.xlu0 %1417
    %v1419 = vcvt.f32.s32 %v1418
    %v1420 = vcvt.f32.s32 %v1414
    %v1421 = vshll.u32 %v1420, 16
    %v1422 = vadd.s32 %v1421, %v1419
    %v1423 = vsel %vm783, %v1422, %v1395
    %vm1424 = vcmp.eq.s32.totalorder %v553, %v1422
    %vm1425 = vcmp.eq.s32.totalorder %v554, %v1422
    %v1426 = vsel %vm1424, -inf, %v1398
    %v1427 = vsel %vm1425, -inf, %v1399
    %v1428 = vmax.f32 %v1426, %v1427
    %1429 = vmax.xlane.f32.xlu0 %v1428
    %v1430 = vpop.xlane.xlu0 %1429
    %vm1431 = vcmp.eq.f32.partialorder %v1426, %v1430
    %vm1432 = vcmp.eq.f32.partialorder %v1427, %v1430
    %v1433 = vsel %vm1431, %v553, 256
    %v1434 = vsel %vm1432, %v554, 256
    %vm1435 = vcmp.lt.s32.totalorder %v1433, %v1434
    %v1436 = vsel %vm1435, %v1433, %v1434
    %v1437 = vand.u32 %v1436, 65535
    %v1438 = vshra.s32 %v1436, 16
    %v1439 = vcvt.s32.f32 %v1437
    %v1440 = vcvt.s32.f32 %v1438
    %1441 = vmin.xlane.f32.xlu0 %v1440
    %v1442 = vpop.xlane.xlu0 %1441
    %vm1443 = vcmp.eq.f32.partialorder %v1440, %v1442
    %v1444 = vsel %vm1443, %v1439, inf
    %1445 = vmin.xlane.f32.xlu0 %v1444
    %v1446 = vpop.xlane.xlu0 %1445
    %v1447 = vcvt.f32.s32 %v1446
    %v1448 = vcvt.f32.s32 %v1442
    %v1449 = vshll.u32 %v1448, 16
    %v1450 = vadd.s32 %v1449, %v1447
    %v1451 = vsel %vm812, %v1450, %v1423
    %vm1452 = vcmp.eq.s32.totalorder %v553, %v1450
    %vm1453 = vcmp.eq.s32.totalorder %v554, %v1450
    %v1454 = vsel %vm1452, -inf, %v1426
    %v1455 = vsel %vm1453, -inf, %v1427
    %v1456 = vmax.f32 %v1454, %v1455
    %1457 = vmax.xlane.f32.xlu0 %v1456
    %v1458 = vpop.xlane.xlu0 %1457
    %vm1459 = vcmp.eq.f32.partialorder %v1454, %v1458
    %vm1460 = vcmp.eq.f32.partialorder %v1455, %v1458
    %v1461 = vsel %vm1459, %v553, 256
    %v1462 = vsel %vm1460, %v554, 256
    %vm1463 = vcmp.lt.s32.totalorder %v1461, %v1462
    %v1464 = vsel %vm1463, %v1461, %v1462
    %v1465 = vand.u32 %v1464, 65535
    %v1466 = vshra.s32 %v1464, 16
    %v1467 = vcvt.s32.f32 %v1465
    %v1468 = vcvt.s32.f32 %v1466
    %1469 = vmin.xlane.f32.xlu0 %v1468
    %v1470 = vpop.xlane.xlu0 %1469
    %vm1471 = vcmp.eq.f32.partialorder %v1468, %v1470
    %v1472 = vsel %vm1471, %v1467, inf
    %1473 = vmin.xlane.f32.xlu0 %v1472
    %v1474 = vpop.xlane.xlu0 %1473
    %v1475 = vcvt.f32.s32 %v1474
    %v1476 = vcvt.f32.s32 %v1470
    %v1477 = vshll.u32 %v1476, 16
    %v1478 = vadd.s32 %v1477, %v1475
    %v1479 = vsel %vm841, %v1478, %v1451
    %vm1480 = vcmp.eq.s32.totalorder %v553, %v1478
    %vm1481 = vcmp.eq.s32.totalorder %v554, %v1478
    %v1482 = vsel %vm1480, -inf, %v1454
    %v1483 = vsel %vm1481, -inf, %v1455
    %v1484 = vmax.f32 %v1482, %v1483
    %1485 = vmax.xlane.f32.xlu0 %v1484
    %v1486 = vpop.xlane.xlu0 %1485
    %vm1487 = vcmp.eq.f32.partialorder %v1482, %v1486
    %vm1488 = vcmp.eq.f32.partialorder %v1483, %v1486
    %v1489 = vsel %vm1487, %v553, 256
    %v1490 = vsel %vm1488, %v554, 256
    %vm1491 = vcmp.lt.s32.totalorder %v1489, %v1490
    %v1492 = vsel %vm1491, %v1489, %v1490
    %v1493 = vand.u32 %v1492, 65535
    %v1494 = vshra.s32 %v1492, 16
    %v1495 = vcvt.s32.f32 %v1493
    %v1496 = vcvt.s32.f32 %v1494
    %1497 = vmin.xlane.f32.xlu0 %v1496
    %v1498 = vpop.xlane.xlu0 %1497
    %vm1499 = vcmp.eq.f32.partialorder %v1496, %v1498
    %v1500 = vsel %vm1499, %v1495, inf
    %1501 = vmin.xlane.f32.xlu0 %v1500
    %v1502 = vpop.xlane.xlu0 %1501
    %v1503 = vcvt.f32.s32 %v1502
    %v1504 = vcvt.f32.s32 %v1498
    %v1505 = vshll.u32 %v1504, 16
    %v1506 = vadd.s32 %v1505, %v1503
    %v1507 = vsel %vm870, %v1506, %v1479
    %vm1508 = vcmp.eq.s32.totalorder %v553, %v1506
    %vm1509 = vcmp.eq.s32.totalorder %v554, %v1506
    %v1510 = vsel %vm1508, -inf, %v1482
    %v1511 = vsel %vm1509, -inf, %v1483
    %v1512 = vmax.f32 %v1510, %v1511
    %1513 = vmax.xlane.f32.xlu0 %v1512
    %v1514 = vpop.xlane.xlu0 %1513
    %vm1515 = vcmp.eq.f32.partialorder %v1510, %v1514
    %vm1516 = vcmp.eq.f32.partialorder %v1511, %v1514
    %v1517 = vsel %vm1515, %v553, 256
    %v1518 = vsel %vm1516, %v554, 256
    %vm1519 = vcmp.lt.s32.totalorder %v1517, %v1518
    %v1520 = vsel %vm1519, %v1517, %v1518
    %v1521 = vand.u32 %v1520, 65535
    %v1522 = vshra.s32 %v1520, 16
    %v1523 = vcvt.s32.f32 %v1521
    %v1524 = vcvt.s32.f32 %v1522
    %1525 = vmin.xlane.f32.xlu0 %v1524
    %v1526 = vpop.xlane.xlu0 %1525
    %vm1527 = vcmp.eq.f32.partialorder %v1524, %v1526
    %v1528 = vsel %vm1527, %v1523, inf
    %1529 = vmin.xlane.f32.xlu0 %v1528
    %v1530 = vpop.xlane.xlu0 %1529
    %v1531 = vcvt.f32.s32 %v1530
    %v1532 = vcvt.f32.s32 %v1526
    %v1533 = vshll.u32 %v1532, 16
    %v1534 = vadd.s32 %v1533, %v1531
    %v1535 = vsel %vm899, %v1534, %v1507
    %vm1536 = vcmp.eq.s32.totalorder %v553, %v1534
    %vm1537 = vcmp.eq.s32.totalorder %v554, %v1534
    %v1538 = vsel %vm1536, -inf, %v1510
    %v1539 = vsel %vm1537, -inf, %v1511
    %v1540 = vmax.f32 %v1538, %v1539
    %1541 = vmax.xlane.f32.xlu0 %v1540
    %v1542 = vpop.xlane.xlu0 %1541
    %vm1543 = vcmp.eq.f32.partialorder %v1538, %v1542
    %vm1544 = vcmp.eq.f32.partialorder %v1539, %v1542
    %v1545 = vsel %vm1543, %v553, 256
    %v1546 = vsel %vm1544, %v554, 256
    %vm1547 = vcmp.lt.s32.totalorder %v1545, %v1546
    %v1548 = vsel %vm1547, %v1545, %v1546
    %v1549 = vand.u32 %v1548, 65535
    %v1550 = vshra.s32 %v1548, 16
    %v1551 = vcvt.s32.f32 %v1549
    %v1552 = vcvt.s32.f32 %v1550
    %1553 = vmin.xlane.f32.xlu0 %v1552
    %v1554 = vpop.xlane.xlu0 %1553
    %vm1555 = vcmp.eq.f32.partialorder %v1552, %v1554
    %v1556 = vsel %vm1555, %v1551, inf
    %1557 = vmin.xlane.f32.xlu0 %v1556
    %v1558 = vpop.xlane.xlu0 %1557
    %v1559 = vcvt.f32.s32 %v1558
    %v1560 = vcvt.f32.s32 %v1554
    %v1561 = vshll.u32 %v1560, 16
    %v1562 = vadd.s32 %v1561, %v1559
    %v1563 = vsel %vm928, %v1562, %v1535
    %vm1564 = vcmp.eq.s32.totalorder %v553, %v1562
    %vm1565 = vcmp.eq.s32.totalorder %v554, %v1562
    %v1566 = vsel %vm1564, -inf, %v1538
    %v1567 = vsel %vm1565, -inf, %v1539
    %v1568 = vmax.f32 %v1566, %v1567
    %1569 = vmax.xlane.f32.xlu0 %v1568
    %v1570 = vpop.xlane.xlu0 %1569
    %vm1571 = vcmp.eq.f32.partialorder %v1566, %v1570
    %vm1572 = vcmp.eq.f32.partialorder %v1567, %v1570
    %v1573 = vsel %vm1571, %v553, 256
    %v1574 = vsel %vm1572, %v554, 256
    %vm1575 = vcmp.lt.s32.totalorder %v1573, %v1574
    %v1576 = vsel %vm1575, %v1573, %v1574
    %v1577 = vand.u32 %v1576, 65535
    %v1578 = vshra.s32 %v1576, 16
    %v1579 = vcvt.s32.f32 %v1577
    %v1580 = vcvt.s32.f32 %v1578
    %1581 = vmin.xlane.f32.xlu0 %v1580
    %v1582 = vpop.xlane.xlu0 %1581
    %vm1583 = vcmp.eq.f32.partialorder %v1580, %v1582
    %v1584 = vsel %vm1583, %v1579, inf
    %1585 = vmin.xlane.f32.xlu0 %v1584
    %v1586 = vpop.xlane.xlu0 %1585
    %v1587 = vcvt.f32.s32 %v1586
    %v1588 = vcvt.f32.s32 %v1582
    %v1589 = vshll.u32 %v1588, 16
    %v1590 = vadd.s32 %v1589, %v1587
    %v1591 = vsel %vm957, %v1590, %v1563
    %vm1592 = vcmp.eq.s32.totalorder %v553, %v1590
    %vm1593 = vcmp.eq.s32.totalorder %v554, %v1590
    %v1594 = vsel %vm1592, -inf, %v1566
    %v1595 = vsel %vm1593, -inf, %v1567
    %v1596 = vmax.f32 %v1594, %v1595
    %1597 = vmax.xlane.f32.xlu0 %v1596
    %v1598 = vpop.xlane.xlu0 %1597
    %vm1599 = vcmp.eq.f32.partialorder %v1594, %v1598
    %vm1600 = vcmp.eq.f32.partialorder %v1595, %v1598
    %v1601 = vsel %vm1599, %v553, 256
    %v1602 = vsel %vm1600, %v554, 256
    %vm1603 = vcmp.lt.s32.totalorder %v1601, %v1602
    %v1604 = vsel %vm1603, %v1601, %v1602
    %v1605 = vand.u32 %v1604, 65535
    %v1606 = vshra.s32 %v1604, 16
    %v1607 = vcvt.s32.f32 %v1605
    %v1608 = vcvt.s32.f32 %v1606
    %1609 = vmin.xlane.f32.xlu0 %v1608
    %v1610 = vpop.xlane.xlu0 %1609
    %vm1611 = vcmp.eq.f32.partialorder %v1608, %v1610
    %v1612 = vsel %vm1611, %v1607, inf
    %1613 = vmin.xlane.f32.xlu0 %v1612
    %v1614 = vpop.xlane.xlu0 %1613
    %v1615 = vcvt.f32.s32 %v1614
    %v1616 = vcvt.f32.s32 %v1610
    %v1617 = vshll.u32 %v1616, 16
    %v1618 = vadd.s32 %v1617, %v1615
    %v1619 = vsel %vm986, %v1618, %v1591
    %vm1620 = vcmp.eq.s32.totalorder %v553, %v1618
    %vm1621 = vcmp.eq.s32.totalorder %v554, %v1618
    %v1622 = vsel %vm1620, -inf, %v1594
    %v1623 = vsel %vm1621, -inf, %v1595
    %v1624 = vmax.f32 %v1622, %v1623
    %1625 = vmax.xlane.f32.xlu0 %v1624
    %v1626 = vpop.xlane.xlu0 %1625
    %vm1627 = vcmp.eq.f32.partialorder %v1622, %v1626
    %vm1628 = vcmp.eq.f32.partialorder %v1623, %v1626
    %v1629 = vsel %vm1627, %v553, 256
    %v1630 = vsel %vm1628, %v554, 256
    %vm1631 = vcmp.lt.s32.totalorder %v1629, %v1630
    %v1632 = vsel %vm1631, %v1629, %v1630
    %v1633 = vand.u32 %v1632, 65535
    %v1634 = vshra.s32 %v1632, 16
    %v1635 = vcvt.s32.f32 %v1633
    %v1636 = vcvt.s32.f32 %v1634
    %1637 = vmin.xlane.f32.xlu0 %v1636
    %v1638 = vpop.xlane.xlu0 %1637
    %vm1639 = vcmp.eq.f32.partialorder %v1636, %v1638
    %v1640 = vsel %vm1639, %v1635, inf
    %1641 = vmin.xlane.f32.xlu0 %v1640
    %v1642 = vpop.xlane.xlu0 %1641
    %v1643 = vcvt.f32.s32 %v1642
    %v1644 = vcvt.f32.s32 %v1638
    %v1645 = vshll.u32 %v1644, 16
    %v1646 = vadd.s32 %v1645, %v1643
    %v1647 = vsel %vm1015, %v1646, %v1619
    %vm1648 = vcmp.eq.s32.totalorder %v553, %v1646
    %vm1649 = vcmp.eq.s32.totalorder %v554, %v1646
    %v1650 = vsel %vm1648, -inf, %v1622
    %v1651 = vsel %vm1649, -inf, %v1623
    %v1652 = vmax.f32 %v1650, %v1651
    %1653 = vmax.xlane.f32.xlu0 %v1652
    %v1654 = vpop.xlane.xlu0 %1653
    %vm1655 = vcmp.eq.f32.partialorder %v1650, %v1654
    %vm1656 = vcmp.eq.f32.partialorder %v1651, %v1654
    %v1657 = vsel %vm1655, %v553, 256
    %v1658 = vsel %vm1656, %v554, 256
    %vm1659 = vcmp.lt.s32.totalorder %v1657, %v1658
    %v1660 = vsel %vm1659, %v1657, %v1658
    %v1661 = vand.u32 %v1660, 65535
    %v1662 = vshra.s32 %v1660, 16
    %v1663 = vcvt.s32.f32 %v1661
    %v1664 = vcvt.s32.f32 %v1662
    %1665 = vmin.xlane.f32.xlu0 %v1664
    %v1666 = vpop.xlane.xlu0 %1665
    %vm1667 = vcmp.eq.f32.partialorder %v1664, %v1666
    %v1668 = vsel %vm1667, %v1663, inf
    %1669 = vmin.xlane.f32.xlu0 %v1668
    %v1670 = vpop.xlane.xlu0 %1669
    %v1671 = vcvt.f32.s32 %v1670
    %v1672 = vcvt.f32.s32 %v1666
    %v1673 = vshll.u32 %v1672, 16
    %v1674 = vadd.s32 %v1673, %v1671
    %v1675 = vsel %vm1044, %v1674, %v1647
    %vm1676 = vcmp.eq.s32.totalorder %v447, %v1675
    %vm1677 = vcmp.eq.s32.totalorder %v555, %v1675
    %vm1678 = vcmp.eq.s32.totalorder %v556, %v1675
    %vm1679 = vcmp.eq.s32.totalorder %v557, %v1675
    %vm1680 = vcmp.eq.s32.totalorder %v558, %v1675
    %vm1681 = vcmp.eq.s32.totalorder %v559, %v1675
    %vm1682 = vcmp.eq.s32.totalorder %v560, %v1675
    %vm1683 = vcmp.eq.s32.totalorder %v561, %v1675
    %vm1684 = vcmp.eq.s32.totalorder %v562, %v1675
    %vm1685 = vcmp.eq.s32.totalorder %v563, %v1675
    %vm1686 = vcmp.eq.s32.totalorder %v564, %v1675
    %vm1687 = vcmp.eq.s32.totalorder %v565, %v1675
    %vm1688 = vcmp.eq.s32.totalorder %v566, %v1675
    %vm1689 = vcmp.eq.s32.totalorder %v567, %v1675
    %vm1690 = vcmp.eq.s32.totalorder %v568, %v1675
    %vm1691 = vcmp.eq.s32.totalorder %v569, %v1675
    %vm1692 = vcmp.eq.s32.totalorder %v570, %v1675
    %vm1693 = vcmp.eq.s32.totalorder %v571, %v1675
    %vm1694 = vcmp.eq.s32.totalorder %v572, %v1675
    %vm1695 = vcmp.eq.s32.totalorder %v573, %v1675
    %vm1696 = vcmp.eq.s32.totalorder %v574, %v1675
    %vm1697 = vcmp.eq.s32.totalorder %v575, %v1675
    %vm1698 = vcmp.eq.s32.totalorder %v576, %v1675
    %vm1699 = vcmp.eq.s32.totalorder %v577, %v1675
    %vm1700 = vcmp.eq.s32.totalorder %v578, %v1675
    %vm1701 = vcmp.eq.s32.totalorder %v579, %v1675
    %vm1702 = vcmp.eq.s32.totalorder %v580, %v1675
    %vm1703 = vcmp.eq.s32.totalorder %v581, %v1675
    %vm1704 = vcmp.eq.s32.totalorder %v582, %v1675
    %vm1705 = vcmp.eq.s32.totalorder %v583, %v1675
    %vm1706 = vcmp.eq.s32.totalorder %v584, %v1675
    %vm1707 = vcmp.eq.s32.totalorder %v585, %v1675
    %v1708 = vsel %vm1676, 1, 0
    %v1709 = vsel %vm1677, 1, 0
    %v1710 = vsel %vm1678, 1, 0
    %v1711 = vsel %vm1679, 1, 0
    %v1712 = vsel %vm1680, 1, 0
    %v1713 = vsel %vm1681, 1, 0
    %v1714 = vsel %vm1682, 1, 0
    %v1715 = vsel %vm1683, 1, 0
    %v1716 = vsel %vm1684, 1, 0
    %v1717 = vsel %vm1685, 1, 0
    %v1718 = vsel %vm1686, 1, 0
    %v1719 = vsel %vm1687, 1, 0
    %v1720 = vsel %vm1688, 1, 0
    %v1721 = vsel %vm1689, 1, 0
    %v1722 = vsel %vm1690, 1, 0
    %v1723 = vsel %vm1691, 1, 0
    %v1724 = vsel %vm1692, 1, 0
    %v1725 = vsel %vm1693, 1, 0
    %v1726 = vsel %vm1694, 1, 0
    %v1727 = vsel %vm1695, 1, 0
    %v1728 = vsel %vm1696, 1, 0
    %v1729 = vsel %vm1697, 1, 0
    %v1730 = vsel %vm1698, 1, 0
    %v1731 = vsel %vm1699, 1, 0
    %v1732 = vsel %vm1700, 1, 0
    %v1733 = vsel %vm1701, 1, 0
    %v1734 = vsel %vm1702, 1, 0
    %v1735 = vsel %vm1703, 1, 0
    %v1736 = vsel %vm1704, 1, 0
    %v1737 = vsel %vm1705, 1, 0
    %v1738 = vsel %vm1706, 1, 0
    %v1739 = vsel %vm1707, 1, 0
    %v1740 = vcvt.s32.f32 %v1708
    %v1741 = vcvt.s32.f32 %v1709
    %v1742 = vcvt.s32.f32 %v1710
    %v1743 = vcvt.s32.f32 %v1711
    %v1744 = vcvt.s32.f32 %v1712
    %v1745 = vcvt.s32.f32 %v1713
    %v1746 = vcvt.s32.f32 %v1714
    %v1747 = vcvt.s32.f32 %v1715
    %v1748 = vcvt.s32.f32 %v1716
    %v1749 = vcvt.s32.f32 %v1717
    %v1750 = vcvt.s32.f32 %v1718
    %v1751 = vcvt.s32.f32 %v1719
    %v1752 = vcvt.s32.f32 %v1720
    %v1753 = vcvt.s32.f32 %v1721
    %v1754 = vcvt.s32.f32 %v1722
    %v1755 = vcvt.s32.f32 %v1723
    %v1756 = vcvt.s32.f32 %v1724
    %v1757 = vcvt.s32.f32 %v1725
    %v1758 = vcvt.s32.f32 %v1726
    %v1759 = vcvt.s32.f32 %v1727
    %v1760 = vcvt.s32.f32 %v1728
    %v1761 = vcvt.s32.f32 %v1729
    %v1762 = vcvt.s32.f32 %v1730
    %v1763 = vcvt.s32.f32 %v1731
    %v1764 = vcvt.s32.f32 %v1732
    %v1765 = vcvt.s32.f32 %v1733
    %v1766 = vcvt.s32.f32 %v1734
    %v1767 = vcvt.s32.f32 %v1735
    %v1768 = vcvt.s32.f32 %v1736
    %v1769 = vcvt.s32.f32 %v1737
    %v1770 = vcvt.s32.f32 %v1738
    %v1771 = vcvt.s32.f32 %v1739
    %1772 = vmatprep.subr.mxu0 0.0
    %1773 = vmatpush1.msra.mxu0 %v1740
    %1774 = vmatprep.subr.mxu0 0.0
    %1775 = vmatpush1.msra.mxu0 %v1741
    %1776 = vmatprep.subr.mxu0 0.0
    %1777 = vmatpush1.msra.mxu0 %v1742
    %1778 = vmatprep.subr.mxu0 0.0
    %1779 = vmatpush1.msra.mxu0 %v1743
    %1780 = vmatprep.subr.mxu0 0.0
    %1781 = vmatpush1.msra.mxu0 %v1744
    %1782 = vmatprep.subr.mxu0 0.0
    %1783 = vmatpush1.msra.mxu0 %v1745
    %1784 = vmatprep.subr.mxu0 0.0
    %1785 = vmatpush1.msra.mxu0 %v1746
    %1786 = vmatprep.subr.mxu0 0.0
    %1787 = vmatpush1.msra.mxu0 %v1747
    %1788 = vmatprep.subr.mxu0 0.0
    %1789 = vmatpush1.msra.mxu0 %v1748
    %1790 = vmatprep.subr.mxu0 0.0
    %1791 = vmatpush1.msra.mxu0 %v1749
    %1792 = vmatprep.subr.mxu0 0.0
    %1793 = vmatpush1.msra.mxu0 %v1750
    %1794 = vmatprep.subr.mxu0 0.0
    %1795 = vmatpush1.msra.mxu0 %v1751
    %1796 = vmatprep.subr.mxu0 0.0
    %1797 = vmatpush1.msra.mxu0 %v1752
    %1798 = vmatprep.subr.mxu0 0.0
    %1799 = vmatpush1.msra.mxu0 %v1753
    %1800 = vmatprep.subr.mxu0 0.0
    %1801 = vmatpush1.msra.mxu0 %v1754
    %1802 = vmatprep.subr.mxu0 0.0
    %1803 = vmatpush1.msra.mxu0 %v1755
    %1804 = vmatprep.subr.mxu0 0.0
    %1805 = vmatpush1.msra.mxu0 %v1756
    %1806 = vmatprep.subr.mxu0 0.0
    %1807 = vmatpush1.msra.mxu0 %v1757
    %1808 = vmatprep.subr.mxu0 0.0
    %1809 = vmatpush1.msra.mxu0 %v1758
    %1810 = vmatprep.subr.mxu0 0.0
    %1811 = vmatpush1.msra.mxu0 %v1759
    %1812 = vmatprep.subr.mxu0 0.0
    %1813 = vmatpush1.msra.mxu0 %v1760
    %1814 = vmatprep.subr.mxu0 0.0
    %1815 = vmatpush1.msra.mxu0 %v1761
    %1816 = vmatprep.subr.mxu0 0.0
    %1817 = vmatpush1.msra.mxu0 %v1762
    %1818 = vmatprep.subr.mxu0 0.0
    %1819 = vmatpush1.msra.mxu0 %v1763
    %1820 = vmatprep.subr.mxu0 0.0
    %1821 = vmatpush1.msra.mxu0 %v1764
    %1822 = vmatprep.subr.mxu0 0.0
    %1823 = vmatpush1.msra.mxu0 %v1765
    %1824 = vmatprep.subr.mxu0 0.0
    %1825 = vmatpush1.msra.mxu0 %v1766
    %1826 = vmatprep.subr.mxu0 0.0
    %1827 = vmatpush1.msra.mxu0 %v1767
    %1828 = vmatprep.subr.mxu0 0.0
    %1829 = vmatpush1.msra.mxu0 %v1768
    %1830 = vmatprep.subr.mxu0 0.0
    %1831 = vmatpush1.msra.mxu0 %v1769
    %1832 = vmatprep.subr.mxu0 0.0
    %1833 = vmatpush1.msra.mxu0 %v1770
    %1834 = vmatprep.subr.mxu0 0.0
    %1835 = vmatpush1.msra.mxu0 %v1771
    %1836 = vmatprep.mubr.f32.mxu0 %v258
    %1837 = vmatmul.mubr.f32.gmra.mrb[0].mxu0 %v257
    %v1838 = vpop.f32.mrb[0].mxu0
    %v1839 = vadd.f32 0.0, %v1838
    %v1840 = vpop.f32.mrb[0].mxu0
    %1841 = vmatprep.mubr.f32.mxu0 %v262
    %1842 = vmatmul.mubr.f32.gmra.mrb[0].mxu0 %v261
    %v1843 = vpop.f32.mrb[0].mxu0
    %v1844 = vadd.f32 0.0, %v1843
    %v1845 = vpop.f32.mrb[0].mxu0
    %1846 = vmatprep.mubr.f32.mxu0 %v266
    %1847 = vmatmul.mubr.f32.gmra.mrb[0].mxu0 %v265
    %v1848 = vpop.f32.mrb[0].mxu0
    %v1849 = vadd.f32 0.0, %v1848
    %v1850 = vpop.f32.mrb[0].mxu0
    %1851 = vmatprep.mubr.f32.mxu0 %v270
    %1852 = vmatmul.mubr.f32.gmra.mrb[0].mxu0 %v269
    %v1853 = vpop.f32.mrb[0].mxu0
    %v1854 = vadd.f32 0.0, %v1853
    %v1855 = vpop.f32.mrb[0].mxu0
    %1856 = vmatprep.mubr.f32.mxu0 %v422
    %1857 = vmatmul.mubr.f32.gmra.mrb[0].mxu0 %v420
    %v1858 = vpop.f32.mrb[0].mxu0
    %v1859 = vadd.f32 0.0, %v1858
    %v1860 = vpop.f32.mrb[0].mxu0
    %1861 = vdwg.mxu0
    %vm1862 = vcmask 1040384
    %v1863 = vsel %vm1862, %v1045, %v1675
    %vm1864 = vcmask 123904
    %1865 = vst.msk [vmem:[%s13] sm:$0x3] %vm1864, %v1863
    %1871 = vrot.lane.b32.xlu0 %v1839, 16
    %v1872 = vpop.permute.xlu0 %1871
    %1873 = vrot.lane.b32.xlu0 %v1844, 16
    %v1874 = vpop.permute.xlu0 %1873
    %1875 = vrot.lane.b32.xlu0 %v1849, 16
    %v1876 = vpop.permute.xlu0 %1875
    %1877 = vrot.lane.b32.xlu0 %v1854, 16
    %v1878 = vpop.permute.xlu0 %1877
    %1879 = vrot.lane.b32.xlu0 %v1859, 16
    %v1880 = vpop.permute.xlu0 %1879
    %vm1886 = vcmask 130048
    %v1887 = vsel %vm1886, %v1209, %v1872
    %v1888 = vsel %vm1886, %v1214, %v1874
    %v1889 = vsel %vm1886, %v1219, %v1876
    %v1890 = vsel %vm1886, %v1224, %v1878
    %v1891 = vsel %vm1886, %v1229, %v1880
    %v1892 = vld [vmem:[%s4] sm:$0xff]
    %v1893 = vld [vmem:[%s4 + $0x8] sm:$0xff]
    %v1894 = vld [vmem:[%s4 + $0x10] sm:$0xff]
    %v1895 = vld [vmem:[%s4 + $0x18] sm:$0xff]
    %v1896 = vld [vmem:[%s4 + $0x20] sm:$0xff]
    %v1897 = vld [vmem:[%s4 + $0x28] sm:$0xff]
    %v1898 = vld [vmem:[%s4 + $0x30] sm:$0xff]
    %v1899 = vld [vmem:[%s4 + $0x38] sm:$0xff]
    %v1900 = vld [vmem:[%s5] sm:$0xff]
    %v1901 = vld [vmem:[%s5 + $0x8] sm:$0xff]
    %v1902 = vld [vmem:[%s5 + $0x10] sm:$0xff]
    %v1903 = vld [vmem:[%s5 + $0x18] sm:$0xff]
    %v1904 = vld [vmem:[%s5 + $0x20] sm:$0xff]
    %v1905 = vld [vmem:[%s5 + $0x28] sm:$0xff]
    %v1906 = vld [vmem:[%s5 + $0x30] sm:$0xff]
    %v1907 = vld [vmem:[%s5 + $0x38] sm:$0xff]
    %1909 = vset.pattern.permute.xlu0 0
    %1910 = vperm.xlu0 %1909, %v1900
    %v1911 = vpop.permute.xlu0 %1910
    %1914 = vset.pattern.permute.xlu0 0
    %1915 = vperm.xlu0 %1914, %v1901
    %v1916 = vpop.permute.xlu0 %1915
    %1919 = vset.pattern.permute.xlu0 0
    %1920 = vperm.xlu0 %1919, %v1902
    %v1921 = vpop.permute.xlu0 %1920
    %1924 = vset.pattern.permute.xlu0 0
    %1925 = vperm.xlu0 %1924, %v1903
    %v1926 = vpop.permute.xlu0 %1925
    %1929 = vset.pattern.permute.xlu0 0
    %1930 = vperm.xlu0 %1929, %v1904
    %v1931 = vpop.permute.xlu0 %1930
    %1934 = vset.pattern.permute.xlu0 0
    %1935 = vperm.xlu0 %1934, %v1905
    %v1936 = vpop.permute.xlu0 %1935
    %1939 = vset.pattern.permute.xlu0 0
    %1940 = vperm.xlu0 %1939, %v1906
    %v1941 = vpop.permute.xlu0 %1940
    %1944 = vset.pattern.permute.xlu0 0
    %1945 = vperm.xlu0 %1944, %v1907
    %v1946 = vpop.permute.xlu0 %1945
    %v1949 = vsel %vm64, %v1892, 0
    %v1952 = vsel %vm64, %v1893, 0
    %v1955 = vsel %vm64, %v1894, 0
    %v1958 = vsel %vm64, %v1895, 0
    %v1961 = vsel %vm64, %v1896, 0
    %v1964 = vsel %vm64, %v1897, 0
    %v1967 = vsel %vm64, %v1898, 0
    %v1970 = vsel %vm64, %v1899, 0
    %1972 = vmatprep.subr.mxu0 0.0
    %1973 = vmatpush1.msra.mxu0 %v1887
    %1974 = vmatprep.subr.mxu0 0.0
    %1975 = vmatpush1.msra.mxu0 %v1888
    %1976 = vmatprep.subr.mxu0 0.0
    %1977 = vmatpush1.msra.mxu0 %v1889
    %1978 = vmatprep.subr.mxu0 0.0
    %1979 = vmatpush1.msra.mxu0 %v1890
    %1980 = vmatprep.subr.mxu0 0.0
    %1981 = vmatpush1.msra.mxu0 %v1891
    %1982 = vmatprep.subr.mxu0 0.0
    %1983 = vmatpush1.msra.mxu0 0.0
    %1984 = vmatprep.subr.mxu0 0.0
    %1985 = vmatpush1.msra.mxu0 0.0
    %1986 = vmatprep.subr.mxu0 0.0
    %1987 = vmatpush1.msra.mxu0 0.0
    %1988 = vmatprep.subr.mxu0 0.0
    %1989 = vmatpush1.msra.mxu0 0.0
    %1990 = vmatprep.subr.mxu0 0.0
    %1991 = vmatpush1.msra.mxu0 0.0
    %1992 = vmatprep.subr.mxu0 0.0
    %1993 = vmatpush1.msra.mxu0 0.0
    %1994 = vmatprep.subr.mxu0 0.0
    %1995 = vmatpush1.msra.mxu0 0.0
    %1996 = vmatprep.subr.mxu0 0.0
    %1997 = vmatpush1.msra.mxu0 0.0
    %1998 = vmatprep.subr.mxu0 0.0
    %1999 = vmatpush1.msra.mxu0 0.0
    %2000 = vmatprep.subr.mxu0 0.0
    %2001 = vmatpush1.msra.mxu0 0.0
    %2002 = vmatprep.subr.mxu0 0.0
    %2003 = vmatpush1.msra.mxu0 0.0
    %2004 = vmatprep.subr.mxu0 0.0
    %2005 = vmatpush1.msra.mxu0 0.0
    %2006 = vmatprep.subr.mxu0 0.0
    %2007 = vmatpush1.msra.mxu0 0.0
    %2008 = vmatprep.subr.mxu0 0.0
    %2009 = vmatpush1.msra.mxu0 0.0
    %2010 = vmatprep.subr.mxu0 0.0
    %2011 = vmatpush1.msra.mxu0 0.0
    %2012 = vmatprep.subr.mxu0 0.0
    %2013 = vmatpush1.msra.mxu0 0.0
    %2014 = vmatprep.subr.mxu0 0.0
    %2015 = vmatpush1.msra.mxu0 0.0
    %2016 = vmatprep.subr.mxu0 0.0
    %2017 = vmatpush1.msra.mxu0 0.0
    %2018 = vmatprep.subr.mxu0 0.0
    %2019 = vmatpush1.msra.mxu0 0.0
    %2020 = vmatprep.subr.mxu0 0.0
    %2021 = vmatpush1.msra.mxu0 0.0
    %2022 = vmatprep.subr.mxu0 0.0
    %2023 = vmatpush1.msra.mxu0 0.0
    %2024 = vmatprep.subr.mxu0 0.0
    %2025 = vmatpush1.msra.mxu0 0.0
    %2026 = vmatprep.subr.mxu0 0.0
    %2027 = vmatpush1.msra.mxu0 0.0
    %2028 = vmatprep.subr.mxu0 0.0
    %2029 = vmatpush1.msra.mxu0 0.0
    %2030 = vmatprep.subr.mxu0 0.0
    %2031 = vmatpush1.msra.mxu0 0.0
    %2032 = vmatprep.subr.mxu0 0.0
    %2033 = vmatpush1.msra.mxu0 0.0
    %2034 = vmatprep.subr.mxu0 0.0
    %2035 = vmatpush1.msra.mxu0 0.0
    %2036 = vmatprep.mubr.f32.mxu0 0.0
    %2037 = vmatmul.mubr.f32.gmra.mrb[0].mxu0 %v1949
    %v2038 = vpop.f32.mrb[0].mxu0
    %v2039 = vadd.f32 %v1911, %v2038
    %v2040 = vpop.f32.mrb[0].mxu0
    %2041 = vmatprep.mubr.f32.mxu0 0.0
    %2042 = vmatmul.mubr.f32.gmra.mrb[0].mxu0 %v1952
    %v2043 = vpop.f32.mrb[0].mxu0
    %v2044 = vadd.f32 %v1916, %v2043
    %v2045 = vpop.f32.mrb[0].mxu0
    %2046 = vmatprep.mubr.f32.mxu0 0.0
    %2047 = vmatmul.mubr.f32.gmra.mrb[0].mxu0 %v1955
    %v2048 = vpop.f32.mrb[0].mxu0
    %v2049 = vadd.f32 %v1921, %v2048
    %v2050 = vpop.f32.mrb[0].mxu0
    %2051 = vmatprep.mubr.f32.mxu0 0.0
    %2052 = vmatmul.mubr.f32.gmra.mrb[0].mxu0 %v1958
    %v2053 = vpop.f32.mrb[0].mxu0
    %v2054 = vadd.f32 %v1926, %v2053
    %v2055 = vpop.f32.mrb[0].mxu0
    %2056 = vmatprep.mubr.f32.mxu0 0.0
    %2057 = vmatmul.mubr.f32.gmra.mrb[0].mxu0 %v1961
    %v2058 = vpop.f32.mrb[0].mxu0
    %v2059 = vadd.f32 %v1931, %v2058
    %v2060 = vpop.f32.mrb[0].mxu0
    %2061 = vmatprep.mubr.f32.mxu0 0.0
    %2062 = vmatmul.mubr.f32.gmra.mrb[0].mxu0 %v1964
    %v2063 = vpop.f32.mrb[0].mxu0
    %v2064 = vadd.f32 %v1936, %v2063
    %v2065 = vpop.f32.mrb[0].mxu0
    %2066 = vmatprep.mubr.f32.mxu0 0.0
    %2067 = vmatmul.mubr.f32.gmra.mrb[0].mxu0 %v1967
    %v2068 = vpop.f32.mrb[0].mxu0
    %v2069 = vadd.f32 %v1941, %v2068
    %v2070 = vpop.f32.mrb[0].mxu0
    %2071 = vmatprep.mubr.f32.mxu0 0.0
    %2072 = vmatmul.mubr.f32.gmra.mrb[0].mxu0 %v1970
    %v2073 = vpop.f32.mrb[0].mxu0
    %v2074 = vadd.f32 %v1946, %v2073
    %v2075 = vpop.f32.mrb[0].mxu0
    %2076 = vdwg.mxu0
    %v2077 = vmax.f32 %v2039, 0.0
    %v2078 = vmax.f32 %v2044, 0.0
    %v2079 = vmax.f32 %v2049, 0.0
    %v2080 = vmax.f32 %v2054, 0.0
    %v2081 = vmax.f32 %v2059, 0.0
    %v2082 = vmax.f32 %v2064, 0.0
    %v2083 = vmax.f32 %v2069, 0.0
    %v2084 = vmax.f32 %v2074, 0.0
    %v2085 = vld [vmem:[%s6] sm:$0xff]
    %v2086 = vld [vmem:[%s6 + $0x8] sm:$0xff]
    %v2087 = vld [vmem:[%s6 + $0x10] sm:$0xff]
    %v2088 = vld [vmem:[%s6 + $0x18] sm:$0xff]
    %v2089 = vld [vmem:[%s6 + $0x20] sm:$0xff]
    %v2090 = vld [vmem:[%s6 + $0x28] sm:$0xff]
    %v2091 = vld [vmem:[%s6 + $0x30] sm:$0xff]
    %v2092 = vld [vmem:[%s6 + $0x38] sm:$0xff]
    %v2093 = vld [vmem:[%s7] sm:$0xff]
    %v2094 = vld [vmem:[%s7 + $0x8] sm:$0xff]
    %v2095 = vld [vmem:[%s7 + $0x10] sm:$0xff]
    %v2096 = vld [vmem:[%s7 + $0x18] sm:$0xff]
    %v2097 = vld [vmem:[%s7 + $0x20] sm:$0xff]
    %v2098 = vld [vmem:[%s7 + $0x28] sm:$0xff]
    %v2099 = vld [vmem:[%s7 + $0x30] sm:$0xff]
    %v2100 = vld [vmem:[%s7 + $0x38] sm:$0xff]
    %2102 = vset.pattern.permute.xlu0 0
    %2103 = vperm.xlu0 %2102, %v2093
    %v2104 = vpop.permute.xlu0 %2103
    %2107 = vset.pattern.permute.xlu0 0
    %2108 = vperm.xlu0 %2107, %v2094
    %v2109 = vpop.permute.xlu0 %2108
    %2112 = vset.pattern.permute.xlu0 0
    %2113 = vperm.xlu0 %2112, %v2095
    %v2114 = vpop.permute.xlu0 %2113
    %2117 = vset.pattern.permute.xlu0 0
    %2118 = vperm.xlu0 %2117, %v2096
    %v2119 = vpop.permute.xlu0 %2118
    %2122 = vset.pattern.permute.xlu0 0
    %2123 = vperm.xlu0 %2122, %v2097
    %v2124 = vpop.permute.xlu0 %2123
    %2127 = vset.pattern.permute.xlu0 0
    %2128 = vperm.xlu0 %2127, %v2098
    %v2129 = vpop.permute.xlu0 %2128
    %2132 = vset.pattern.permute.xlu0 0
    %2133 = vperm.xlu0 %2132, %v2099
    %v2134 = vpop.permute.xlu0 %2133
    %2137 = vset.pattern.permute.xlu0 0
    %2138 = vperm.xlu0 %2137, %v2100
    %v2139 = vpop.permute.xlu0 %2138
    %vm2141 = vcmask 523264
    %v2143 = vsel %vm2141, %v2085, 0
    %v2146 = vsel %vm2141, %v2086, 0
    %v2149 = vsel %vm2141, %v2087, 0
    %v2152 = vsel %vm2141, %v2088, 0
    %v2155 = vsel %vm2141, %v2089, 0
    %v2158 = vsel %vm2141, %v2090, 0
    %v2161 = vsel %vm2141, %v2091, 0
    %v2164 = vsel %vm2141, %v2092, 0
    %2166 = vmatprep.subr.mxu0 0.0
    %2167 = vmatpush1.msra.mxu0 %v2077
    %2168 = vmatprep.subr.mxu0 0.0
    %2169 = vmatpush1.msra.mxu0 %v2078
    %2170 = vmatprep.subr.mxu0 0.0
    %2171 = vmatpush1.msra.mxu0 %v2079
    %2172 = vmatprep.subr.mxu0 0.0
    %2173 = vmatpush1.msra.mxu0 %v2080
    %2174 = vmatprep.subr.mxu0 0.0
    %2175 = vmatpush1.msra.mxu0 %v2081
    %2176 = vmatprep.subr.mxu0 0.0
    %2177 = vmatpush1.msra.mxu0 %v2082
    %2178 = vmatprep.subr.mxu0 0.0
    %2179 = vmatpush1.msra.mxu0 %v2083
    %2180 = vmatprep.subr.mxu0 0.0
    %2181 = vmatpush1.msra.mxu0 %v2084
    %2182 = vmatprep.subr.mxu0 0.0
    %2183 = vmatpush1.msra.mxu0 0.0
    %2184 = vmatprep.subr.mxu0 0.0
    %2185 = vmatpush1.msra.mxu0 0.0
    %2186 = vmatprep.subr.mxu0 0.0
    %2187 = vmatpush1.msra.mxu0 0.0
    %2188 = vmatprep.subr.mxu0 0.0
    %2189 = vmatpush1.msra.mxu0 0.0
    %2190 = vmatprep.subr.mxu0 0.0
    %2191 = vmatpush1.msra.mxu0 0.0
    %2192 = vmatprep.subr.mxu0 0.0
    %2193 = vmatpush1.msra.mxu0 0.0
    %2194 = vmatprep.subr.mxu0 0.0
    %2195 = vmatpush1.msra.mxu0 0.0
    %2196 = vmatprep.subr.mxu0 0.0
    %2197 = vmatpush1.msra.mxu0 0.0
    %2198 = vmatprep.subr.mxu0 0.0
    %2199 = vmatpush1.msra.mxu0 0.0
    %2200 = vmatprep.subr.mxu0 0.0
    %2201 = vmatpush1.msra.mxu0 0.0
    %2202 = vmatprep.subr.mxu0 0.0
    %2203 = vmatpush1.msra.mxu0 0.0
    %2204 = vmatprep.subr.mxu0 0.0
    %2205 = vmatpush1.msra.mxu0 0.0
    %2206 = vmatprep.subr.mxu0 0.0
    %2207 = vmatpush1.msra.mxu0 0.0
    %2208 = vmatprep.subr.mxu0 0.0
    %2209 = vmatpush1.msra.mxu0 0.0
    %2210 = vmatprep.subr.mxu0 0.0
    %2211 = vmatpush1.msra.mxu0 0.0
    %2212 = vmatprep.subr.mxu0 0.0
    %2213 = vmatpush1.msra.mxu0 0.0
    %2214 = vmatprep.subr.mxu0 0.0
    %2215 = vmatpush1.msra.mxu0 0.0
    %2216 = vmatprep.subr.mxu0 0.0
    %2217 = vmatpush1.msra.mxu0 0.0
    %2218 = vmatprep.subr.mxu0 0.0
    %2219 = vmatpush1.msra.mxu0 0.0
    %2220 = vmatprep.subr.mxu0 0.0
    %2221 = vmatpush1.msra.mxu0 0.0
    %2222 = vmatprep.subr.mxu0 0.0
    %2223 = vmatpush1.msra.mxu0 0.0
    %2224 = vmatprep.subr.mxu0 0.0
    %2225 = vmatpush1.msra.mxu0 0.0
    %2226 = vmatprep.subr.mxu0 0.0
    %2227 = vmatpush1.msra.mxu0 0.0
    %2228 = vmatprep.subr.mxu0 0.0
    %2229 = vmatpush1.msra.mxu0 0.0
    %2230 = vmatprep.mubr.f32.mxu0 0.0
    %2231 = vmatmul.mubr.f32.gmra.mrb[0].mxu0 %v2143
    %v2232 = vpop.f32.mrb[0].mxu0
    %v2233 = vadd.f32 %v2104, %v2232
    %v2234 = vpop.f32.mrb[0].mxu0
    %2235 = vmatprep.mubr.f32.mxu0 0.0
    %2236 = vmatmul.mubr.f32.gmra.mrb[0].mxu0 %v2146
    %v2237 = vpop.f32.mrb[0].mxu0
    %v2238 = vadd.f32 %v2109, %v2237
    %v2239 = vpop.f32.mrb[0].mxu0
    %2240 = vmatprep.mubr.f32.mxu0 0.0
    %2241 = vmatmul.mubr.f32.gmra.mrb[0].mxu0 %v2149
    %v2242 = vpop.f32.mrb[0].mxu0
    %v2243 = vadd.f32 %v2114, %v2242
    %v2244 = vpop.f32.mrb[0].mxu0
    %2245 = vmatprep.mubr.f32.mxu0 0.0
    %2246 = vmatmul.mubr.f32.gmra.mrb[0].mxu0 %v2152
    %v2247 = vpop.f32.mrb[0].mxu0
    %v2248 = vadd.f32 %v2119, %v2247
    %v2249 = vpop.f32.mrb[0].mxu0
    %2250 = vmatprep.mubr.f32.mxu0 0.0
    %2251 = vmatmul.mubr.f32.gmra.mrb[0].mxu0 %v2155
    %v2252 = vpop.f32.mrb[0].mxu0
    %v2253 = vadd.f32 %v2124, %v2252
    %v2254 = vpop.f32.mrb[0].mxu0
    %2255 = vmatprep.mubr.f32.mxu0 0.0
    %2256 = vmatmul.mubr.f32.gmra.mrb[0].mxu0 %v2158
    %v2257 = vpop.f32.mrb[0].mxu0
    %v2258 = vadd.f32 %v2129, %v2257
    %v2259 = vpop.f32.mrb[0].mxu0
    %2260 = vmatprep.mubr.f32.mxu0 0.0
    %2261 = vmatmul.mubr.f32.gmra.mrb[0].mxu0 %v2161
    %v2262 = vpop.f32.mrb[0].mxu0
    %v2263 = vadd.f32 %v2134, %v2262
    %v2264 = vpop.f32.mrb[0].mxu0
    %2265 = vmatprep.mubr.f32.mxu0 0.0
    %2266 = vmatmul.mubr.f32.gmra.mrb[0].mxu0 %v2164
    %v2267 = vpop.f32.mrb[0].mxu0
    %v2268 = vadd.f32 %v2139, %v2267
    %v2269 = vpop.f32.mrb[0].mxu0
    %2270 = vdwg.mxu0
    %v2271 = vmax.f32 %v2233, 0.0
    %v2272 = vmax.f32 %v2238, 0.0
    %v2273 = vmax.f32 %v2243, 0.0
    %v2274 = vmax.f32 %v2248, 0.0
    %v2275 = vmax.f32 %v2253, 0.0
    %v2276 = vmax.f32 %v2258, 0.0
    %v2277 = vmax.f32 %v2263, 0.0
    %v2278 = vmax.f32 %v2268, 0.0
    %v2279 = vld [vmem:[%s8] sm:$0xff]
    %v2280 = vld [vmem:[%s9] sm:$0xff]
    %2282 = vset.pattern.permute.xlu0 0
    %2283 = vperm.xlu0 %2282, %v2280
    %v2284 = vpop.permute.xlu0 %2283
    %v2287 = vsel %vm2141, %v2279, 0
    %2289 = vmatprep.subr.mxu0 0.0
    %2290 = vmatpush1.msra.mxu0 %v2271
    %2291 = vmatprep.subr.mxu0 0.0
    %2292 = vmatpush1.msra.mxu0 %v2272
    %2293 = vmatprep.subr.mxu0 0.0
    %2294 = vmatpush1.msra.mxu0 %v2273
    %2295 = vmatprep.subr.mxu0 0.0
    %2296 = vmatpush1.msra.mxu0 %v2274
    %2297 = vmatprep.subr.mxu0 0.0
    %2298 = vmatpush1.msra.mxu0 %v2275
    %2299 = vmatprep.subr.mxu0 0.0
    %2300 = vmatpush1.msra.mxu0 %v2276
    %2301 = vmatprep.subr.mxu0 0.0
    %2302 = vmatpush1.msra.mxu0 %v2277
    %2303 = vmatprep.subr.mxu0 0.0
    %2304 = vmatpush1.msra.mxu0 %v2278
    %2305 = vmatprep.subr.mxu0 0.0
    %2306 = vmatpush1.msra.mxu0 0.0
    %2307 = vmatprep.subr.mxu0 0.0
    %2308 = vmatpush1.msra.mxu0 0.0
    %2309 = vmatprep.subr.mxu0 0.0
    %2310 = vmatpush1.msra.mxu0 0.0
    %2311 = vmatprep.subr.mxu0 0.0
    %2312 = vmatpush1.msra.mxu0 0.0
    %2313 = vmatprep.subr.mxu0 0.0
    %2314 = vmatpush1.msra.mxu0 0.0
    %2315 = vmatprep.subr.mxu0 0.0
    %2316 = vmatpush1.msra.mxu0 0.0
    %2317 = vmatprep.subr.mxu0 0.0
    %2318 = vmatpush1.msra.mxu0 0.0
    %2319 = vmatprep.subr.mxu0 0.0
    %2320 = vmatpush1.msra.mxu0 0.0
    %2321 = vmatprep.subr.mxu0 0.0
    %2322 = vmatpush1.msra.mxu0 0.0
    %2323 = vmatprep.subr.mxu0 0.0
    %2324 = vmatpush1.msra.mxu0 0.0
    %2325 = vmatprep.subr.mxu0 0.0
    %2326 = vmatpush1.msra.mxu0 0.0
    %2327 = vmatprep.subr.mxu0 0.0
    %2328 = vmatpush1.msra.mxu0 0.0
    %2329 = vmatprep.subr.mxu0 0.0
    %2330 = vmatpush1.msra.mxu0 0.0
    %2331 = vmatprep.subr.mxu0 0.0
    %2332 = vmatpush1.msra.mxu0 0.0
    %2333 = vmatprep.subr.mxu0 0.0
    %2334 = vmatpush1.msra.mxu0 0.0
    %2335 = vmatprep.subr.mxu0 0.0
    %2336 = vmatpush1.msra.mxu0 0.0
    %2337 = vmatprep.subr.mxu0 0.0
    %2338 = vmatpush1.msra.mxu0 0.0
    %2339 = vmatprep.subr.mxu0 0.0
    %2340 = vmatpush1.msra.mxu0 0.0
    %2341 = vmatprep.subr.mxu0 0.0
    %2342 = vmatpush1.msra.mxu0 0.0
    %2343 = vmatprep.subr.mxu0 0.0
    %2344 = vmatpush1.msra.mxu0 0.0
    %2345 = vmatprep.subr.mxu0 0.0
    %2346 = vmatpush1.msra.mxu0 0.0
    %2347 = vmatprep.subr.mxu0 0.0
    %2348 = vmatpush1.msra.mxu0 0.0
    %2349 = vmatprep.subr.mxu0 0.0
    %2350 = vmatpush1.msra.mxu0 0.0
    %2351 = vmatprep.subr.mxu0 0.0
    %2352 = vmatpush1.msra.mxu0 0.0
    %2353 = vmatprep.mubr.f32.mxu0 0.0
    %2354 = vmatmul.mubr.f32.gmra.mrb[0].mxu0 %v2287
    %v2355 = vpop.f32.mrb[0].mxu0
    %v2356 = vadd.f32 %v2284, %v2355
    %v2357 = vpop.f32.mrb[0].mxu0
    %2358 = vdwg.mxu0
    %2359 = vst.msk [vmem:[#allocation2] sm:$0xff] %vm1886, %v2356
    %2361 = vrot.lane.b32.xlu0 %v2356, 112
    %v2362 = vpop.permute.xlu0 %2361
    %s2364 = scalar_lea.vmem [#allocation2], 8
    %2365 = vst.msk [vmem:[%s2364] sm:$0xff] %vm1886, %v2362
    // Predicated region
    $region42: #{pointrend_forward.1} parent=1 // pred_check
      _
    $region43: #{pointrend_forward.1} parent=1 // pred_check_branch
      %2367 = sbr.rel (0) target = $region45
    $region44: #{pointrend_forward.1} parent=1 // pred_region
      _
    $region45: #{pointrend_forward.1} parent=1 // pred_fallthru
      _
    // Predicated region
    $region46: #{pointrend_forward.1} parent=1 // pred_check
      _
    $region47: #{pointrend_forward.1} parent=1 // pred_check_branch
      %2369 = sbr.rel (0) target = $region49
    $region48: #{pointrend_forward.1} parent=1 // pred_region
      _
    $region49: #{pointrend_forward.1} parent=1 // pred_fallthru
      _
    // Predicated region
    $region50: #{pointrend_forward.1} parent=1 // pred_check
      _
    $region51: #{pointrend_forward.1} parent=1 // pred_check_branch
      %2371 = sbr.rel (0) target = $region53
    $region52: #{pointrend_forward.1} parent=1 // pred_region
      %s2373 = ssub.s32 256, 256
      %2374 = vsyncadd [#allocation3], %s2373
      %s2375 = sshll.u32 [#allocation2], 4
      %s2376 = int_to_ptr.vmem [resolvable:$true] %s2375
      %2381 = dma.vmem_to_hbm [thread:$0]  %s2376, 256, %s12, [#allocation3], 128, 128, 8
    $region53: #{pointrend_forward.1} parent=1 // pred_fallthru
      _
    // Predicated region
    $region54: #{pointrend_forward.1} parent=1 // pred_check
      _
    $region55: #{pointrend_forward.1} parent=1 // pred_check_branch
      %2383 = sbr.rel (0) target = $region57
    $region56: #{pointrend_forward.1} parent=1 // pred_region
      _
    $region57: #{pointrend_forward.1} parent=1 // pred_fallthru
      _
    // Predicated region
    $region58: #{pointrend_forward.1} parent=1 // pred_check
      _
    $region59: #{pointrend_forward.1} parent=1 // pred_check_branch
      %2385 = sbr.rel (0) target = $region61
    $region60: #{pointrend_forward.1} parent=1 // pred_region
      _
    $region61: #{pointrend_forward.1} parent=1 // pred_fallthru
      _
    // Predicated region
    $region62: #{pointrend_forward.1} parent=1 // pred_check
      _
    $region63: #{pointrend_forward.1} parent=1 // pred_check_branch
      %2387 = sbr.rel (0) target = $region65
    $region64: #{pointrend_forward.1} parent=1 // pred_region
      _
    $region65: #{pointrend_forward.1} parent=1 // pred_fallthru
      _
    // Predicated region
    $region66: #{pointrend_forward.1} parent=1 // pred_check
      _
    $region67: #{pointrend_forward.1} parent=1 // pred_check_branch
      %2389 = sbr.rel (0) target = $region69
    $region68: #{pointrend_forward.1} parent=1 // pred_region
      %2390 = dma.done [#allocation3], 256
    $region69: #{pointrend_forward.1} parent=1 // pred_fallthru
      _
    // Predicated region
    $region70: #{pointrend_forward.1} parent=1 // pred_check
      _
    $region71: #{pointrend_forward.1} parent=1 // pred_check_branch
      %2392 = sbr.rel (0) target = $region73
    $region72: #{pointrend_forward.1} parent=1 // pred_region
      _
    $region73: #{pointrend_forward.1} parent=1 // pred_fallthru
      _
    %2393 = vsyncpa [#allocation3], 1

</llo_original>
